<compile_context>
chip_gen: v7x
topology: tpu7x:2x2x1
jax: 0.10.0
libtpu: 0.0.40
codegen_flags: <defaults>
</compile_context>

<pallas_src>
import functools

import numpy as np
import jax
import jax.numpy as jnp
from jax.experimental import pallas as pl
from jax.experimental.pallas import tpu as pltpu

EPS = 1e-8          # self.eps in the module (attention and mvn scale)
LN_EPS = 1e-5       # torch.nn.LayerNorm default


def _ln(x, g, b):
    mu = jnp.mean(x, axis=-1, keepdims=True)
    var = jnp.mean(jnp.square(x - mu), axis=-1, keepdims=True)
    return (x - mu) * jax.lax.rsqrt(var + LN_EPS) * g + b


def _ln_packed(x, mu_mask, g, b, half):
    """Two independent LayerNorms over the lower/upper `half`-lane halves of x.

    Lower-half statistics use a masked cross-lane reduce; the upper-half
    statistics are derived from (total - lower), so only 2 of the 4 reductions
    per call are masked (less XLU / VPU traffic than the naive 4-masked form).
    """
    inv = 1.0 / float(half)
    s_tot = jnp.sum(x, axis=-1, keepdims=True)
    s_lo = jnp.sum(jnp.where(mu_mask, x, 0.0), axis=-1, keepdims=True)
    mean = jnp.where(mu_mask, s_lo, s_tot - s_lo) * inv
    xc = x - mean
    sq = xc * xc
    v_tot = jnp.sum(sq, axis=-1, keepdims=True)
    v_lo = jnp.sum(jnp.where(mu_mask, sq, 0.0), axis=-1, keepdims=True)
    var = jnp.where(mu_mask, v_lo, v_tot - v_lo) * inv
    return xc * jax.lax.rsqrt(var + LN_EPS) * g + b


def object_discovery_kernel(
    # data (per batch-block)
    inputs_ref, lam0_ref, noise_ref,
    # parameters (constant index_map -> fetched once)
    wq_ref, wk_ref, wv_ref,
    gru_wih_ref, gru_whh_ref, mlp_w1_ref, mlp_w2_ref, vec_ref,
    # outputs
    lamda_out_ref, samples_out_ref,
    *, num_layers, z_size, attn_scale):
    D = z_size
    H2 = 2 * D
    B, J, C = inputs_ref.shape
    K = lam0_ref.shape[1]
    R = B * K

    # ---- parameter reads / slices, hoisted out of the unrolled layer loop ----
    wq = wq_ref[...]            # [2D, D]  (rows D:2D zero -> contracts packed state)
    wk = wk_ref[...]            # [C, D]   bf16
    wv = wv_ref[...]            # [C, D]   bf16
    wih = gru_wih_ref[...]      # [D, 6D]  (pre-folded: Wih[:D] + Wih[D:])
    whh = gru_whh_ref[...]      # [2D, 6D]
    w1 = mlp_w1_ref[...]        # [2D, 4D] block-diag(mmu_w1, msp_w1)
    w2 = mlp_w2_ref[...]        # [4D, 2D] block-diag(mmu_w2, msp_w2)
    # one packed small-vector operand (lane offsets are all multiples of 128)
    lns_g = vec_ref[:, 0 * H2:1 * H2]
    lns_b = vec_ref[:, 1 * H2:2 * H2]
    lnpk_g = vec_ref[:, 2 * H2:3 * H2]
    lnpk_b = vec_ref[:, 3 * H2:4 * H2]
    bih = vec_ref[:, 4 * H2:7 * H2]
    bhh = vec_ref[:, 7 * H2:10 * H2]
    b1 = vec_ref[:, 10 * H2:12 * H2]
    b2 = vec_ref[:, 12 * H2:13 * H2]

    # lane mask selecting the "mu" half (first D of 2D lanes)
    mu_mask = jax.lax.broadcasted_iota(jnp.int32, (1, H2), 1) < D

    # ---- k / v projections over all B*J tokens at once (bf16 MXU, f32 acc) ----
    x = inputs_ref[...].reshape(B * J, C)                       # bf16
    k = jnp.dot(x, wk, preferred_element_type=jnp.float32)
    v = jnp.dot(x, wv, preferred_element_type=jnp.float32)
    k_b = k.reshape(B, J, D).astype(jnp.bfloat16)
    v_b = v.reshape(B, J, D).astype(jnp.bfloat16)

    # ---- packed slot state: hs = [loc || sp] (exactly prev_lambda's rows) ----
    hs = lam0_ref[...].reshape(R, H2)
    # init_posterior.rsample(), fully in packed 128-lane space:
    #   lower half: loc + (softplus(sp)+eps)*noise ;  upper half: sp (noise==0)
    scale = jax.nn.softplus(pltpu.roll(hs, shift=D, axis=1)) + EPS
    slots_pk = hs + scale * noise_ref[0]

    for layer in range(num_layers):       # L is small; static unroll is fine.
        # --- slot attention read-out (packed LN + zero-padded wq) ---
        s = _ln_packed(slots_pk, mu_mask, lns_g, lns_b, D)
        q = jnp.dot(s, wq, preferred_element_type=jnp.float32) * attn_scale
        q3 = q.reshape(B, K, D).astype(jnp.bfloat16)
        # NT matmul (contract last dims) -- no k transpose materialized.
        dots = jnp.einsum("bkd,bjd->bkj", q3, k_b,
                          preferred_element_type=jnp.float32)    # [B, K, J]
        # torch softmax(dim=1): over the slot axis (exact reciprocal here)
        m = jnp.max(dots, axis=1, keepdims=True)
        e = jnp.exp(dots - m)
        attn = e / jnp.sum(e, axis=1, keepdims=True)
        attn = attn + EPS
        attn = attn * pl.reciprocal(jnp.sum(attn, axis=-1, keepdims=True),
                                    approx=True)
        updates = jnp.einsum("bkj,bjd->bkd", attn.astype(jnp.bfloat16), v_b,
                             preferred_element_type=jnp.float32).reshape(R, D)

        # --- GRU cell on the packed hidden state (input weight pre-folded) ---
        gi = jnp.dot(updates, wih, preferred_element_type=jnp.float32) + bih
        gh = jnp.dot(hs, whh, preferred_element_type=jnp.float32) + bhh
        i_r, i_z, i_n = gi[:, :H2], gi[:, H2:2 * H2], gi[:, 2 * H2:]
        h_r, h_z, h_n = gh[:, :H2], gh[:, H2:2 * H2], gh[:, 2 * H2:]
        r = jax.nn.sigmoid(i_r + h_r)
        zg = jax.nn.sigmoid(i_z + h_z)
        n = jnp.tanh(i_n + r * h_n)
        hs = (1.0 - zg) * n + zg * hs                                # [R, 2D]

        # --- fused residual MLPs (block-diagonal weights, packed LN) ---
        hn = _ln_packed(hs, mu_mask, lnpk_g, lnpk_b, D)
        hid = jnp.maximum(
            jnp.dot(hn, w1, preferred_element_type=jnp.float32) + b1, 0.0)
        hs = hs + jnp.dot(hid, w2, preferred_element_type=jnp.float32) + b2

        # --- posterior_z.rsample() in packed space (no 64-lane slices) ---
        scale = jax.nn.softplus(pltpu.roll(hs, shift=D, axis=1)) + EPS
        slots_pk = hs + scale * noise_ref[layer + 1]

        # lane-dense 128-lane stores; the sample stays packed (sliced in wrapper)
        lamda_out_ref[layer] = hs.reshape(B, K, H2)
        samples_out_ref[layer] = slots_pk.reshape(B, K, H2)


def object_discovery_forward(inputs, prev_lambda, noise, params, *, K, z_size,
                             num_layers, batch_block=None, vmem_limit_bytes=None):
    """inputs: [N, J, 64]; prev_lambda: [N*K, 2*z_size]; noise: [L+1, N, K, D]."""
    N, J, C = inputs.shape
    D = z_size
    H2 = 2 * D
    L = num_layers
    # Default: ONE grid step (v5e/v6e have a single TensorCore -> multi-step
    # grids are pure serial-loop overhead; folding also improves MXU row fill).
    # On v7x pass batch_block=N//2 to split the batch across the 2 TensorCores.
    # TODO(synk): on v7x verify the 2-step "parallel" grid really shards across
    #             both TCs; if not, switch to pltpu.CORE_PARALLEL / core_map.
    if batch_block is None:
        batch_block = N
    B = batch_block
    assert N % B == 0, "batch_block must divide N"

    lam0 = prev_lambda.reshape(N, K, H2).astype(jnp.float32)
    # zero-pad the reparameterization noise into the packed 128-lane layout so
    # the upper (sp) half of the packed sample is carried through untouched
    noise_pk = jnp.concatenate(
        [noise, jnp.zeros_like(noise)], axis=-1).reshape(L + 1, N * K, H2)

    # ---- fold / pack parameters once on the host side ----
    p = params
    wq_pad = jnp.concatenate(
        [p["wq"], jnp.zeros((D, D), jnp.float32)], axis=0)       # [2D, D]
    gru_wih_f = p["gru_wih"][:D] + p["gru_wih"][D:]              # exact fold

    def blkdiag(a, c):
        ra, ca = a.shape
        rc, cc = c.shape
        out = jnp.zeros((ra + rc, ca + cc), a.dtype)
        out = out.at[:ra, :ca].set(a)
        out = out.at[ra:, ca:].set(c)
        return out

    mlp_w1 = blkdiag(p["mmu_w1"], p["msp_w1"])                   # [2D, 4D]
    mlp_w2 = blkdiag(p["mmu_w2"], p["msp_w2"])                   # [4D, 2D]

    ones = jnp.ones((1, D), jnp.float32)
    zeros = jnp.zeros((1, D), jnp.float32)
    # one packed vector operand: 10 tiny LN/bias rows -> a single [1, 13*2D] DMA
    vec = jnp.concatenate([
        p["lns_g"], ones,            # slot-LN gamma (upper half unused)
        p["lns_b"], zeros,           # slot-LN beta
        p["lnm_g"], p["lnp_g"],      # packed pre-FF LN gamma
        p["lnm_b"], p["lnp_b"],      # packed pre-FF LN beta
        p["gru_bih"], p["gru_bhh"],  # GRU biases (3*2D each)
        p["mmu_b1"], p["msp_b1"],    # fused MLP bias 1 (2*2D)
        p["mmu_b2"], p["msp_b2"],    # fused MLP bias 2 (2D)
    ], axis=-1)                      # [1, 13*2D]

    param_arrays = [
        wq_pad,
        p["wk"].astype(jnp.bfloat16), p["wv"].astype(jnp.bfloat16),
        gru_wih_f, p["gru_whh"], mlp_w1, mlp_w2, vec,
    ]

    data = [inputs.astype(jnp.bfloat16), lam0, noise_pk]
    data_specs = [
        pl.BlockSpec((B, J, C), lambda b: (b, 0, 0)),
        pl.BlockSpec((B, K, H2), lambda b: (b, 0, 0)),
        pl.BlockSpec((L + 1, B * K, H2), lambda b: (0, b, 0)),
    ]
    param_specs = [
        pl.BlockSpec(a.shape, lambda b, nd=a.ndim: (0,) * nd) for a in param_arrays
    ]

    out_shapes = (
        jax.ShapeDtypeStruct((L, N, K, H2), jnp.float32),   # packed lamda / layer
        jax.ShapeDtypeStruct((L, N, K, H2), jnp.float32),   # packed samples / layer
    )
    out_specs = (
        pl.BlockSpec((L, B, K, H2), lambda b: (0, b, 0, 0)),
        pl.BlockSpec((L, B, K, H2), lambda b: (0, b, 0, 0)),
    )

    kernel = functools.partial(
        object_discovery_kernel,
        num_layers=L, z_size=D, attn_scale=float(D) ** -0.5)

    lamda_layers, samples_pk = pl.pallas_call(
        kernel,
        out_shape=out_shapes,
        grid=(N // B,),
        in_specs=data_specs + param_specs,
        out_specs=out_specs,
        compiler_params=pltpu.CompilerParams(
            dimension_semantics=("parallel",),
            vmem_limit_bytes=vmem_limit_bytes),
    )(*data, *param_arrays)

    # glue (outside the kernel, plain XLA): match the torch return structure
    samples = samples_pk[..., :D]                                # (L, N, K, D)
    slots_final = samples[L - 1].reshape(N * K, D)               # slots.view(-1, D)
    lamda_final = lamda_layers[L - 1].reshape(N * K, H2)         # lamda
    post_loc = lamda_layers[..., :D]                             # posteriors (loc)
    post_sp = lamda_layers[..., D:]                              # posteriors (sp)
    return slots_final, lamda_final, post_loc, post_sp, samples


# ---------------- pure-JAX reference (for correctness check) ----------------
def reference_forward(inputs, prev_lambda, noise, params, *, K, z_size, num_layers):
    N, J, _ = inputs.shape
    D = z_size
    scale = float(D) ** -0.5
    loc, sp = jnp.split(prev_lambda, 2, axis=1)
    loc = loc.reshape(N, K, D)
    sp = sp.reshape(N, K, D)

    k = inputs @ params["wk"]
    v = inputs @ params["wv"]
    slots = loc + (jax.nn.softplus(sp) + EPS) * noise[0]
    slots_mu, slots_sp = loc, sp
    p_locs, p_sps, samples = [], [], []
    for layer in range(num_layers):
        s = _ln(slots, params["lns_g"], params["lns_b"])
        q = (s @ params["wq"]) * scale
        dots = jnp.einsum("bid,bjd->bij", q, k)
        attn = jax.nn.softmax(dots, axis=1) + EPS
        attn = attn / attn.sum(-1, keepdims=True)
        updates = jnp.einsum("bjd,bij->bid", v, attn)

        upd2 = jnp.concatenate([updates, updates], axis=-1)
        h = jnp.concatenate([slots_mu, slots_sp], axis=-1)
        gi = upd2 @ params["gru_wih"] + params["gru_bih"]
        gh = h @ params["gru_whh"] + params["gru_bhh"]
        H2 = 2 * D
        i_r, i_z, i_n = gi[..., :H2], gi[..., H2:2 * H2], gi[..., 2 * H2:]
        h_r, h_z, h_n = gh[..., :H2], gh[..., H2:2 * H2], gh[..., 2 * H2:]
        r = jax.nn.sigmoid(i_r + h_r)
        zg = jax.nn.sigmoid(i_z + h_z)
        n = jnp.tanh(i_n + r * h_n)
        h_new = (1.0 - zg) * n + zg * h
        slots_mu, slots_sp = h_new[..., :D], h_new[..., D:]

        mu_n = _ln(slots_mu, params["lnm_g"], params["lnm_b"])
        slots_mu = slots_mu + (jnp.maximum(mu_n @ params["mmu_w1"] + params["mmu_b1"], 0.0)
                               @ params["mmu_w2"] + params["mmu_b2"])
        sp_n = _ln(slots_sp, params["lnp_g"], params["lnp_b"])
        slots_sp = slots_sp + (jnp.maximum(sp_n @ params["msp_w1"] + params["msp_b1"], 0.0)
                               @ params["msp_w2"] + params["msp_b2"])

        lamda = jnp.concatenate([slots_mu, slots_sp], axis=-1)
        slots = slots_mu + (jax.nn.softplus(slots_sp) + EPS) * noise[layer + 1]
        p_locs.append(slots_mu)
        p_sps.append(slots_sp)
        samples.append(slots)

    return (slots.reshape(N * K, D), lamda.reshape(N * K, 2 * D),
            jnp.stack(p_locs), jnp.stack(p_sps), jnp.stack(samples))


def init_params(key, z_size):
    D = z_size
    keys = jax.random.split(key, 15)

    def nrm(k, shape, s=0.02):
        return (s * jax.random.normal(k, shape)).astype(jnp.float32)

    return {
        "wq": nrm(keys[0], (D, D)),
        "wk": nrm(keys[1], (64, D)),
        "wv": nrm(keys[2], (64, D)),
        "lns_g": jnp.ones((1, D), jnp.float32),
        "lns_b": jnp.zeros((1, D), jnp.float32),
        "lnm_g": jnp.ones((1, D), jnp.float32),
        "lnm_b": jnp.zeros((1, D), jnp.float32),
        "lnp_g": jnp.ones((1, D), jnp.float32),
        "lnp_b": jnp.zeros((1, D), jnp.float32),
        "gru_wih": nrm(keys[3], (2 * D, 6 * D)),
        "gru_whh": nrm(keys[4], (2 * D, 6 * D)),
        "gru_bih": nrm(keys[5], (1, 6 * D)),
        "gru_bhh": nrm(keys[6], (1, 6 * D)),
        "mmu_w1": nrm(keys[7], (D, 2 * D)),
        "mmu_b1": nrm(keys[8], (1, 2 * D)),
        "mmu_w2": nrm(keys[9], (2 * D, D)),
        "mmu_b2": nrm(keys[10], (1, D)),
        "msp_w1": nrm(keys[11], (D, 2 * D)),
        "msp_b1": nrm(keys[12], (1, 2 * D)),
        "msp_w2": nrm(keys[13], (2 * D, D)),
        "msp_b2": nrm(keys[14], (1, D)),
    }


if __name__ == "__main__":
    # ObjectDiscoveryBlock(K=8, z_size=64, input_size=(16, 16), stochastic_layers=2)
    K, D, L = 8, 64, 2
    N, J = 4, 256              # 4 batches, J = 16*16 tokens of 64 features

    key = jax.random.PRNGKey(0)
    kp, ki, kl, kn = jax.random.split(key, 4)
    params = init_params(kp, D)

    inputs = jax.random.normal(ki, (N, J, 64), jnp.float32)
    prev_lambda = 0.5 * jax.random.normal(kl, (N * K, 2 * D), jnp.float32)
    noise = jax.random.normal(kn, (L + 1, N, K, D), jnp.float32)   # reparam noise

    # default batch_block=N -> single grid step (best for 1-TC v5e/v6e)
    outs = object_discovery_forward(inputs, prev_lambda, noise, params,
                                    K=K, z_size=D, num_layers=L)
    outs = jax.block_until_ready(outs)

    refs = reference_forward(inputs, prev_lambda, noise, params,
                             K=K, z_size=D, num_layers=L)
    # tolerance accounts for bf16 MXU operands + approx reciprocal (2nd renorm)
    for got, want in zip(outs, refs):
        np.testing.assert_allclose(np.asarray(got), np.asarray(want),
                                   rtol=1e-2, atol=1e-2)

    print("KERNEL_OK")
</pallas_src>

<mosaic_0001>
module attributes {stable_mosaic.version = 11 : i64} {
  func.func @object_discovery_kernel(%arg0: i32, %arg1: memref<4x256x64xbf16, #tpu.memory_space<vmem>>, %arg2: memref<4x8x128xf32, #tpu.memory_space<vmem>>, %arg3: memref<3x32x128xf32, #tpu.memory_space<vmem>>, %arg4: memref<128x64xf32, #tpu.memory_space<vmem>>, %arg5: memref<64x64xbf16, #tpu.memory_space<vmem>>, %arg6: memref<64x64xbf16, #tpu.memory_space<vmem>>, %arg7: memref<64x384xf32, #tpu.memory_space<vmem>>, %arg8: memref<128x384xf32, #tpu.memory_space<vmem>>, %arg9: memref<128x256xf32, #tpu.memory_space<vmem>>, %arg10: memref<256x128xf32, #tpu.memory_space<vmem>>, %arg11: memref<1x1664xf32, #tpu.memory_space<vmem>>, %arg12: memref<2x4x8x128xf32, #tpu.memory_space<vmem>>, %arg13: memref<2x4x8x128xf32, #tpu.memory_space<vmem>>) attributes {dimension_semantics = [#tpu.dimension_semantics<parallel>], iteration_bounds = array<i64: 1>, scalar_prefetch = 0 : i64, scratch_operands = 0 : i64, tpu.core_type = #tpu.core_type<tc>, window_params = [{transform_indices = @transform_0, window_bounds = array<i64: 4, 256, 64>}, {transform_indices = @transform_1, window_bounds = array<i64: 4, 8, 128>}, {transform_indices = @transform_2, window_bounds = array<i64: 3, 32, 128>}, {pipeline_mode = #tpu.pipeline_mode<synchronous>, transform_indices = @transform_3, window_bounds = array<i64: 128, 64>}, {pipeline_mode = #tpu.pipeline_mode<synchronous>, transform_indices = @transform_4, window_bounds = array<i64: 64, 64>}, {pipeline_mode = #tpu.pipeline_mode<synchronous>, transform_indices = @transform_5, window_bounds = array<i64: 64, 64>}, {pipeline_mode = #tpu.pipeline_mode<synchronous>, transform_indices = @transform_6, window_bounds = array<i64: 64, 384>}, {pipeline_mode = #tpu.pipeline_mode<synchronous>, transform_indices = @transform_7, window_bounds = array<i64: 128, 384>}, {pipeline_mode = #tpu.pipeline_mode<synchronous>, transform_indices = @transform_8, window_bounds = array<i64: 128, 256>}, {pipeline_mode = #tpu.pipeline_mode<synchronous>, transform_indices = @transform_9, window_bounds = array<i64: 256, 128>}, {pipeline_mode = #tpu.pipeline_mode<synchronous>, transform_indices = @transform_10, window_bounds = array<i64: 1, 1664>}, {transform_indices = @transform_11, window_bounds = array<i64: 2, 4, 8, 128>}, {transform_indices = @transform_12, window_bounds = array<i64: 2, 4, 8, 128>}]} {
    %c0 = arith.constant 0 : index
    %c0_0 = arith.constant 0 : index
    %0 = vector.load %arg4[%c0, %c0_0] : memref<128x64xf32, #tpu.memory_space<vmem>>, vector<128x64xf32>
    %c0_1 = arith.constant 0 : index
    %c0_2 = arith.constant 0 : index
    %1 = vector.load %arg5[%c0_1, %c0_2] : memref<64x64xbf16, #tpu.memory_space<vmem>>, vector<64x64xbf16>
    %c0_3 = arith.constant 0 : index
    %c0_4 = arith.constant 0 : index
    %2 = vector.load %arg6[%c0_3, %c0_4] : memref<64x64xbf16, #tpu.memory_space<vmem>>, vector<64x64xbf16>
    %c0_5 = arith.constant 0 : index
    %c0_6 = arith.constant 0 : index
    %3 = vector.load %arg7[%c0_5, %c0_6] : memref<64x384xf32, #tpu.memory_space<vmem>>, vector<64x384xf32>
    %c0_7 = arith.constant 0 : index
    %c0_8 = arith.constant 0 : index
    %4 = vector.load %arg8[%c0_7, %c0_8] : memref<128x384xf32, #tpu.memory_space<vmem>>, vector<128x384xf32>
    %c0_9 = arith.constant 0 : index
    %c0_10 = arith.constant 0 : index
    %5 = vector.load %arg9[%c0_9, %c0_10] : memref<128x256xf32, #tpu.memory_space<vmem>>, vector<128x256xf32>
    %c0_11 = arith.constant 0 : index
    %c0_12 = arith.constant 0 : index
    %6 = vector.load %arg10[%c0_11, %c0_12] : memref<256x128xf32, #tpu.memory_space<vmem>>, vector<256x128xf32>
    %c0_13 = arith.constant 0 : index
    %c0_14 = arith.constant 0 : index
    %7 = vector.load %arg11[%c0_13, %c0_14] : memref<1x1664xf32, #tpu.memory_space<vmem>>, vector<1x128xf32>
    %c0_15 = arith.constant 0 : index
    %c128 = arith.constant 128 : index
    %8 = vector.load %arg11[%c0_15, %c128] : memref<1x1664xf32, #tpu.memory_space<vmem>>, vector<1x128xf32>
    %c0_16 = arith.constant 0 : index
    %c256 = arith.constant 256 : index
    %9 = vector.load %arg11[%c0_16, %c256] : memref<1x1664xf32, #tpu.memory_space<vmem>>, vector<1x128xf32>
    %c0_17 = arith.constant 0 : index
    %c384 = arith.constant 384 : index
    %10 = vector.load %arg11[%c0_17, %c384] : memref<1x1664xf32, #tpu.memory_space<vmem>>, vector<1x128xf32>
    %c0_18 = arith.constant 0 : index
    %c512 = arith.constant 512 : index
    %11 = vector.load %arg11[%c0_18, %c512] : memref<1x1664xf32, #tpu.memory_space<vmem>>, vector<1x384xf32>
    %c0_19 = arith.constant 0 : index
    %c896 = arith.constant 896 : index
    %12 = vector.load %arg11[%c0_19, %c896] : memref<1x1664xf32, #tpu.memory_space<vmem>>, vector<1x384xf32>
    %c0_20 = arith.constant 0 : index
    %c1280 = arith.constant 1280 : index
    %13 = vector.load %arg11[%c0_20, %c1280] : memref<1x1664xf32, #tpu.memory_space<vmem>>, vector<1x256xf32>
    %c0_21 = arith.constant 0 : index
    %c1536 = arith.constant 1536 : index
    %14 = vector.load %arg11[%c0_21, %c1536] : memref<1x1664xf32, #tpu.memory_space<vmem>>, vector<1x128xf32>
    %15 = tpu.iota {dimensions = array<i32: 1>} : vector<1x128xi32>
    %c64_i32 = arith.constant 64 : i32
    %16 = vector.broadcast %c64_i32 : i32 to vector<1x128xi32>
    %17 = arith.cmpi slt, %15, %16 : vector<1x128xi32>
    %c0_22 = arith.constant 0 : index
    %c0_23 = arith.constant 0 : index
    %c0_24 = arith.constant 0 : index
    %18 = vector.load %arg1[%c0_22, %c0_23, %c0_24] : memref<4x256x64xbf16, #tpu.memory_space<vmem>>, vector<4x256x64xbf16>
    %19 = vector.shape_cast %18 : vector<4x256x64xbf16> to vector<1024x64xbf16>
    %cst = arith.constant dense<0.000000e+00> : vector<1024x64xf32>
    %20 = tpu.matmul %19, %1, %cst {dimension_numbers = #tpu.dot_dimension_numbers<[1], [0], [0], [1], [0, 0, 1, 1], [], []>} : vector<1024x64xbf16>, vector<64x64xbf16>, vector<1024x64xf32> -> vector<1024x64xf32>
    %cst_25 = arith.constant dense<0.000000e+00> : vector<1024x64xf32>
    %21 = tpu.matmul %19, %2, %cst_25 {dimension_numbers = #tpu.dot_dimension_numbers<[1], [0], [0], [1], [0, 0, 1, 1], [], []>} : vector<1024x64xbf16>, vector<64x64xbf16>, vector<1024x64xf32> -> vector<1024x64xf32>
    %22 = vector.shape_cast %20 : vector<1024x64xf32> to vector<4x256x64xf32>
    %23 = arith.truncf %22 : vector<4x256x64xf32> to vector<4x256x64xbf16>
    %24 = vector.shape_cast %21 : vector<1024x64xf32> to vector<4x256x64xf32>
    %25 = arith.truncf %24 : vector<4x256x64xf32> to vector<4x256x64xbf16>
    %c0_26 = arith.constant 0 : index
    %c0_27 = arith.constant 0 : index
    %c0_28 = arith.constant 0 : index
    %26 = vector.load %arg2[%c0_26, %c0_27, %c0_28] : memref<4x8x128xf32, #tpu.memory_space<vmem>>, vector<4x8x128xf32>
    %27 = vector.shape_cast %26 : vector<4x8x128xf32> to vector<32x128xf32>
    %c64_i32_29 = arith.constant 64 : i32
    %28 = tpu.dynamic_rotate %27 by %c64_i32_29 dim 1 : vector<32x128xf32>, i32 -> vector<32x128xf32>
    %cst_30 = arith.constant 0.000000e+00 : f32
    %29 = vector.broadcast %cst_30 : f32 to vector<32x128xf32>
    %30 = arith.maximumf %28, %29 : vector<32x128xf32>
    %31 = vector.broadcast %cst_30 : f32 to vector<32x128xf32>
    %32 = arith.subf %28, %31 : vector<32x128xf32>
    %33 = arith.cmpf one, %32, %32 : vector<32x128xf32>
    %34 = vector.broadcast %cst_30 : f32 to vector<32x128xf32>
    %35 = arith.addf %28, %34 : vector<32x128xf32>
    %36 = math.absf %32 : vector<32x128xf32>
    %cst_31 = arith.constant 0.000000e+00 : f32
    %37 = vector.broadcast %cst_31 : f32 to vector<32x128xf32>
    %38 = arith.subf %37, %36 : vector<32x128xf32>
    %39 = math.exp %38 : vector<32x128xf32>
    %40 = math.log1p %39 : vector<32x128xf32>
    %41 = arith.addf %30, %40 : vector<32x128xf32>
    %42 = arith.select %33, %35, %41 : vector<32x128xi1>, vector<32x128xf32>
    %cst_32 = arith.constant 9.99999993E-9 : f32
    %43 = vector.broadcast %cst_32 : f32 to vector<32x128xf32>
    %44 = arith.addf %42, %43 : vector<32x128xf32>
    %c0_33 = arith.constant 0 : index
    %c0_34 = arith.constant 0 : index
    %c0_35 = arith.constant 0 : index
    %45 = vector.load %arg3[%c0_33, %c0_34, %c0_35] : memref<3x32x128xf32, #tpu.memory_space<vmem>>, vector<1x32x128xf32>
    %46 = vector.shape_cast %45 : vector<1x32x128xf32> to vector<32x128xf32>
    %47 = arith.mulf %44, %46 : vector<32x128xf32>
    %48 = arith.addf %27, %47 : vector<32x128xf32>
    %cst_36 = arith.constant dense<0.000000e+00> : vector<32xf32>
    %49 = vector.multi_reduction <add>, %48, %cst_36 [1] : vector<32x128xf32> to vector<32xf32>
    %50 = vector.shape_cast %49 : vector<32xf32> to vector<32x1xf32>
    %cst_37 = arith.constant 0.000000e+00 : f32
    %51 = vector.shape_cast %17 : vector<1x128xi1> to vector<1x128xi1>
    %52 = vector.broadcast %51 : vector<1x128xi1> to vector<32x128xi1>
    %53 = vector.broadcast %cst_37 : f32 to vector<32x128xf32>
    %54 = arith.select %52, %48, %53 : vector<32x128xi1>, vector<32x128xf32>
    %cst_38 = arith.constant dense<0.000000e+00> : vector<32xf32>
    %55 = vector.multi_reduction <add>, %54, %cst_38 [1] : vector<32x128xf32> to vector<32xf32>
    %56 = vector.shape_cast %55 : vector<32xf32> to vector<32x1xf32>
    %57 = arith.subf %50, %56 : vector<32x1xf32>
    %58 = vector.shape_cast %17 : vector<1x128xi1> to vector<1x128xi1>
    %59 = vector.broadcast %58 : vector<1x128xi1> to vector<32x128xi1>
    %60 = vector.shape_cast %56 : vector<32x1xf32> to vector<32x1xf32>
    %61 = vector.broadcast %60 : vector<32x1xf32> to vector<32x128xf32>
    %62 = vector.shape_cast %57 : vector<32x1xf32> to vector<32x1xf32>
    %63 = vector.broadcast %62 : vector<32x1xf32> to vector<32x128xf32>
    %64 = arith.select %59, %61, %63 : vector<32x128xi1>, vector<32x128xf32>
    %cst_39 = arith.constant 1.562500e-02 : f32
    %65 = vector.broadcast %cst_39 : f32 to vector<32x128xf32>
    %66 = arith.mulf %64, %65 : vector<32x128xf32>
    %67 = arith.subf %48, %66 : vector<32x128xf32>
    %68 = arith.mulf %67, %67 : vector<32x128xf32>
    %cst_40 = arith.constant dense<0.000000e+00> : vector<32xf32>
    %69 = vector.multi_reduction <add>, %68, %cst_40 [1] : vector<32x128xf32> to vector<32xf32>
    %70 = vector.shape_cast %69 : vector<32xf32> to vector<32x1xf32>
    %cst_41 = arith.constant 0.000000e+00 : f32
    %71 = vector.shape_cast %17 : vector<1x128xi1> to vector<1x128xi1>
    %72 = vector.broadcast %71 : vector<1x128xi1> to vector<32x128xi1>
    %73 = vector.broadcast %cst_41 : f32 to vector<32x128xf32>
    %74 = arith.select %72, %68, %73 : vector<32x128xi1>, vector<32x128xf32>
    %cst_42 = arith.constant dense<0.000000e+00> : vector<32xf32>
    %75 = vector.multi_reduction <add>, %74, %cst_42 [1] : vector<32x128xf32> to vector<32xf32>
    %76 = vector.shape_cast %75 : vector<32xf32> to vector<32x1xf32>
    %77 = arith.subf %70, %76 : vector<32x1xf32>
    %78 = vector.shape_cast %17 : vector<1x128xi1> to vector<1x128xi1>
    %79 = vector.broadcast %78 : vector<1x128xi1> to vector<32x128xi1>
    %80 = vector.shape_cast %76 : vector<32x1xf32> to vector<32x1xf32>
    %81 = vector.broadcast %80 : vector<32x1xf32> to vector<32x128xf32>
    %82 = vector.shape_cast %77 : vector<32x1xf32> to vector<32x1xf32>
    %83 = vector.broadcast %82 : vector<32x1xf32> to vector<32x128xf32>
    %84 = arith.select %79, %81, %83 : vector<32x128xi1>, vector<32x128xf32>
    %cst_43 = arith.constant 1.562500e-02 : f32
    %85 = vector.broadcast %cst_43 : f32 to vector<32x128xf32>
    %86 = arith.mulf %84, %85 : vector<32x128xf32>
    %cst_44 = arith.constant 9.99999974E-6 : f32
    %87 = vector.broadcast %cst_44 : f32 to vector<32x128xf32>
    %88 = arith.addf %86, %87 : vector<32x128xf32>
    %89 = math.rsqrt %88 : vector<32x128xf32>
    %90 = arith.mulf %67, %89 : vector<32x128xf32>
    %91 = vector.broadcast %7 : vector<1x128xf32> to vector<32x128xf32>
    %92 = arith.mulf %90, %91 : vector<32x128xf32>
    %93 = vector.broadcast %8 : vector<1x128xf32> to vector<32x128xf32>
    %94 = arith.addf %92, %93 : vector<32x128xf32>
    %cst_45 = arith.constant dense<0.000000e+00> : vector<32x64xf32>
    %95 = tpu.matmul %94, %0, %cst_45 {dimension_numbers = #tpu.dot_dimension_numbers<[1], [0], [0], [1], [0, 0, 1, 1], [], []>} : vector<32x128xf32>, vector<128x64xf32>, vector<32x64xf32> -> vector<32x64xf32>
    %cst_46 = arith.constant 1.250000e-01 : f32
    %96 = vector.broadcast %cst_46 : f32 to vector<32x64xf32>
    %97 = arith.mulf %95, %96 : vector<32x64xf32>
    %98 = vector.shape_cast %97 : vector<32x64xf32> to vector<4x8x64xf32>
    %99 = arith.truncf %98 : vector<4x8x64xf32> to vector<4x8x64xbf16>
    "tpu.trace_start"() <{level = 10 : i32, message = "bkd,bjd->bkj"}> : () -> ()
    %cst_47 = arith.constant dense<0.000000e+00> : vector<4x8x256xf32>
    %100 = tpu.matmul %99, %23, %cst_47 {dimension_numbers = #tpu.dot_dimension_numbers<[2], [2], [1], [1], [0, 0, 0, 1, 1, 1], [0], [0]>} : vector<4x8x64xbf16>, vector<4x256x64xbf16>, vector<4x8x256xf32> -> vector<4x8x256xf32>
    "tpu.trace_stop"() : () -> ()
    %cst_48 = arith.constant dense<0xFF800000> : vector<4x256xf32>
    %101 = vector.multi_reduction <maximumf>, %100, %cst_48 [1] : vector<4x8x256xf32> to vector<4x256xf32>
    %102 = vector.shape_cast %101 : vector<4x256xf32> to vector<4x1x256xf32>
    %103 = vector.broadcast %102 : vector<4x1x256xf32> to vector<4x8x256xf32>
    %104 = arith.subf %100, %103 : vector<4x8x256xf32>
    %105 = math.exp %104 : vector<4x8x256xf32>
    %cst_49 = arith.constant dense<0.000000e+00> : vector<4x256xf32>
    %106 = vector.multi_reduction <add>, %105, %cst_49 [1] : vector<4x8x256xf32> to vector<4x256xf32>
    %107 = vector.shape_cast %106 : vector<4x256xf32> to vector<4x1x256xf32>
    %108 = vector.broadcast %107 : vector<4x1x256xf32> to vector<4x8x256xf32>
    %109 = arith.divf %105, %108 : vector<4x8x256xf32>
    %cst_50 = arith.constant 9.99999993E-9 : f32
    %110 = vector.broadcast %cst_50 : f32 to vector<4x8x256xf32>
    %111 = arith.addf %109, %110 : vector<4x8x256xf32>
    %cst_51 = arith.constant dense<0.000000e+00> : vector<4x8xf32>
    %112 = vector.multi_reduction <add>, %111, %cst_51 [2] : vector<4x8x256xf32> to vector<4x8xf32>
    %113 = vector.shape_cast %112 : vector<4x8xf32> to vector<4x8x1xf32>
    %114 = tpu.reciprocal %113 {approx = true} : vector<4x8x1xf32> -> vector<4x8x1xf32>
    %115 = vector.broadcast %114 : vector<4x8x1xf32> to vector<4x8x256xf32>
    %116 = arith.mulf %111, %115 : vector<4x8x256xf32>
    %117 = arith.truncf %116 : vector<4x8x256xf32> to vector<4x8x256xbf16>
    "tpu.trace_start"() <{level = 10 : i32, message = "bkj,bjd->bkd"}> : () -> ()
    %cst_52 = arith.constant dense<0.000000e+00> : vector<4x8x64xf32>
    %118 = tpu.matmul %117, %25, %cst_52 {dimension_numbers = #tpu.dot_dimension_numbers<[2], [1], [1], [2], [0, 0, 0, 1, 1, 2], [0], [0]>} : vector<4x8x256xbf16>, vector<4x256x64xbf16>, vector<4x8x64xf32> -> vector<4x8x64xf32>
    "tpu.trace_stop"() : () -> ()
    %119 = vector.shape_cast %118 : vector<4x8x64xf32> to vector<32x64xf32>
    %cst_53 = arith.constant dense<0.000000e+00> : vector<32x384xf32>
    %120 = tpu.matmul %119, %3, %cst_53 {dimension_numbers = #tpu.dot_dimension_numbers<[1], [0], [0], [1], [0, 0, 1, 1], [], []>} : vector<32x64xf32>, vector<64x384xf32>, vector<32x384xf32> -> vector<32x384xf32>
    %121 = vector.broadcast %11 : vector<1x384xf32> to vector<32x384xf32>
    %122 = arith.addf %120, %121 : vector<32x384xf32>
    %cst_54 = arith.constant dense<0.000000e+00> : vector<32x384xf32>
    %123 = tpu.matmul %27, %4, %cst_54 {dimension_numbers = #tpu.dot_dimension_numbers<[1], [0], [0], [1], [0, 0, 1, 1], [], []>} : vector<32x128xf32>, vector<128x384xf32>, vector<32x384xf32> -> vector<32x384xf32>
    %124 = vector.broadcast %12 : vector<1x384xf32> to vector<32x384xf32>
    %125 = arith.addf %123, %124 : vector<32x384xf32>
    %126 = vector.extract_strided_slice %122 {offsets = [0, 0], sizes = [32, 128], strides = [1, 1]} : vector<32x384xf32> to vector<32x128xf32>
    %127 = vector.extract_strided_slice %122 {offsets = [0, 128], sizes = [32, 128], strides = [1, 1]} : vector<32x384xf32> to vector<32x128xf32>
    %128 = vector.extract_strided_slice %122 {offsets = [0, 256], sizes = [32, 128], strides = [1, 1]} : vector<32x384xf32> to vector<32x128xf32>
    %129 = vector.extract_strided_slice %125 {offsets = [0, 0], sizes = [32, 128], strides = [1, 1]} : vector<32x384xf32> to vector<32x128xf32>
    %130 = vector.extract_strided_slice %125 {offsets = [0, 128], sizes = [32, 128], strides = [1, 1]} : vector<32x384xf32> to vector<32x128xf32>
    %131 = vector.extract_strided_slice %125 {offsets = [0, 256], sizes = [32, 128], strides = [1, 1]} : vector<32x384xf32> to vector<32x128xf32>
    %132 = arith.addf %126, %129 : vector<32x128xf32>
    %133 = arith.negf %132 : vector<32x128xf32>
    %134 = math.exp %133 : vector<32x128xf32>
    %cst_55 = arith.constant 1.000000e+00 : f32
    %135 = vector.broadcast %cst_55 : f32 to vector<32x128xf32>
    %136 = arith.addf %135, %134 : vector<32x128xf32>
    %137 = arith.divf %135, %136 : vector<32x128xf32>
    %138 = arith.addf %127, %130 : vector<32x128xf32>
    %139 = arith.negf %138 : vector<32x128xf32>
    %140 = math.exp %139 : vector<32x128xf32>
    %cst_56 = arith.constant 1.000000e+00 : f32
    %141 = vector.broadcast %cst_56 : f32 to vector<32x128xf32>
    %142 = arith.addf %141, %140 : vector<32x128xf32>
    %143 = arith.divf %141, %142 : vector<32x128xf32>
    %144 = arith.mulf %137, %131 : vector<32x128xf32>
    %145 = arith.addf %128, %144 : vector<32x128xf32>
    %146 = math.tanh %145 : vector<32x128xf32>
    %cst_57 = arith.constant 1.000000e+00 : f32
    %147 = vector.broadcast %cst_57 : f32 to vector<32x128xf32>
    %148 = arith.subf %147, %143 : vector<32x128xf32>
    %149 = arith.mulf %148, %146 : vector<32x128xf32>
    %150 = arith.mulf %143, %27 : vector<32x128xf32>
    %151 = arith.addf %149, %150 : vector<32x128xf32>
    %cst_58 = arith.constant dense<0.000000e+00> : vector<32xf32>
    %152 = vector.multi_reduction <add>, %151, %cst_58 [1] : vector<32x128xf32> to vector<32xf32>
    %153 = vector.shape_cast %152 : vector<32xf32> to vector<32x1xf32>
    %cst_59 = arith.constant 0.000000e+00 : f32
    %154 = vector.shape_cast %17 : vector<1x128xi1> to vector<1x128xi1>
    %155 = vector.broadcast %154 : vector<1x128xi1> to vector<32x128xi1>
    %156 = vector.broadcast %cst_59 : f32 to vector<32x128xf32>
    %157 = arith.select %155, %151, %156 : vector<32x128xi1>, vector<32x128xf32>
    %cst_60 = arith.constant dense<0.000000e+00> : vector<32xf32>
    %158 = vector.multi_reduction <add>, %157, %cst_60 [1] : vector<32x128xf32> to vector<32xf32>
    %159 = vector.shape_cast %158 : vector<32xf32> to vector<32x1xf32>
    %160 = arith.subf %153, %159 : vector<32x1xf32>
    %161 = vector.shape_cast %17 : vector<1x128xi1> to vector<1x128xi1>
    %162 = vector.broadcast %161 : vector<1x128xi1> to vector<32x128xi1>
    %163 = vector.shape_cast %159 : vector<32x1xf32> to vector<32x1xf32>
    %164 = vector.broadcast %163 : vector<32x1xf32> to vector<32x128xf32>
    %165 = vector.shape_cast %160 : vector<32x1xf32> to vector<32x1xf32>
    %166 = vector.broadcast %165 : vector<32x1xf32> to vector<32x128xf32>
    %167 = arith.select %162, %164, %166 : vector<32x128xi1>, vector<32x128xf32>
    %cst_61 = arith.constant 1.562500e-02 : f32
    %168 = vector.broadcast %cst_61 : f32 to vector<32x128xf32>
    %169 = arith.mulf %167, %168 : vector<32x128xf32>
    %170 = arith.subf %151, %169 : vector<32x128xf32>
    %171 = arith.mulf %170, %170 : vector<32x128xf32>
    %cst_62 = arith.constant dense<0.000000e+00> : vector<32xf32>
    %172 = vector.multi_reduction <add>, %171, %cst_62 [1] : vector<32x128xf32> to vector<32xf32>
    %173 = vector.shape_cast %172 : vector<32xf32> to vector<32x1xf32>
    %cst_63 = arith.constant 0.000000e+00 : f32
    %174 = vector.shape_cast %17 : vector<1x128xi1> to vector<1x128xi1>
    %175 = vector.broadcast %174 : vector<1x128xi1> to vector<32x128xi1>
    %176 = vector.broadcast %cst_63 : f32 to vector<32x128xf32>
    %177 = arith.select %175, %171, %176 : vector<32x128xi1>, vector<32x128xf32>
    %cst_64 = arith.constant dense<0.000000e+00> : vector<32xf32>
    %178 = vector.multi_reduction <add>, %177, %cst_64 [1] : vector<32x128xf32> to vector<32xf32>
    %179 = vector.shape_cast %178 : vector<32xf32> to vector<32x1xf32>
    %180 = arith.subf %173, %179 : vector<32x1xf32>
    %181 = vector.shape_cast %17 : vector<1x128xi1> to vector<1x128xi1>
    %182 = vector.broadcast %181 : vector<1x128xi1> to vector<32x128xi1>
    %183 = vector.shape_cast %179 : vector<32x1xf32> to vector<32x1xf32>
    %184 = vector.broadcast %183 : vector<32x1xf32> to vector<32x128xf32>
    %185 = vector.shape_cast %180 : vector<32x1xf32> to vector<32x1xf32>
    %186 = vector.broadcast %185 : vector<32x1xf32> to vector<32x128xf32>
    %187 = arith.select %182, %184, %186 : vector<32x128xi1>, vector<32x128xf32>
    %cst_65 = arith.constant 1.562500e-02 : f32
    %188 = vector.broadcast %cst_65 : f32 to vector<32x128xf32>
    %189 = arith.mulf %187, %188 : vector<32x128xf32>
    %cst_66 = arith.constant 9.99999974E-6 : f32
    %190 = vector.broadcast %cst_66 : f32 to vector<32x128xf32>
    %191 = arith.addf %189, %190 : vector<32x128xf32>
    %192 = math.rsqrt %191 : vector<32x128xf32>
    %193 = arith.mulf %170, %192 : vector<32x128xf32>
    %194 = vector.broadcast %9 : vector<1x128xf32> to vector<32x128xf32>
    %195 = arith.mulf %193, %194 : vector<32x128xf32>
    %196 = vector.broadcast %10 : vector<1x128xf32> to vector<32x128xf32>
    %197 = arith.addf %195, %196 : vector<32x128xf32>
    %cst_67 = arith.constant dense<0.000000e+00> : vector<32x256xf32>
    %198 = tpu.matmul %197, %5, %cst_67 {dimension_numbers = #tpu.dot_dimension_numbers<[1], [0], [0], [1], [0, 0, 1, 1], [], []>} : vector<32x128xf32>, vector<128x256xf32>, vector<32x256xf32> -> vector<32x256xf32>
    %199 = vector.broadcast %13 : vector<1x256xf32> to vector<32x256xf32>
    %200 = arith.addf %198, %199 : vector<32x256xf32>
    %cst_68 = arith.constant 0.000000e+00 : f32
    %201 = vector.broadcast %cst_68 : f32 to vector<32x256xf32>
    %202 = arith.maximumf %200, %201 : vector<32x256xf32>
    %cst_69 = arith.constant dense<0.000000e+00> : vector<32x128xf32>
    %203 = tpu.matmul %202, %6, %cst_69 {dimension_numbers = #tpu.dot_dimension_numbers<[1], [0], [0], [1], [0, 0, 1, 1], [], []>} : vector<32x256xf32>, vector<256x128xf32>, vector<32x128xf32> -> vector<32x128xf32>
    %204 = arith.addf %151, %203 : vector<32x128xf32>
    %205 = vector.broadcast %14 : vector<1x128xf32> to vector<32x128xf32>
    %206 = arith.addf %204, %205 : vector<32x128xf32>
    %c64_i32_70 = arith.constant 64 : i32
    %207 = tpu.dynamic_rotate %206 by %c64_i32_70 dim 1 : vector<32x128xf32>, i32 -> vector<32x128xf32>
    %cst_71 = arith.constant 0.000000e+00 : f32
    %208 = vector.broadcast %cst_71 : f32 to vector<32x128xf32>
    %209 = arith.maximumf %207, %208 : vector<32x128xf32>
    %210 = vector.broadcast %cst_71 : f32 to vector<32x128xf32>
    %211 = arith.subf %207, %210 : vector<32x128xf32>
    %212 = arith.cmpf one, %211, %211 : vector<32x128xf32>
    %213 = vector.broadcast %cst_71 : f32 to vector<32x128xf32>
    %214 = arith.addf %207, %213 : vector<32x128xf32>
    %215 = math.absf %211 : vector<32x128xf32>
    %cst_72 = arith.constant 0.000000e+00 : f32
    %216 = vector.broadcast %cst_72 : f32 to vector<32x128xf32>
    %217 = arith.subf %216, %215 : vector<32x128xf32>
    %218 = math.exp %217 : vector<32x128xf32>
    %219 = math.log1p %218 : vector<32x128xf32>
    %220 = arith.addf %209, %219 : vector<32x128xf32>
    %221 = arith.select %212, %214, %220 : vector<32x128xi1>, vector<32x128xf32>
    %cst_73 = arith.constant 9.99999993E-9 : f32
    %222 = vector.broadcast %cst_73 : f32 to vector<32x128xf32>
    %223 = arith.addf %221, %222 : vector<32x128xf32>
    %c1 = arith.constant 1 : index
    %c0_74 = arith.constant 0 : index
    %c0_75 = arith.constant 0 : index
    %224 = vector.load %arg3[%c1, %c0_74, %c0_75] : memref<3x32x128xf32, #tpu.memory_space<vmem>>, vector<1x32x128xf32>
    %225 = vector.shape_cast %224 : vector<1x32x128xf32> to vector<32x128xf32>
    %226 = arith.mulf %223, %225 : vector<32x128xf32>
    %227 = arith.addf %206, %226 : vector<32x128xf32>
    %228 = vector.shape_cast %206 : vector<32x128xf32> to vector<4x8x128xf32>
    %c0_76 = arith.constant 0 : index
    %c0_77 = arith.constant 0 : index
    %c0_78 = arith.constant 0 : index
    %c0_79 = arith.constant 0 : index
    %229 = vector.load %arg12[%c0_76, %c0_77, %c0_78, %c0_79] : memref<2x4x8x128xf32, #tpu.memory_space<vmem>>, vector<1x4x8x128xf32>
    %230 = vector.shape_cast %229 : vector<1x4x8x128xf32> to vector<4x8x128xf32>
    %231 = vector.shape_cast %228 : vector<4x8x128xf32> to vector<1x4x8x128xf32>
    tpu.vector_store %arg12[%c0_76, %c0_77, %c0_78, %c0_79], %231 {strides = array<i32>} : memref<2x4x8x128xf32, #tpu.memory_space<vmem>>, vector<1x4x8x128xf32>,
    %232 = vector.shape_cast %227 : vector<32x128xf32> to vector<4x8x128xf32>
    %c0_80 = arith.constant 0 : index
    %c0_81 = arith.constant 0 : index
    %c0_82 = arith.constant 0 : index
    %c0_83 = arith.constant 0 : index
    %233 = vector.load %arg13[%c0_80, %c0_81, %c0_82, %c0_83] : memref<2x4x8x128xf32, #tpu.memory_space<vmem>>, vector<1x4x8x128xf32>
    %234 = vector.shape_cast %233 : vector<1x4x8x128xf32> to vector<4x8x128xf32>
    %235 = vector.shape_cast %232 : vector<4x8x128xf32> to vector<1x4x8x128xf32>
    tpu.vector_store %arg13[%c0_80, %c0_81, %c0_82, %c0_83], %235 {strides = array<i32>} : memref<2x4x8x128xf32, #tpu.memory_space<vmem>>, vector<1x4x8x128xf32>,
    %cst_84 = arith.constant dense<0.000000e+00> : vector<32xf32>
    %236 = vector.multi_reduction <add>, %227, %cst_84 [1] : vector<32x128xf32> to vector<32xf32>
    %237 = vector.shape_cast %236 : vector<32xf32> to vector<32x1xf32>
    %cst_85 = arith.constant 0.000000e+00 : f32
    %238 = vector.shape_cast %17 : vector<1x128xi1> to vector<1x128xi1>
    %239 = vector.broadcast %238 : vector<1x128xi1> to vector<32x128xi1>
    %240 = vector.broadcast %cst_85 : f32 to vector<32x128xf32>
    %241 = arith.select %239, %227, %240 : vector<32x128xi1>, vector<32x128xf32>
    %cst_86 = arith.constant dense<0.000000e+00> : vector<32xf32>
    %242 = vector.multi_reduction <add>, %241, %cst_86 [1] : vector<32x128xf32> to vector<32xf32>
    %243 = vector.shape_cast %242 : vector<32xf32> to vector<32x1xf32>
    %244 = arith.subf %237, %243 : vector<32x1xf32>
    %245 = vector.shape_cast %17 : vector<1x128xi1> to vector<1x128xi1>
    %246 = vector.broadcast %245 : vector<1x128xi1> to vector<32x128xi1>
    %247 = vector.shape_cast %243 : vector<32x1xf32> to vector<32x1xf32>
    %248 = vector.broadcast %247 : vector<32x1xf32> to vector<32x128xf32>
    %249 = vector.shape_cast %244 : vector<32x1xf32> to vector<32x1xf32>
    %250 = vector.broadcast %249 : vector<32x1xf32> to vector<32x128xf32>
    %251 = arith.select %246, %248, %250 : vector<32x128xi1>, vector<32x128xf32>
    %cst_87 = arith.constant 1.562500e-02 : f32
    %252 = vector.broadcast %cst_87 : f32 to vector<32x128xf32>
    %253 = arith.mulf %251, %252 : vector<32x128xf32>
    %254 = arith.subf %227, %253 : vector<32x128xf32>
    %255 = arith.mulf %254, %254 : vector<32x128xf32>
    %cst_88 = arith.constant dense<0.000000e+00> : vector<32xf32>
    %256 = vector.multi_reduction <add>, %255, %cst_88 [1] : vector<32x128xf32> to vector<32xf32>
    %257 = vector.shape_cast %256 : vector<32xf32> to vector<32x1xf32>
    %cst_89 = arith.constant 0.000000e+00 : f32
    %258 = vector.shape_cast %17 : vector<1x128xi1> to vector<1x128xi1>
    %259 = vector.broadcast %258 : vector<1x128xi1> to vector<32x128xi1>
    %260 = vector.broadcast %cst_89 : f32 to vector<32x128xf32>
    %261 = arith.select %259, %255, %260 : vector<32x128xi1>, vector<32x128xf32>
    %cst_90 = arith.constant dense<0.000000e+00> : vector<32xf32>
    %262 = vector.multi_reduction <add>, %261, %cst_90 [1] : vector<32x128xf32> to vector<32xf32>
    %263 = vector.shape_cast %262 : vector<32xf32> to vector<32x1xf32>
    %264 = arith.subf %257, %263 : vector<32x1xf32>
    %265 = vector.shape_cast %17 : vector<1x128xi1> to vector<1x128xi1>
    %266 = vector.broadcast %265 : vector<1x128xi1> to vector<32x128xi1>
    %267 = vector.shape_cast %263 : vector<32x1xf32> to vector<32x1xf32>
    %268 = vector.broadcast %267 : vector<32x1xf32> to vector<32x128xf32>
    %269 = vector.shape_cast %264 : vector<32x1xf32> to vector<32x1xf32>
    %270 = vector.broadcast %269 : vector<32x1xf32> to vector<32x128xf32>
    %271 = arith.select %266, %268, %270 : vector<32x128xi1>, vector<32x128xf32>
    %cst_91 = arith.constant 1.562500e-02 : f32
    %272 = vector.broadcast %cst_91 : f32 to vector<32x128xf32>
    %273 = arith.mulf %271, %272 : vector<32x128xf32>
    %cst_92 = arith.constant 9.99999974E-6 : f32
    %274 = vector.broadcast %cst_92 : f32 to vector<32x128xf32>
    %275 = arith.addf %273, %274 : vector<32x128xf32>
    %276 = math.rsqrt %275 : vector<32x128xf32>
    %277 = arith.mulf %254, %276 : vector<32x128xf32>
    %278 = vector.broadcast %7 : vector<1x128xf32> to vector<32x128xf32>
    %279 = arith.mulf %277, %278 : vector<32x128xf32>
    %280 = vector.broadcast %8 : vector<1x128xf32> to vector<32x128xf32>
    %281 = arith.addf %279, %280 : vector<32x128xf32>
    %cst_93 = arith.constant dense<0.000000e+00> : vector<32x64xf32>
    %282 = tpu.matmul %281, %0, %cst_93 {dimension_numbers = #tpu.dot_dimension_numbers<[1], [0], [0], [1], [0, 0, 1, 1], [], []>} : vector<32x128xf32>, vector<128x64xf32>, vector<32x64xf32> -> vector<32x64xf32>
    %cst_94 = arith.constant 1.250000e-01 : f32
    %283 = vector.broadcast %cst_94 : f32 to vector<32x64xf32>
    %284 = arith.mulf %282, %283 : vector<32x64xf32>
    %285 = vector.shape_cast %284 : vector<32x64xf32> to vector<4x8x64xf32>
    %286 = arith.truncf %285 : vector<4x8x64xf32> to vector<4x8x64xbf16>
    "tpu.trace_start"() <{level = 10 : i32, message = "bkd,bjd->bkj"}> : () -> ()
    %cst_95 = arith.constant dense<0.000000e+00> : vector<4x8x256xf32>
    %287 = tpu.matmul %286, %23, %cst_95 {dimension_numbers = #tpu.dot_dimension_numbers<[2], [2], [1], [1], [0, 0, 0, 1, 1, 1], [0], [0]>} : vector<4x8x64xbf16>, vector<4x256x64xbf16>, vector<4x8x256xf32> -> vector<4x8x256xf32>
    "tpu.trace_stop"() : () -> ()
    %cst_96 = arith.constant dense<0xFF800000> : vector<4x256xf32>
    %288 = vector.multi_reduction <maximumf>, %287, %cst_96 [1] : vector<4x8x256xf32> to vector<4x256xf32>
    %289 = vector.shape_cast %288 : vector<4x256xf32> to vector<4x1x256xf32>
    %290 = vector.broadcast %289 : vector<4x1x256xf32> to vector<4x8x256xf32>
    %291 = arith.subf %287, %290 : vector<4x8x256xf32>
    %292 = math.exp %291 : vector<4x8x256xf32>
    %cst_97 = arith.constant dense<0.000000e+00> : vector<4x256xf32>
    %293 = vector.multi_reduction <add>, %292, %cst_97 [1] : vector<4x8x256xf32> to vector<4x256xf32>
    %294 = vector.shape_cast %293 : vector<4x256xf32> to vector<4x1x256xf32>
    %295 = vector.broadcast %294 : vector<4x1x256xf32> to vector<4x8x256xf32>
    %296 = arith.divf %292, %295 : vector<4x8x256xf32>
    %cst_98 = arith.constant 9.99999993E-9 : f32
    %297 = vector.broadcast %cst_98 : f32 to vector<4x8x256xf32>
    %298 = arith.addf %296, %297 : vector<4x8x256xf32>
    %cst_99 = arith.constant dense<0.000000e+00> : vector<4x8xf32>
    %299 = vector.multi_reduction <add>, %298, %cst_99 [2] : vector<4x8x256xf32> to vector<4x8xf32>
    %300 = vector.shape_cast %299 : vector<4x8xf32> to vector<4x8x1xf32>
    %301 = tpu.reciprocal %300 {approx = true} : vector<4x8x1xf32> -> vector<4x8x1xf32>
    %302 = vector.broadcast %301 : vector<4x8x1xf32> to vector<4x8x256xf32>
    %303 = arith.mulf %298, %302 : vector<4x8x256xf32>
    %304 = arith.truncf %303 : vector<4x8x256xf32> to vector<4x8x256xbf16>
    "tpu.trace_start"() <{level = 10 : i32, message = "bkj,bjd->bkd"}> : () -> ()
    %cst_100 = arith.constant dense<0.000000e+00> : vector<4x8x64xf32>
    %305 = tpu.matmul %304, %25, %cst_100 {dimension_numbers = #tpu.dot_dimension_numbers<[2], [1], [1], [2], [0, 0, 0, 1, 1, 2], [0], [0]>} : vector<4x8x256xbf16>, vector<4x256x64xbf16>, vector<4x8x64xf32> -> vector<4x8x64xf32>
    "tpu.trace_stop"() : () -> ()
    %306 = vector.shape_cast %305 : vector<4x8x64xf32> to vector<32x64xf32>
    %cst_101 = arith.constant dense<0.000000e+00> : vector<32x384xf32>
    %307 = tpu.matmul %306, %3, %cst_101 {dimension_numbers = #tpu.dot_dimension_numbers<[1], [0], [0], [1], [0, 0, 1, 1], [], []>} : vector<32x64xf32>, vector<64x384xf32>, vector<32x384xf32> -> vector<32x384xf32>
    %308 = vector.broadcast %11 : vector<1x384xf32> to vector<32x384xf32>
    %309 = arith.addf %307, %308 : vector<32x384xf32>
    %cst_102 = arith.constant dense<0.000000e+00> : vector<32x384xf32>
    %310 = tpu.matmul %206, %4, %cst_102 {dimension_numbers = #tpu.dot_dimension_numbers<[1], [0], [0], [1], [0, 0, 1, 1], [], []>} : vector<32x128xf32>, vector<128x384xf32>, vector<32x384xf32> -> vector<32x384xf32>
    %311 = vector.broadcast %12 : vector<1x384xf32> to vector<32x384xf32>
    %312 = arith.addf %310, %311 : vector<32x384xf32>
    %313 = vector.extract_strided_slice %309 {offsets = [0, 0], sizes = [32, 128], strides = [1, 1]} : vector<32x384xf32> to vector<32x128xf32>
    %314 = vector.extract_strided_slice %309 {offsets = [0, 128], sizes = [32, 128], strides = [1, 1]} : vector<32x384xf32> to vector<32x128xf32>
    %315 = vector.extract_strided_slice %309 {offsets = [0, 256], sizes = [32, 128], strides = [1, 1]} : vector<32x384xf32> to vector<32x128xf32>
    %316 = vector.extract_strided_slice %312 {offsets = [0, 0], sizes = [32, 128], strides = [1, 1]} : vector<32x384xf32> to vector<32x128xf32>
    %317 = vector.extract_strided_slice %312 {offsets = [0, 128], sizes = [32, 128], strides = [1, 1]} : vector<32x384xf32> to vector<32x128xf32>
    %318 = vector.extract_strided_slice %312 {offsets = [0, 256], sizes = [32, 128], strides = [1, 1]} : vector<32x384xf32> to vector<32x128xf32>
    %319 = arith.addf %313, %316 : vector<32x128xf32>
    %320 = arith.negf %319 : vector<32x128xf32>
    %321 = math.exp %320 : vector<32x128xf32>
    %cst_103 = arith.constant 1.000000e+00 : f32
    %322 = vector.broadcast %cst_103 : f32 to vector<32x128xf32>
    %323 = arith.addf %322, %321 : vector<32x128xf32>
    %324 = arith.divf %322, %323 : vector<32x128xf32>
    %325 = arith.addf %314, %317 : vector<32x128xf32>
    %326 = arith.negf %325 : vector<32x128xf32>
    %327 = math.exp %326 : vector<32x128xf32>
    %cst_104 = arith.constant 1.000000e+00 : f32
    %328 = vector.broadcast %cst_104 : f32 to vector<32x128xf32>
    %329 = arith.addf %328, %327 : vector<32x128xf32>
    %330 = arith.divf %328, %329 : vector<32x128xf32>
    %331 = arith.mulf %324, %318 : vector<32x128xf32>
    %332 = arith.addf %315, %331 : vector<32x128xf32>
    %333 = math.tanh %332 : vector<32x128xf32>
    %cst_105 = arith.constant 1.000000e+00 : f32
    %334 = vector.broadcast %cst_105 : f32 to vector<32x128xf32>
    %335 = arith.subf %334, %330 : vector<32x128xf32>
    %336 = arith.mulf %335, %333 : vector<32x128xf32>
    %337 = arith.mulf %330, %206 : vector<32x128xf32>
    %338 = arith.addf %336, %337 : vector<32x128xf32>
    %cst_106 = arith.constant dense<0.000000e+00> : vector<32xf32>
    %339 = vector.multi_reduction <add>, %338, %cst_106 [1] : vector<32x128xf32> to vector<32xf32>
    %340 = vector.shape_cast %339 : vector<32xf32> to vector<32x1xf32>
    %cst_107 = arith.constant 0.000000e+00 : f32
    %341 = vector.shape_cast %17 : vector<1x128xi1> to vector<1x128xi1>
    %342 = vector.broadcast %341 : vector<1x128xi1> to vector<32x128xi1>
    %343 = vector.broadcast %cst_107 : f32 to vector<32x128xf32>
    %344 = arith.select %342, %338, %343 : vector<32x128xi1>, vector<32x128xf32>
    %cst_108 = arith.constant dense<0.000000e+00> : vector<32xf32>
    %345 = vector.multi_reduction <add>, %344, %cst_108 [1] : vector<32x128xf32> to vector<32xf32>
    %346 = vector.shape_cast %345 : vector<32xf32> to vector<32x1xf32>
    %347 = arith.subf %340, %346 : vector<32x1xf32>
    %348 = vector.shape_cast %17 : vector<1x128xi1> to vector<1x128xi1>
    %349 = vector.broadcast %348 : vector<1x128xi1> to vector<32x128xi1>
    %350 = vector.shape_cast %346 : vector<32x1xf32> to vector<32x1xf32>
    %351 = vector.broadcast %350 : vector<32x1xf32> to vector<32x128xf32>
    %352 = vector.shape_cast %347 : vector<32x1xf32> to vector<32x1xf32>
    %353 = vector.broadcast %352 : vector<32x1xf32> to vector<32x128xf32>
    %354 = arith.select %349, %351, %353 : vector<32x128xi1>, vector<32x128xf32>
    %cst_109 = arith.constant 1.562500e-02 : f32
    %355 = vector.broadcast %cst_109 : f32 to vector<32x128xf32>
    %356 = arith.mulf %354, %355 : vector<32x128xf32>
    %357 = arith.subf %338, %356 : vector<32x128xf32>
    %358 = arith.mulf %357, %357 : vector<32x128xf32>
    %cst_110 = arith.constant dense<0.000000e+00> : vector<32xf32>
    %359 = vector.multi_reduction <add>, %358, %cst_110 [1] : vector<32x128xf32> to vector<32xf32>
    %360 = vector.shape_cast %359 : vector<32xf32> to vector<32x1xf32>
    %cst_111 = arith.constant 0.000000e+00 : f32
    %361 = vector.shape_cast %17 : vector<1x128xi1> to vector<1x128xi1>
    %362 = vector.broadcast %361 : vector<1x128xi1> to vector<32x128xi1>
    %363 = vector.broadcast %cst_111 : f32 to vector<32x128xf32>
    %364 = arith.select %362, %358, %363 : vector<32x128xi1>, vector<32x128xf32>
    %cst_112 = arith.constant dense<0.000000e+00> : vector<32xf32>
    %365 = vector.multi_reduction <add>, %364, %cst_112 [1] : vector<32x128xf32> to vector<32xf32>
    %366 = vector.shape_cast %365 : vector<32xf32> to vector<32x1xf32>
    %367 = arith.subf %360, %366 : vector<32x1xf32>
    %368 = vector.shape_cast %17 : vector<1x128xi1> to vector<1x128xi1>
    %369 = vector.broadcast %368 : vector<1x128xi1> to vector<32x128xi1>
    %370 = vector.shape_cast %366 : vector<32x1xf32> to vector<32x1xf32>
    %371 = vector.broadcast %370 : vector<32x1xf32> to vector<32x128xf32>
    %372 = vector.shape_cast %367 : vector<32x1xf32> to vector<32x1xf32>
    %373 = vector.broadcast %372 : vector<32x1xf32> to vector<32x128xf32>
    %374 = arith.select %369, %371, %373 : vector<32x128xi1>, vector<32x128xf32>
    %cst_113 = arith.constant 1.562500e-02 : f32
    %375 = vector.broadcast %cst_113 : f32 to vector<32x128xf32>
    %376 = arith.mulf %374, %375 : vector<32x128xf32>
    %cst_114 = arith.constant 9.99999974E-6 : f32
    %377 = vector.broadcast %cst_114 : f32 to vector<32x128xf32>
    %378 = arith.addf %376, %377 : vector<32x128xf32>
    %379 = math.rsqrt %378 : vector<32x128xf32>
    %380 = arith.mulf %357, %379 : vector<32x128xf32>
    %381 = vector.broadcast %9 : vector<1x128xf32> to vector<32x128xf32>
    %382 = arith.mulf %380, %381 : vector<32x128xf32>
    %383 = vector.broadcast %10 : vector<1x128xf32> to vector<32x128xf32>
    %384 = arith.addf %382, %383 : vector<32x128xf32>
    %cst_115 = arith.constant dense<0.000000e+00> : vector<32x256xf32>
    %385 = tpu.matmul %384, %5, %cst_115 {dimension_numbers = #tpu.dot_dimension_numbers<[1], [0], [0], [1], [0, 0, 1, 1], [], []>} : vector<32x128xf32>, vector<128x256xf32>, vector<32x256xf32> -> vector<32x256xf32>
    %386 = vector.broadcast %13 : vector<1x256xf32> to vector<32x256xf32>
    %387 = arith.addf %385, %386 : vector<32x256xf32>
    %cst_116 = arith.constant 0.000000e+00 : f32
    %388 = vector.broadcast %cst_116 : f32 to vector<32x256xf32>
    %389 = arith.maximumf %387, %388 : vector<32x256xf32>
    %cst_117 = arith.constant dense<0.000000e+00> : vector<32x128xf32>
    %390 = tpu.matmul %389, %6, %cst_117 {dimension_numbers = #tpu.dot_dimension_numbers<[1], [0], [0], [1], [0, 0, 1, 1], [], []>} : vector<32x256xf32>, vector<256x128xf32>, vector<32x128xf32> -> vector<32x128xf32>
    %391 = arith.addf %338, %390 : vector<32x128xf32>
    %392 = vector.broadcast %14 : vector<1x128xf32> to vector<32x128xf32>
    %393 = arith.addf %391, %392 : vector<32x128xf32>
    %c64_i32_118 = arith.constant 64 : i32
    %394 = tpu.dynamic_rotate %393 by %c64_i32_118 dim 1 : vector<32x128xf32>, i32 -> vector<32x128xf32>
    %cst_119 = arith.constant 0.000000e+00 : f32
    %395 = vector.broadcast %cst_119 : f32 to vector<32x128xf32>
    %396 = arith.maximumf %394, %395 : vector<32x128xf32>
    %397 = vector.broadcast %cst_119 : f32 to vector<32x128xf32>
    %398 = arith.subf %394, %397 : vector<32x128xf32>
    %399 = arith.cmpf one, %398, %398 : vector<32x128xf32>
    %400 = vector.broadcast %cst_119 : f32 to vector<32x128xf32>
    %401 = arith.addf %394, %400 : vector<32x128xf32>
    %402 = math.absf %398 : vector<32x128xf32>
    %cst_120 = arith.constant 0.000000e+00 : f32
    %403 = vector.broadcast %cst_120 : f32 to vector<32x128xf32>
    %404 = arith.subf %403, %402 : vector<32x128xf32>
    %405 = math.exp %404 : vector<32x128xf32>
    %406 = math.log1p %405 : vector<32x128xf32>
    %407 = arith.addf %396, %406 : vector<32x128xf32>
    %408 = arith.select %399, %401, %407 : vector<32x128xi1>, vector<32x128xf32>
    %cst_121 = arith.constant 9.99999993E-9 : f32
    %409 = vector.broadcast %cst_121 : f32 to vector<32x128xf32>
    %410 = arith.addf %408, %409 : vector<32x128xf32>
    %c2 = arith.constant 2 : index
    %c0_122 = arith.constant 0 : index
    %c0_123 = arith.constant 0 : index
    %411 = vector.load %arg3[%c2, %c0_122, %c0_123] : memref<3x32x128xf32, #tpu.memory_space<vmem>>, vector<1x32x128xf32>
    %412 = vector.shape_cast %411 : vector<1x32x128xf32> to vector<32x128xf32>
    %413 = arith.mulf %410, %412 : vector<32x128xf32>
    %414 = arith.addf %393, %413 : vector<32x128xf32>
    %415 = vector.shape_cast %393 : vector<32x128xf32> to vector<4x8x128xf32>
    %c1_124 = arith.constant 1 : index
    %c0_125 = arith.constant 0 : index
    %c0_126 = arith.constant 0 : index
    %c0_127 = arith.constant 0 : index
    %416 = vector.load %arg12[%c1_124, %c0_125, %c0_126, %c0_127] : memref<2x4x8x128xf32, #tpu.memory_space<vmem>>, vector<1x4x8x128xf32>
    %417 = vector.shape_cast %416 : vector<1x4x8x128xf32> to vector<4x8x128xf32>
    %418 = vector.shape_cast %415 : vector<4x8x128xf32> to vector<1x4x8x128xf32>
    tpu.vector_store %arg12[%c1_124, %c0_125, %c0_126, %c0_127], %418 {strides = array<i32>} : memref<2x4x8x128xf32, #tpu.memory_space<vmem>>, vector<1x4x8x128xf32>,
    %419 = vector.shape_cast %414 : vector<32x128xf32> to vector<4x8x128xf32>
    %c1_128 = arith.constant 1 : index
    %c0_129 = arith.constant 0 : index
    %c0_130 = arith.constant 0 : index
    %c0_131 = arith.constant 0 : index
    %420 = vector.load %arg13[%c1_128, %c0_129, %c0_130, %c0_131] : memref<2x4x8x128xf32, #tpu.memory_space<vmem>>, vector<1x4x8x128xf32>
    %421 = vector.shape_cast %420 : vector<1x4x8x128xf32> to vector<4x8x128xf32>
    %422 = vector.shape_cast %419 : vector<4x8x128xf32> to vector<1x4x8x128xf32>
    tpu.vector_store %arg13[%c1_128, %c0_129, %c0_130, %c0_131], %422 {strides = array<i32>} : memref<2x4x8x128xf32, #tpu.memory_space<vmem>>, vector<1x4x8x128xf32>,
    return
  }
  func.func @transform_0(%arg0: i32) -> (i32, i32, i32) {
    %c0_i32 = arith.constant 0 : i32
    %c0_i32_0 = arith.constant 0 : i32
    %c0_i32_1 = arith.constant 0 : i32
    return %arg0, %c0_i32, %c0_i32_0 : i32, i32, i32
  }
  func.func @transform_1(%arg0: i32) -> (i32, i32, i32) {
    %c0_i32 = arith.constant 0 : i32
    %c0_i32_0 = arith.constant 0 : i32
    %c0_i32_1 = arith.constant 0 : i32
    return %arg0, %c0_i32, %c0_i32_0 : i32, i32, i32
  }
  func.func @transform_2(%arg0: i32) -> (i32, i32, i32) {
    %c0_i32 = arith.constant 0 : i32
    %c0_i32_0 = arith.constant 0 : i32
    %c0_i32_1 = arith.constant 0 : i32
    return %c0_i32, %arg0, %c0_i32_0 : i32, i32, i32
  }
  func.func @transform_3(%arg0: i32) -> (i32, i32) {
    %c0_i32 = arith.constant 0 : i32
    %c0_i32_0 = arith.constant 0 : i32
    %c0_i32_1 = arith.constant 0 : i32
    return %c0_i32, %c0_i32_0 : i32, i32
  }
  func.func @transform_4(%arg0: i32) -> (i32, i32) {
    %c0_i32 = arith.constant 0 : i32
    %c0_i32_0 = arith.constant 0 : i32
    %c0_i32_1 = arith.constant 0 : i32
    return %c0_i32, %c0_i32_0 : i32, i32
  }
  func.func @transform_5(%arg0: i32) -> (i32, i32) {
    %c0_i32 = arith.constant 0 : i32
    %c0_i32_0 = arith.constant 0 : i32
    %c0_i32_1 = arith.constant 0 : i32
    return %c0_i32, %c0_i32_0 : i32, i32
  }
  func.func @transform_6(%arg0: i32) -> (i32, i32) {
    %c0_i32 = arith.constant 0 : i32
    %c0_i32_0 = arith.constant 0 : i32
    %c0_i32_1 = arith.constant 0 : i32
    return %c0_i32, %c0_i32_0 : i32, i32
  }
  func.func @transform_7(%arg0: i32) -> (i32, i32) {
    %c0_i32 = arith.constant 0 : i32
    %c0_i32_0 = arith.constant 0 : i32
    %c0_i32_1 = arith.constant 0 : i32
    return %c0_i32, %c0_i32_0 : i32, i32
  }
  func.func @transform_8(%arg0: i32) -> (i32, i32) {
    %c0_i32 = arith.constant 0 : i32
    %c0_i32_0 = arith.constant 0 : i32
    %c0_i32_1 = arith.constant 0 : i32
    return %c0_i32, %c0_i32_0 : i32, i32
  }
  func.func @transform_9(%arg0: i32) -> (i32, i32) {
    %c0_i32 = arith.constant 0 : i32
    %c0_i32_0 = arith.constant 0 : i32
    %c0_i32_1 = arith.constant 0 : i32
    return %c0_i32, %c0_i32_0 : i32, i32
  }
  func.func @transform_10(%arg0: i32) -> (i32, i32) {
    %c0_i32 = arith.constant 0 : i32
    %c0_i32_0 = arith.constant 0 : i32
    %c0_i32_1 = arith.constant 0 : i32
    return %c0_i32, %c0_i32_0 : i32, i32
  }
  func.func @transform_11(%arg0: i32) -> (i32, i32, i32, i32) {
    %c0_i32 = arith.constant 0 : i32
    %c0_i32_0 = arith.constant 0 : i32
    %c0_i32_1 = arith.constant 0 : i32
    %c0_i32_2 = arith.constant 0 : i32
    return %c0_i32, %arg0, %c0_i32_0, %c0_i32_1 : i32, i32, i32, i32
  }
  func.func @transform_12(%arg0: i32) -> (i32, i32, i32, i32) {
    %c0_i32 = arith.constant 0 : i32
    %c0_i32_0 = arith.constant 0 : i32
    %c0_i32_1 = arith.constant 0 : i32
    %c0_i32_2 = arith.constant 0 : i32
    return %c0_i32, %arg0, %c0_i32_0, %c0_i32_1 : i32, i32, i32, i32
  }
}

</mosaic_0001>

<llo_original>
// kernel: tpu_custom_call.1
$region0: #{tpu_custom_call.1}
  #allocation0 [shape = 'u32[]', space=smem, size = 0x4, offset = 0x4, fixed_abs, tag = 'smem constant byte address 0x4 - core index']
  #allocation1 [shape = 'u32[144,128]{1,0:T(1,128)}', space=vmem, size = 0x12000, scoped, tag = 'internal scratch']
  %s0 = inlined_call_operand.vmem [shape: bf16[4,256,64], index: 0, kind: input, shape index: {}]
  %s1 = inlined_call_operand.vmem [shape: f32[4,8,128], index: 1, kind: input, shape index: {}]
  %s2 = inlined_call_operand.hbm [shape: f32[3,32,128], index: 2, kind: input, shape index: {}]
  %s3 = inlined_call_operand.vmem [shape: f32[128,64], index: 3, kind: input, shape index: {}]
  %s4 = inlined_call_operand.vmem [shape: bf16[64,64], index: 4, kind: input, shape index: {}]
  %s5 = inlined_call_operand.hbm [shape: bf16[64,64], index: 5, kind: input, shape index: {}]
  %s6 = inlined_call_operand.hbm [shape: f32[64,384], index: 6, kind: input, shape index: {}]
  %s7 = inlined_call_operand.vmem [shape: f32[128,384], index: 7, kind: input, shape index: {}]
  %s8 = inlined_call_operand.vmem [shape: f32[128,256], index: 8, kind: input, shape index: {}]
  %s9 = inlined_call_operand.vmem [shape: f32[256,128], index: 9, kind: input, shape index: {}]
  %s10 = inlined_call_operand.vmem [shape: f32[1,1664], index: 10, kind: input, shape index: {}]
  %s11 = inlined_call_operand.hbm [shape: f32[2,4,8,128], index: 11, kind: output, shape index: {0}]
  %s12 = inlined_call_operand.hbm [shape: f32[2,4,8,128], index: 12, kind: output, shape index: {1}]
  %13 = xla_tuple %s11, %s12
  %s14 = sld [smem:[#allocation0]]
  $region74: #{tpu_custom_call.1} parent=0
    _
  %s16 = ssub.s32 1, %s14
  %s17 = scalar_select 0, %s16, %s14
  $region1: #{tpu_custom_call.1} parent=0
    #allocation2 [shape = 'u8[49152]{0}', space=vmem, size = 0xc000, scoped, tag = 'input window, operand 2, single buffered']
    #allocation3 [shape = 's32[1]{0}', space=sflag, size = 0x4, scoped, tag = 'scoped memory for tpu_custom_call.1']
    #allocation4 [shape = 's32[1]{0}', space=sflag, size = 0x4, scoped, tag = 'scoped memory for tpu_custom_call.1']
    #allocation5 [shape = 'u8[16384]{0}', space=vmem, size = 0x4000, scoped, tag = 'input window, operand 5, single buffered']
    #allocation6 [shape = 's32[1]{0}', space=sflag, size = 0x4, scoped, tag = 'scoped memory for tpu_custom_call.1']
    #allocation7 [shape = 'u8[98304]{0}', space=vmem, size = 0x18000, scoped, tag = 'input window, operand 6, single buffered']
    #allocation8 [shape = 'u8[32768]{0}', space=vmem, size = 0x8000, scoped, tag = 'output window, operand 0, single buffered']
    #allocation9 [shape = 'u8[32768]{0}', space=vmem, size = 0x8000, scoped, tag = 'output window, operand 1, single buffered']
    #allocation10 [shape = 's32[1]{0}', space=sflag, size = 0x4, scoped, tag = 'scoped memory for tpu_custom_call.1']
    %18 = vsyncpa [#allocation3], 0
    %19 = vsyncpa [#allocation6], 0
    %20 = vsyncpa [#allocation4], 0
    %21 = vsyncpa [#allocation10], 0
    // Predicated region
    $region2: #{tpu_custom_call.1} parent=1 // pred_check
      _
    $region3: #{tpu_custom_call.1} parent=1 // pred_check_branch
      %23 = sbr.rel (0) target = $region5
    $region4: #{tpu_custom_call.1} parent=1 // pred_region
      _
    $region5: #{tpu_custom_call.1} parent=1 // pred_fallthru
      _
    // Predicated region
    $region6: #{tpu_custom_call.1} parent=1 // pred_check
      _
    $region7: #{tpu_custom_call.1} parent=1 // pred_check_branch
      %25 = sbr.rel (0) target = $region9
    $region8: #{tpu_custom_call.1} parent=1 // pred_region
      _
    $region9: #{tpu_custom_call.1} parent=1 // pred_fallthru
      _
    // Predicated region
    $region10: #{tpu_custom_call.1} parent=1 // pred_check
      _
    $region11: #{tpu_custom_call.1} parent=1 // pred_check_branch
      %27 = sbr.rel (0) target = $region13
    $region12: #{tpu_custom_call.1} parent=1 // pred_region
      %s29 = ssub.s32 1536, 1536
      %30 = vsyncadd [#allocation3], %s29
      %s31 = sshll.u32 [#allocation2], 4
      %s32 = int_to_ptr.vmem [resolvable:$true] %s31
      %37 = dma.hbm_to_vmem [thread:$0]  %s2, 1536, %s32, [#allocation3], 128, 128, 8
    $region13: #{tpu_custom_call.1} parent=1 // pred_fallthru
      _
    // Predicated region
    $region14: #{tpu_custom_call.1} parent=1 // pred_check
      _
    $region15: #{tpu_custom_call.1} parent=1 // pred_check_branch
      %39 = sbr.rel (0) target = $region17
    $region16: #{tpu_custom_call.1} parent=1 // pred_region
      _
    $region17: #{tpu_custom_call.1} parent=1 // pred_fallthru
      _
    // Predicated region
    $region18: #{tpu_custom_call.1} parent=1 // pred_check
      _
    $region19: #{tpu_custom_call.1} parent=1 // pred_check_branch
      %41 = sbr.rel (0) target = $region21
    $region20: #{tpu_custom_call.1} parent=1 // pred_region
      _
    $region21: #{tpu_custom_call.1} parent=1 // pred_fallthru
      _
    // Predicated region
    $region22: #{tpu_custom_call.1} parent=1 // pred_check
      _
    $region23: #{tpu_custom_call.1} parent=1 // pred_check_branch
      %43 = sbr.rel (0) target = $region25
    $region24: #{tpu_custom_call.1} parent=1 // pred_region
      %s45 = ssub.s32 512, 512
      %46 = vsyncadd [#allocation6], %s45
      %s47 = sshll.u32 [#allocation5], 4
      %s48 = int_to_ptr.vmem [resolvable:$true] %s47
      %53 = dma.hbm_to_vmem [thread:$0]  %s5, 512, %s48, [#allocation6], 64, 64, 4
    $region25: #{tpu_custom_call.1} parent=1 // pred_fallthru
      _
    // Predicated region
    $region26: #{tpu_custom_call.1} parent=1 // pred_check
      _
    $region27: #{tpu_custom_call.1} parent=1 // pred_check_branch
      %55 = sbr.rel (0) target = $region29
    $region28: #{tpu_custom_call.1} parent=1 // pred_region
      %s57 = ssub.s32 3072, 3072
      %58 = vsyncadd [#allocation6], %s57
      %s59 = sshll.u32 [#allocation7], 4
      %s60 = int_to_ptr.vmem [resolvable:$true] %s59
      %65 = dma.hbm_to_vmem [thread:$0]  %s6, 3072, %s60, [#allocation6], 384, 384, 24
    $region29: #{tpu_custom_call.1} parent=1 // pred_fallthru
      _
    // Predicated region
    $region30: #{tpu_custom_call.1} parent=1 // pred_check
      _
    $region31: #{tpu_custom_call.1} parent=1 // pred_check_branch
      %67 = sbr.rel (0) target = $region33
    $region32: #{tpu_custom_call.1} parent=1 // pred_region
      _
    $region33: #{tpu_custom_call.1} parent=1 // pred_fallthru
      _
    // Predicated region
    $region34: #{tpu_custom_call.1} parent=1 // pred_check
      _
    $region35: #{tpu_custom_call.1} parent=1 // pred_check_branch
      %69 = sbr.rel (0) target = $region37
    $region36: #{tpu_custom_call.1} parent=1 // pred_region
      _
    $region37: #{tpu_custom_call.1} parent=1 // pred_fallthru
      _
    // Predicated region
    $region38: #{tpu_custom_call.1} parent=1 // pred_check
      _
    $region39: #{tpu_custom_call.1} parent=1 // pred_check_branch
      %71 = sbr.rel (0) target = $region41
    $region40: #{tpu_custom_call.1} parent=1 // pred_region
      _
    $region41: #{tpu_custom_call.1} parent=1 // pred_fallthru
      _
    // Predicated region
    $region42: #{tpu_custom_call.1} parent=1 // pred_check
      _
    $region43: #{tpu_custom_call.1} parent=1 // pred_check_branch
      %73 = sbr.rel (0) target = $region45
    $region44: #{tpu_custom_call.1} parent=1 // pred_region
      _
    $region45: #{tpu_custom_call.1} parent=1 // pred_fallthru
      _
    // Predicated region
    $region46: #{tpu_custom_call.1} parent=1 // pred_check
      _
    $region47: #{tpu_custom_call.1} parent=1 // pred_check_branch
      %75 = sbr.rel (0) target = $region49
    $region48: #{tpu_custom_call.1} parent=1 // pred_region
      %76 = dma.done [#allocation3], 1536
    $region49: #{tpu_custom_call.1} parent=1 // pred_fallthru
      _
    // Predicated region
    $region50: #{tpu_custom_call.1} parent=1 // pred_check
      _
    $region51: #{tpu_custom_call.1} parent=1 // pred_check_branch
      %78 = sbr.rel (0) target = $region53
    $region52: #{tpu_custom_call.1} parent=1 // pred_region
      %79 = dma.done [#allocation6], 512
    $region53: #{tpu_custom_call.1} parent=1 // pred_fallthru
      _
    // Predicated region
    $region54: #{tpu_custom_call.1} parent=1 // pred_check
      _
    $region55: #{tpu_custom_call.1} parent=1 // pred_check_branch
      %81 = sbr.rel (0) target = $region57
    $region56: #{tpu_custom_call.1} parent=1 // pred_region
      %82 = dma.done [#allocation6], 3072
    $region57: #{tpu_custom_call.1} parent=1 // pred_fallthru
      _
    %v84 = vld [vmem:[%s3] sm:$0xff]
    %v85 = vld [vmem:[%s3 + $0x8] sm:$0xff]
    %v86 = vld [vmem:[%s3 + $0x10] sm:$0xff]
    %v87 = vld [vmem:[%s3 + $0x18] sm:$0xff]
    %v88 = vld [vmem:[%s3 + $0x20] sm:$0xff]
    %v89 = vld [vmem:[%s3 + $0x28] sm:$0xff]
    %v90 = vld [vmem:[%s3 + $0x30] sm:$0xff]
    %v91 = vld [vmem:[%s3 + $0x38] sm:$0xff]
    %v92 = vld [vmem:[%s3 + $0x40] sm:$0xff]
    %v93 = vld [vmem:[%s3 + $0x48] sm:$0xff]
    %v94 = vld [vmem:[%s3 + $0x50] sm:$0xff]
    %v95 = vld [vmem:[%s3 + $0x58] sm:$0xff]
    %v96 = vld [vmem:[%s3 + $0x60] sm:$0xff]
    %v97 = vld [vmem:[%s3 + $0x68] sm:$0xff]
    %v98 = vld [vmem:[%s3 + $0x70] sm:$0xff]
    %v99 = vld [vmem:[%s3 + $0x78] sm:$0xff]
    %v100 = vld [vmem:[%s4] sm:$0xf]
    %v101 = vld [vmem:[%s4 + $0x4] sm:$0xf]
    %v102 = vld [vmem:[%s4 + $0x8] sm:$0xf]
    %v103 = vld [vmem:[%s4 + $0xc] sm:$0xf]
    %v104 = vld [vmem:[%s4 + $0x10] sm:$0xf]
    %v105 = vld [vmem:[%s4 + $0x14] sm:$0xf]
    %v106 = vld [vmem:[%s4 + $0x18] sm:$0xf]
    %v107 = vld [vmem:[%s4 + $0x1c] sm:$0xf]
    %v108 = vld [vmem:[#allocation5] sm:$0xf]
    %v109 = vld [vmem:[#allocation5 + $0x4] sm:$0xf]
    %v110 = vld [vmem:[#allocation5 + $0x8] sm:$0xf]
    %v111 = vld [vmem:[#allocation5 + $0xc] sm:$0xf]
    %v112 = vld [vmem:[#allocation5 + $0x10] sm:$0xf]
    %v113 = vld [vmem:[#allocation5 + $0x14] sm:$0xf]
    %v114 = vld [vmem:[#allocation5 + $0x18] sm:$0xf]
    %v115 = vld [vmem:[#allocation5 + $0x1c] sm:$0xf]
    %v116 = vld [vmem:[#allocation7] sm:$0xff]
    %v117 = vld [vmem:[#allocation7 + $0x8] sm:$0xff]
    %v118 = vld [vmem:[#allocation7 + $0x10] sm:$0xff]
    %v119 = vld [vmem:[#allocation7 + $0x18] sm:$0xff]
    %v120 = vld [vmem:[#allocation7 + $0x20] sm:$0xff]
    %v121 = vld [vmem:[#allocation7 + $0x28] sm:$0xff]
    %v122 = vld [vmem:[#allocation7 + $0x30] sm:$0xff]
    %v123 = vld [vmem:[#allocation7 + $0x38] sm:$0xff]
    %v124 = vld [vmem:[#allocation7 + $0x40] sm:$0xff]
    %v125 = vld [vmem:[#allocation7 + $0x48] sm:$0xff]
    %v126 = vld [vmem:[#allocation7 + $0x50] sm:$0xff]
    %v127 = vld [vmem:[#allocation7 + $0x58] sm:$0xff]
    %v128 = vld [vmem:[#allocation7 + $0x60] sm:$0xff]
    %v129 = vld [vmem:[#allocation7 + $0x68] sm:$0xff]
    %v130 = vld [vmem:[#allocation7 + $0x70] sm:$0xff]
    %v131 = vld [vmem:[#allocation7 + $0x78] sm:$0xff]
    %v132 = vld [vmem:[#allocation7 + $0x80] sm:$0xff]
    %v133 = vld [vmem:[#allocation7 + $0x88] sm:$0xff]
    %v134 = vld [vmem:[#allocation7 + $0x90] sm:$0xff]
    %v135 = vld [vmem:[#allocation7 + $0x98] sm:$0xff]
    %v136 = vld [vmem:[#allocation7 + $0xa0] sm:$0xff]
    %v137 = vld [vmem:[#allocation7 + $0xa8] sm:$0xff]
    %v138 = vld [vmem:[#allocation7 + $0xb0] sm:$0xff]
    %v139 = vld [vmem:[#allocation7 + $0xb8] sm:$0xff]
    %v140 = vld [vmem:[%s7] sm:$0xff]
    %v141 = vld [vmem:[%s7 + $0x8] sm:$0xff]
    %v142 = vld [vmem:[%s7 + $0x10] sm:$0xff]
    %v143 = vld [vmem:[%s7 + $0x18] sm:$0xff]
    %v144 = vld [vmem:[%s7 + $0x20] sm:$0xff]
    %v145 = vld [vmem:[%s7 + $0x28] sm:$0xff]
    %v146 = vld [vmem:[%s7 + $0x30] sm:$0xff]
    %v147 = vld [vmem:[%s7 + $0x38] sm:$0xff]
    %v148 = vld [vmem:[%s7 + $0x40] sm:$0xff]
    %v149 = vld [vmem:[%s7 + $0x48] sm:$0xff]
    %v150 = vld [vmem:[%s7 + $0x50] sm:$0xff]
    %v151 = vld [vmem:[%s7 + $0x58] sm:$0xff]
    %v152 = vld [vmem:[%s7 + $0x60] sm:$0xff]
    %v153 = vld [vmem:[%s7 + $0x68] sm:$0xff]
    %v154 = vld [vmem:[%s7 + $0x70] sm:$0xff]
    %v155 = vld [vmem:[%s7 + $0x78] sm:$0xff]
    %v156 = vld [vmem:[%s7 + $0x80] sm:$0xff]
    %v157 = vld [vmem:[%s7 + $0x88] sm:$0xff]
    %v158 = vld [vmem:[%s7 + $0x90] sm:$0xff]
    %v159 = vld [vmem:[%s7 + $0x98] sm:$0xff]
    %v160 = vld [vmem:[%s7 + $0xa0] sm:$0xff]
    %v161 = vld [vmem:[%s7 + $0xa8] sm:$0xff]
    %v162 = vld [vmem:[%s7 + $0xb0] sm:$0xff]
    %v163 = vld [vmem:[%s7 + $0xb8] sm:$0xff]
    %v164 = vld [vmem:[%s7 + $0xc0] sm:$0xff]
    %v165 = vld [vmem:[%s7 + $0xc8] sm:$0xff]
    %v166 = vld [vmem:[%s7 + $0xd0] sm:$0xff]
    %v167 = vld [vmem:[%s7 + $0xd8] sm:$0xff]
    %v168 = vld [vmem:[%s7 + $0xe0] sm:$0xff]
    %v169 = vld [vmem:[%s7 + $0xe8] sm:$0xff]
    %v170 = vld [vmem:[%s7 + $0xf0] sm:$0xff]
    %v171 = vld [vmem:[%s7 + $0xf8] sm:$0xff]
    %v172 = vld [vmem:[%s7 + $0x100] sm:$0xff]
    %v173 = vld [vmem:[%s7 + $0x108] sm:$0xff]
    %v174 = vld [vmem:[%s7 + $0x110] sm:$0xff]
    %v175 = vld [vmem:[%s7 + $0x118] sm:$0xff]
    %v176 = vld [vmem:[%s7 + $0x120] sm:$0xff]
    %v177 = vld [vmem:[%s7 + $0x128] sm:$0xff]
    %v178 = vld [vmem:[%s7 + $0x130] sm:$0xff]
    %v179 = vld [vmem:[%s7 + $0x138] sm:$0xff]
    %v180 = vld [vmem:[%s7 + $0x140] sm:$0xff]
    %v181 = vld [vmem:[%s7 + $0x148] sm:$0xff]
    %v182 = vld [vmem:[%s7 + $0x150] sm:$0xff]
    %v183 = vld [vmem:[%s7 + $0x158] sm:$0xff]
    %v184 = vld [vmem:[%s7 + $0x160] sm:$0xff]
    %v185 = vld [vmem:[%s7 + $0x168] sm:$0xff]
    %v186 = vld [vmem:[%s7 + $0x170] sm:$0xff]
    %v187 = vld [vmem:[%s7 + $0x178] sm:$0xff]
    %v188 = vld [vmem:[%s8] sm:$0xff]
    %v189 = vld [vmem:[%s8 + $0x8] sm:$0xff]
    %v190 = vld [vmem:[%s8 + $0x10] sm:$0xff]
    %v191 = vld [vmem:[%s8 + $0x18] sm:$0xff]
    %v192 = vld [vmem:[%s8 + $0x20] sm:$0xff]
    %v193 = vld [vmem:[%s8 + $0x28] sm:$0xff]
    %v194 = vld [vmem:[%s8 + $0x30] sm:$0xff]
    %v195 = vld [vmem:[%s8 + $0x38] sm:$0xff]
    %v196 = vld [vmem:[%s8 + $0x40] sm:$0xff]
    %v197 = vld [vmem:[%s8 + $0x48] sm:$0xff]
    %v198 = vld [vmem:[%s8 + $0x50] sm:$0xff]
    %v199 = vld [vmem:[%s8 + $0x58] sm:$0xff]
    %v200 = vld [vmem:[%s8 + $0x60] sm:$0xff]
    %v201 = vld [vmem:[%s8 + $0x68] sm:$0xff]
    %v202 = vld [vmem:[%s8 + $0x70] sm:$0xff]
    %v203 = vld [vmem:[%s8 + $0x78] sm:$0xff]
    %v204 = vld [vmem:[%s8 + $0x80] sm:$0xff]
    %v205 = vld [vmem:[%s8 + $0x88] sm:$0xff]
    %v206 = vld [vmem:[%s8 + $0x90] sm:$0xff]
    %v207 = vld [vmem:[%s8 + $0x98] sm:$0xff]
    %v208 = vld [vmem:[%s8 + $0xa0] sm:$0xff]
    %v209 = vld [vmem:[%s8 + $0xa8] sm:$0xff]
    %v210 = vld [vmem:[%s8 + $0xb0] sm:$0xff]
    %v211 = vld [vmem:[%s8 + $0xb8] sm:$0xff]
    %v212 = vld [vmem:[%s8 + $0xc0] sm:$0xff]
    %v213 = vld [vmem:[%s8 + $0xc8] sm:$0xff]
    %v214 = vld [vmem:[%s8 + $0xd0] sm:$0xff]
    %v215 = vld [vmem:[%s8 + $0xd8] sm:$0xff]
    %v216 = vld [vmem:[%s8 + $0xe0] sm:$0xff]
    %v217 = vld [vmem:[%s8 + $0xe8] sm:$0xff]
    %v218 = vld [vmem:[%s8 + $0xf0] sm:$0xff]
    %v219 = vld [vmem:[%s8 + $0xf8] sm:$0xff]
    %v220 = vld [vmem:[%s9] sm:$0xff]
    %v221 = vld [vmem:[%s9 + $0x8] sm:$0xff]
    %v222 = vld [vmem:[%s9 + $0x10] sm:$0xff]
    %v223 = vld [vmem:[%s9 + $0x18] sm:$0xff]
    %v224 = vld [vmem:[%s9 + $0x20] sm:$0xff]
    %v225 = vld [vmem:[%s9 + $0x28] sm:$0xff]
    %v226 = vld [vmem:[%s9 + $0x30] sm:$0xff]
    %v227 = vld [vmem:[%s9 + $0x38] sm:$0xff]
    %v228 = vld [vmem:[%s9 + $0x40] sm:$0xff]
    %v229 = vld [vmem:[%s9 + $0x48] sm:$0xff]
    %v230 = vld [vmem:[%s9 + $0x50] sm:$0xff]
    %v231 = vld [vmem:[%s9 + $0x58] sm:$0xff]
    %v232 = vld [vmem:[%s9 + $0x60] sm:$0xff]
    %v233 = vld [vmem:[%s9 + $0x68] sm:$0xff]
    %v234 = vld [vmem:[%s9 + $0x70] sm:$0xff]
    %v235 = vld [vmem:[%s9 + $0x78] sm:$0xff]
    %v236 = vld [vmem:[%s9 + $0x80] sm:$0xff]
    %v237 = vld [vmem:[%s9 + $0x88] sm:$0xff]
    %v238 = vld [vmem:[%s9 + $0x90] sm:$0xff]
    %v239 = vld [vmem:[%s9 + $0x98] sm:$0xff]
    %v240 = vld [vmem:[%s9 + $0xa0] sm:$0xff]
    %v241 = vld [vmem:[%s9 + $0xa8] sm:$0xff]
    %v242 = vld [vmem:[%s9 + $0xb0] sm:$0xff]
    %v243 = vld [vmem:[%s9 + $0xb8] sm:$0xff]
    %v244 = vld [vmem:[%s9 + $0xc0] sm:$0xff]
    %v245 = vld [vmem:[%s9 + $0xc8] sm:$0xff]
    %v246 = vld [vmem:[%s9 + $0xd0] sm:$0xff]
    %v247 = vld [vmem:[%s9 + $0xd8] sm:$0xff]
    %v248 = vld [vmem:[%s9 + $0xe0] sm:$0xff]
    %v249 = vld [vmem:[%s9 + $0xe8] sm:$0xff]
    %v250 = vld [vmem:[%s9 + $0xf0] sm:$0xff]
    %v251 = vld [vmem:[%s9 + $0xf8] sm:$0xff]
    %v252 = vld [vmem:[%s10] sm:$0x1]
    %v253 = vld [vmem:[%s10 + $0x1] sm:$0x1]
    %v254 = vld [vmem:[%s10 + $0x2] sm:$0x1]
    %v255 = vld [vmem:[%s10 + $0x3] sm:$0x1]
    %v256 = vld [vmem:[%s10 + $0x4] sm:$0x7]
    %v257 = vld [vmem:[%s10 + $0x7] sm:$0x7]
    %v258 = vld [vmem:[%s10 + $0xa] sm:$0x3]
    %v259 = vld [vmem:[%s10 + $0xc] sm:$0x1]
    %v260 = vlaneseq
    %v261 = vand.u32 %v260, 127
    %vm262 = vcmp.lt.s32.totalorder %v261, 64
    %v263 = vld [vmem:[%s0] sm:$0xf]
    %v264 = vld [vmem:[%s0 + $0x4] sm:$0xf]
    %v265 = vld [vmem:[%s0 + $0x8] sm:$0xf]
    %v266 = vld [vmem:[%s0 + $0xc] sm:$0xf]
    %v267 = vld [vmem:[%s0 + $0x10] sm:$0xf]
    %v268 = vld [vmem:[%s0 + $0x14] sm:$0xf]
    %v269 = vld [vmem:[%s0 + $0x18] sm:$0xf]
    %v270 = vld [vmem:[%s0 + $0x1c] sm:$0xf]
    %v271 = vld [vmem:[%s0 + $0x20] sm:$0xf]
    %v272 = vld [vmem:[%s0 + $0x24] sm:$0xf]
    %v273 = vld [vmem:[%s0 + $0x28] sm:$0xf]
    %v274 = vld [vmem:[%s0 + $0x2c] sm:$0xf]
    %v275 = vld [vmem:[%s0 + $0x30] sm:$0xf]
    %v276 = vld [vmem:[%s0 + $0x34] sm:$0xf]
    %v277 = vld [vmem:[%s0 + $0x38] sm:$0xf]
    %v278 = vld [vmem:[%s0 + $0x3c] sm:$0xf]
    %v279 = vld [vmem:[%s0 + $0x40] sm:$0xf]
    %v280 = vld [vmem:[%s0 + $0x44] sm:$0xf]
    %v281 = vld [vmem:[%s0 + $0x48] sm:$0xf]
    %v282 = vld [vmem:[%s0 + $0x4c] sm:$0xf]
    %v283 = vld [vmem:[%s0 + $0x50] sm:$0xf]
    %v284 = vld [vmem:[%s0 + $0x54] sm:$0xf]
    %v285 = vld [vmem:[%s0 + $0x58] sm:$0xf]
    %v286 = vld [vmem:[%s0 + $0x5c] sm:$0xf]
    %v287 = vld [vmem:[%s0 + $0x60] sm:$0xf]
    %v288 = vld [vmem:[%s0 + $0x64] sm:$0xf]
    %v289 = vld [vmem:[%s0 + $0x68] sm:$0xf]
    %v290 = vld [vmem:[%s0 + $0x6c] sm:$0xf]
    %v291 = vld [vmem:[%s0 + $0x70] sm:$0xf]
    %v292 = vld [vmem:[%s0 + $0x74] sm:$0xf]
    %v293 = vld [vmem:[%s0 + $0x78] sm:$0xf]
    %v294 = vld [vmem:[%s0 + $0x7c] sm:$0xf]
    %v295 = vld [vmem:[%s0 + $0x80] sm:$0xf]
    %v296 = vld [vmem:[%s0 + $0x84] sm:$0xf]
    %v297 = vld [vmem:[%s0 + $0x88] sm:$0xf]
    %v298 = vld [vmem:[%s0 + $0x8c] sm:$0xf]
    %v299 = vld [vmem:[%s0 + $0x90] sm:$0xf]
    %v300 = vld [vmem:[%s0 + $0x94] sm:$0xf]
    %v301 = vld [vmem:[%s0 + $0x98] sm:$0xf]
    %v302 = vld [vmem:[%s0 + $0x9c] sm:$0xf]
    %v303 = vld [vmem:[%s0 + $0xa0] sm:$0xf]
    %v304 = vld [vmem:[%s0 + $0xa4] sm:$0xf]
    %v305 = vld [vmem:[%s0 + $0xa8] sm:$0xf]
    %v306 = vld [vmem:[%s0 + $0xac] sm:$0xf]
    %v307 = vld [vmem:[%s0 + $0xb0] sm:$0xf]
    %v308 = vld [vmem:[%s0 + $0xb4] sm:$0xf]
    %v309 = vld [vmem:[%s0 + $0xb8] sm:$0xf]
    %v310 = vld [vmem:[%s0 + $0xbc] sm:$0xf]
    %v311 = vld [vmem:[%s0 + $0xc0] sm:$0xf]
    %v312 = vld [vmem:[%s0 + $0xc4] sm:$0xf]
    %v313 = vld [vmem:[%s0 + $0xc8] sm:$0xf]
    %v314 = vld [vmem:[%s0 + $0xcc] sm:$0xf]
    %v315 = vld [vmem:[%s0 + $0xd0] sm:$0xf]
    %v316 = vld [vmem:[%s0 + $0xd4] sm:$0xf]
    %v317 = vld [vmem:[%s0 + $0xd8] sm:$0xf]
    %v318 = vld [vmem:[%s0 + $0xdc] sm:$0xf]
    %v319 = vld [vmem:[%s0 + $0xe0] sm:$0xf]
    %v320 = vld [vmem:[%s0 + $0xe4] sm:$0xf]
    %v321 = vld [vmem:[%s0 + $0xe8] sm:$0xf]
    %v322 = vld [vmem:[%s0 + $0xec] sm:$0xf]
    %v323 = vld [vmem:[%s0 + $0xf0] sm:$0xf]
    %v324 = vld [vmem:[%s0 + $0xf4] sm:$0xf]
    %v325 = vld [vmem:[%s0 + $0xf8] sm:$0xf]
    %v326 = vld [vmem:[%s0 + $0xfc] sm:$0xf]
    %v327 = vld [vmem:[%s0 + $0x100] sm:$0xf]
    %v328 = vld [vmem:[%s0 + $0x104] sm:$0xf]
    %v329 = vld [vmem:[%s0 + $0x108] sm:$0xf]
    %v330 = vld [vmem:[%s0 + $0x10c] sm:$0xf]
    %v331 = vld [vmem:[%s0 + $0x110] sm:$0xf]
    %v332 = vld [vmem:[%s0 + $0x114] sm:$0xf]
    %v333 = vld [vmem:[%s0 + $0x118] sm:$0xf]
    %v334 = vld [vmem:[%s0 + $0x11c] sm:$0xf]
    %v335 = vld [vmem:[%s0 + $0x120] sm:$0xf]
    %v336 = vld [vmem:[%s0 + $0x124] sm:$0xf]
    %v337 = vld [vmem:[%s0 + $0x128] sm:$0xf]
    %v338 = vld [vmem:[%s0 + $0x12c] sm:$0xf]
    %v339 = vld [vmem:[%s0 + $0x130] sm:$0xf]
    %v340 = vld [vmem:[%s0 + $0x134] sm:$0xf]
    %v341 = vld [vmem:[%s0 + $0x138] sm:$0xf]
    %v342 = vld [vmem:[%s0 + $0x13c] sm:$0xf]
    %v343 = vld [vmem:[%s0 + $0x140] sm:$0xf]
    %v344 = vld [vmem:[%s0 + $0x144] sm:$0xf]
    %v345 = vld [vmem:[%s0 + $0x148] sm:$0xf]
    %v346 = vld [vmem:[%s0 + $0x14c] sm:$0xf]
    %v347 = vld [vmem:[%s0 + $0x150] sm:$0xf]
    %v348 = vld [vmem:[%s0 + $0x154] sm:$0xf]
    %v349 = vld [vmem:[%s0 + $0x158] sm:$0xf]
    %v350 = vld [vmem:[%s0 + $0x15c] sm:$0xf]
    %v351 = vld [vmem:[%s0 + $0x160] sm:$0xf]
    %v352 = vld [vmem:[%s0 + $0x164] sm:$0xf]
    %v353 = vld [vmem:[%s0 + $0x168] sm:$0xf]
    %v354 = vld [vmem:[%s0 + $0x16c] sm:$0xf]
    %v355 = vld [vmem:[%s0 + $0x170] sm:$0xf]
    %v356 = vld [vmem:[%s0 + $0x174] sm:$0xf]
    %v357 = vld [vmem:[%s0 + $0x178] sm:$0xf]
    %v358 = vld [vmem:[%s0 + $0x17c] sm:$0xf]
    %v359 = vld [vmem:[%s0 + $0x180] sm:$0xf]
    %v360 = vld [vmem:[%s0 + $0x184] sm:$0xf]
    %v361 = vld [vmem:[%s0 + $0x188] sm:$0xf]
    %v362 = vld [vmem:[%s0 + $0x18c] sm:$0xf]
    %v363 = vld [vmem:[%s0 + $0x190] sm:$0xf]
    %v364 = vld [vmem:[%s0 + $0x194] sm:$0xf]
    %v365 = vld [vmem:[%s0 + $0x198] sm:$0xf]
    %v366 = vld [vmem:[%s0 + $0x19c] sm:$0xf]
    %v367 = vld [vmem:[%s0 + $0x1a0] sm:$0xf]
    %v368 = vld [vmem:[%s0 + $0x1a4] sm:$0xf]
    %v369 = vld [vmem:[%s0 + $0x1a8] sm:$0xf]
    %v370 = vld [vmem:[%s0 + $0x1ac] sm:$0xf]
    %v371 = vld [vmem:[%s0 + $0x1b0] sm:$0xf]
    %v372 = vld [vmem:[%s0 + $0x1b4] sm:$0xf]
    %v373 = vld [vmem:[%s0 + $0x1b8] sm:$0xf]
    %v374 = vld [vmem:[%s0 + $0x1bc] sm:$0xf]
    %v375 = vld [vmem:[%s0 + $0x1c0] sm:$0xf]
    %v376 = vld [vmem:[%s0 + $0x1c4] sm:$0xf]
    %v377 = vld [vmem:[%s0 + $0x1c8] sm:$0xf]
    %v378 = vld [vmem:[%s0 + $0x1cc] sm:$0xf]
    %v379 = vld [vmem:[%s0 + $0x1d0] sm:$0xf]
    %v380 = vld [vmem:[%s0 + $0x1d4] sm:$0xf]
    %v381 = vld [vmem:[%s0 + $0x1d8] sm:$0xf]
    %v382 = vld [vmem:[%s0 + $0x1dc] sm:$0xf]
    %v383 = vld [vmem:[%s0 + $0x1e0] sm:$0xf]
    %v384 = vld [vmem:[%s0 + $0x1e4] sm:$0xf]
    %v385 = vld [vmem:[%s0 + $0x1e8] sm:$0xf]
    %v386 = vld [vmem:[%s0 + $0x1ec] sm:$0xf]
    %v387 = vld [vmem:[%s0 + $0x1f0] sm:$0xf]
    %v388 = vld [vmem:[%s0 + $0x1f4] sm:$0xf]
    %v389 = vld [vmem:[%s0 + $0x1f8] sm:$0xf]
    %v390 = vld [vmem:[%s0 + $0x1fc] sm:$0xf]
    %v519 = vunpack.c.l.b16 %v263
    %v520 = vunpack.c.l.b16 %v264
    %v521 = vunpack.c.l.b16 %v265
    %v522 = vunpack.c.l.b16 %v266
    %v523 = vunpack.c.l.b16 %v267
    %v524 = vunpack.c.l.b16 %v268
    %v525 = vunpack.c.l.b16 %v269
    %v526 = vunpack.c.l.b16 %v270
    %v527 = vunpack.c.l.b16 %v271
    %v528 = vunpack.c.l.b16 %v272
    %v529 = vunpack.c.l.b16 %v273
    %v530 = vunpack.c.l.b16 %v274
    %v531 = vunpack.c.l.b16 %v275
    %v532 = vunpack.c.l.b16 %v276
    %v533 = vunpack.c.l.b16 %v277
    %v534 = vunpack.c.l.b16 %v278
    %v535 = vunpack.c.l.b16 %v279
    %v536 = vunpack.c.l.b16 %v280
    %v537 = vunpack.c.l.b16 %v281
    %v538 = vunpack.c.l.b16 %v282
    %v539 = vunpack.c.l.b16 %v283
    %v540 = vunpack.c.l.b16 %v284
    %v541 = vunpack.c.l.b16 %v285
    %v542 = vunpack.c.l.b16 %v286
    %v543 = vunpack.c.l.b16 %v287
    %v544 = vunpack.c.l.b16 %v288
    %v545 = vunpack.c.l.b16 %v289
    %v546 = vunpack.c.l.b16 %v290
    %v547 = vunpack.c.l.b16 %v291
    %v548 = vunpack.c.l.b16 %v292
    %v549 = vunpack.c.l.b16 %v293
    %v550 = vunpack.c.l.b16 %v294
    %v551 = vunpack.c.l.b16 %v295
    %v552 = vunpack.c.l.b16 %v296
    %v553 = vunpack.c.l.b16 %v297
    %v554 = vunpack.c.l.b16 %v298
    %v555 = vunpack.c.l.b16 %v299
    %v556 = vunpack.c.l.b16 %v300
    %v557 = vunpack.c.l.b16 %v301
    %v558 = vunpack.c.l.b16 %v302
    %v559 = vunpack.c.l.b16 %v303
    %v560 = vunpack.c.l.b16 %v304
    %v561 = vunpack.c.l.b16 %v305
    %v562 = vunpack.c.l.b16 %v306
    %v563 = vunpack.c.l.b16 %v307
    %v564 = vunpack.c.l.b16 %v308
    %v565 = vunpack.c.l.b16 %v309
    %v566 = vunpack.c.l.b16 %v310
    %v567 = vunpack.c.l.b16 %v311
    %v568 = vunpack.c.l.b16 %v312
    %v569 = vunpack.c.l.b16 %v313
    %v570 = vunpack.c.l.b16 %v314
    %v571 = vunpack.c.l.b16 %v315
    %v572 = vunpack.c.l.b16 %v316
    %v573 = vunpack.c.l.b16 %v317
    %v574 = vunpack.c.l.b16 %v318
    %v575 = vunpack.c.l.b16 %v319
    %v576 = vunpack.c.l.b16 %v320
    %v577 = vunpack.c.l.b16 %v321
    %v578 = vunpack.c.l.b16 %v322
    %v579 = vunpack.c.l.b16 %v323
    %v580 = vunpack.c.l.b16 %v324
    %v581 = vunpack.c.l.b16 %v325
    %v582 = vunpack.c.l.b16 %v326
    %v583 = vunpack.c.l.b16 %v327
    %v584 = vunpack.c.l.b16 %v328
    %v585 = vunpack.c.l.b16 %v329
    %v586 = vunpack.c.l.b16 %v330
    %v587 = vunpack.c.l.b16 %v331
    %v588 = vunpack.c.l.b16 %v332
    %v589 = vunpack.c.l.b16 %v333
    %v590 = vunpack.c.l.b16 %v334
    %v591 = vunpack.c.l.b16 %v335
    %v592 = vunpack.c.l.b16 %v336
    %v593 = vunpack.c.l.b16 %v337
    %v594 = vunpack.c.l.b16 %v338
    %v595 = vunpack.c.l.b16 %v339
    %v596 = vunpack.c.l.b16 %v340
    %v597 = vunpack.c.l.b16 %v341
    %v598 = vunpack.c.l.b16 %v342
    %v599 = vunpack.c.l.b16 %v343
    %v600 = vunpack.c.l.b16 %v344
    %v601 = vunpack.c.l.b16 %v345
    %v602 = vunpack.c.l.b16 %v346
    %v603 = vunpack.c.l.b16 %v347
    %v604 = vunpack.c.l.b16 %v348
    %v605 = vunpack.c.l.b16 %v349
    %v606 = vunpack.c.l.b16 %v350
    %v607 = vunpack.c.l.b16 %v351
    %v608 = vunpack.c.l.b16 %v352
    %v609 = vunpack.c.l.b16 %v353
    %v610 = vunpack.c.l.b16 %v354
    %v611 = vunpack.c.l.b16 %v355
    %v612 = vunpack.c.l.b16 %v356
    %v613 = vunpack.c.l.b16 %v357
    %v614 = vunpack.c.l.b16 %v358
    %v615 = vunpack.c.l.b16 %v359
    %v616 = vunpack.c.l.b16 %v360
    %v617 = vunpack.c.l.b16 %v361
    %v618 = vunpack.c.l.b16 %v362
    %v619 = vunpack.c.l.b16 %v363
    %v620 = vunpack.c.l.b16 %v364
    %v621 = vunpack.c.l.b16 %v365
    %v622 = vunpack.c.l.b16 %v366
    %v623 = vunpack.c.l.b16 %v367
    %v624 = vunpack.c.l.b16 %v368
    %v625 = vunpack.c.l.b16 %v369
    %v626 = vunpack.c.l.b16 %v370
    %v627 = vunpack.c.l.b16 %v371
    %v628 = vunpack.c.l.b16 %v372
    %v629 = vunpack.c.l.b16 %v373
    %v630 = vunpack.c.l.b16 %v374
    %v631 = vunpack.c.l.b16 %v375
    %v632 = vunpack.c.l.b16 %v376
    %v633 = vunpack.c.l.b16 %v377
    %v634 = vunpack.c.l.b16 %v378
    %v635 = vunpack.c.l.b16 %v379
    %v636 = vunpack.c.l.b16 %v380
    %v637 = vunpack.c.l.b16 %v381
    %v638 = vunpack.c.l.b16 %v382
    %v639 = vunpack.c.l.b16 %v383
    %v640 = vunpack.c.l.b16 %v384
    %v641 = vunpack.c.l.b16 %v385
    %v642 = vunpack.c.l.b16 %v386
    %v643 = vunpack.c.l.b16 %v387
    %v644 = vunpack.c.l.b16 %v388
    %v645 = vunpack.c.l.b16 %v389
    %v646 = vunpack.c.l.b16 %v390
    %v647 = vpack.c.b16 %v520, %v519
    %v648 = vpack.c.b16 %v522, %v521
    %v649 = vpack.c.b16 %v524, %v523
    %v650 = vpack.c.b16 %v526, %v525
    %v651 = vpack.c.b16 %v528, %v527
    %v652 = vpack.c.b16 %v530, %v529
    %v653 = vpack.c.b16 %v532, %v531
    %v654 = vpack.c.b16 %v534, %v533
    %v655 = vpack.c.b16 %v536, %v535
    %v656 = vpack.c.b16 %v538, %v537
    %v657 = vpack.c.b16 %v540, %v539
    %v658 = vpack.c.b16 %v542, %v541
    %v659 = vpack.c.b16 %v544, %v543
    %v660 = vpack.c.b16 %v546, %v545
    %v661 = vpack.c.b16 %v548, %v547
    %v662 = vpack.c.b16 %v550, %v549
    %v663 = vpack.c.b16 %v552, %v551
    %v664 = vpack.c.b16 %v554, %v553
    %v665 = vpack.c.b16 %v556, %v555
    %v666 = vpack.c.b16 %v558, %v557
    %v667 = vpack.c.b16 %v560, %v559
    %v668 = vpack.c.b16 %v562, %v561
    %v669 = vpack.c.b16 %v564, %v563
    %v670 = vpack.c.b16 %v566, %v565
    %v671 = vpack.c.b16 %v568, %v567
    %v672 = vpack.c.b16 %v570, %v569
    %v673 = vpack.c.b16 %v572, %v571
    %v674 = vpack.c.b16 %v574, %v573
    %v675 = vpack.c.b16 %v576, %v575
    %v676 = vpack.c.b16 %v578, %v577
    %v677 = vpack.c.b16 %v580, %v579
    %v678 = vpack.c.b16 %v582, %v581
    %v679 = vpack.c.b16 %v584, %v583
    %v680 = vpack.c.b16 %v586, %v585
    %v681 = vpack.c.b16 %v588, %v587
    %v682 = vpack.c.b16 %v590, %v589
    %v683 = vpack.c.b16 %v592, %v591
    %v684 = vpack.c.b16 %v594, %v593
    %v685 = vpack.c.b16 %v596, %v595
    %v686 = vpack.c.b16 %v598, %v597
    %v687 = vpack.c.b16 %v600, %v599
    %v688 = vpack.c.b16 %v602, %v601
    %v689 = vpack.c.b16 %v604, %v603
    %v690 = vpack.c.b16 %v606, %v605
    %v691 = vpack.c.b16 %v608, %v607
    %v692 = vpack.c.b16 %v610, %v609
    %v693 = vpack.c.b16 %v612, %v611
    %v694 = vpack.c.b16 %v614, %v613
    %v695 = vpack.c.b16 %v616, %v615
    %v696 = vpack.c.b16 %v618, %v617
    %v697 = vpack.c.b16 %v620, %v619
    %v698 = vpack.c.b16 %v622, %v621
    %v699 = vpack.c.b16 %v624, %v623
    %v700 = vpack.c.b16 %v626, %v625
    %v701 = vpack.c.b16 %v628, %v627
    %v702 = vpack.c.b16 %v630, %v629
    %v703 = vpack.c.b16 %v632, %v631
    %v704 = vpack.c.b16 %v634, %v633
    %v705 = vpack.c.b16 %v636, %v635
    %v706 = vpack.c.b16 %v638, %v637
    %v707 = vpack.c.b16 %v640, %v639
    %v708 = vpack.c.b16 %v642, %v641
    %v709 = vpack.c.b16 %v644, %v643
    %v710 = vpack.c.b16 %v646, %v645
    %v719 = vunpack.c.l.b16 %v100
    %v720 = vunpack.c.l.b16 %v101
    %v721 = vunpack.c.l.b16 %v102
    %v722 = vunpack.c.l.b16 %v103
    %v723 = vunpack.c.l.b16 %v104
    %v724 = vunpack.c.l.b16 %v105
    %v725 = vunpack.c.l.b16 %v106
    %v726 = vunpack.c.l.b16 %v107
    %v727 = vpack.c.b16 %v720, %v719
    %v728 = vpack.c.b16 %v722, %v721
    %v729 = vpack.c.b16 %v724, %v723
    %v730 = vpack.c.b16 %v726, %v725
    %vm735 = vcmask 523264
    %v737 = vsel %vm735, %v647, 0
    %v740 = vsel %vm735, %v648, 0
    %v743 = vsel %vm735, %v649, 0
    %v746 = vsel %vm735, %v650, 0
    %v749 = vsel %vm735, %v651, 0
    %v752 = vsel %vm735, %v652, 0
    %v755 = vsel %vm735, %v653, 0
    %v758 = vsel %vm735, %v654, 0
    %v761 = vsel %vm735, %v655, 0
    %v764 = vsel %vm735, %v656, 0
    %v767 = vsel %vm735, %v657, 0
    %v770 = vsel %vm735, %v658, 0
    %v773 = vsel %vm735, %v659, 0
    %v776 = vsel %vm735, %v660, 0
    %v779 = vsel %vm735, %v661, 0
    %v782 = vsel %vm735, %v662, 0
    %v785 = vsel %vm735, %v663, 0
    %v788 = vsel %vm735, %v664, 0
    %v791 = vsel %vm735, %v665, 0
    %v794 = vsel %vm735, %v666, 0
    %v797 = vsel %vm735, %v667, 0
    %v800 = vsel %vm735, %v668, 0
    %v803 = vsel %vm735, %v669, 0
    %v806 = vsel %vm735, %v670, 0
    %v809 = vsel %vm735, %v671, 0
    %v812 = vsel %vm735, %v672, 0
    %v815 = vsel %vm735, %v673, 0
    %v818 = vsel %vm735, %v674, 0
    %v821 = vsel %vm735, %v675, 0
    %v824 = vsel %vm735, %v676, 0
    %v827 = vsel %vm735, %v677, 0
    %v830 = vsel %vm735, %v678, 0
    %v833 = vsel %vm735, %v679, 0
    %v836 = vsel %vm735, %v680, 0
    %v839 = vsel %vm735, %v681, 0
    %v842 = vsel %vm735, %v682, 0
    %v845 = vsel %vm735, %v683, 0
    %v848 = vsel %vm735, %v684, 0
    %v851 = vsel %vm735, %v685, 0
    %v854 = vsel %vm735, %v686, 0
    %v857 = vsel %vm735, %v687, 0
    %v860 = vsel %vm735, %v688, 0
    %v863 = vsel %vm735, %v689, 0
    %v866 = vsel %vm735, %v690, 0
    %v869 = vsel %vm735, %v691, 0
    %v872 = vsel %vm735, %v692, 0
    %v875 = vsel %vm735, %v693, 0
    %v878 = vsel %vm735, %v694, 0
    %v881 = vsel %vm735, %v695, 0
    %v884 = vsel %vm735, %v696, 0
    %v887 = vsel %vm735, %v697, 0
    %v890 = vsel %vm735, %v698, 0
    %v893 = vsel %vm735, %v699, 0
    %v896 = vsel %vm735, %v700, 0
    %v899 = vsel %vm735, %v701, 0
    %v902 = vsel %vm735, %v702, 0
    %v905 = vsel %vm735, %v703, 0
    %v908 = vsel %vm735, %v704, 0
    %v911 = vsel %vm735, %v705, 0
    %v914 = vsel %vm735, %v706, 0
    %v917 = vsel %vm735, %v707, 0
    %v920 = vsel %vm735, %v708, 0
    %v923 = vsel %vm735, %v709, 0
    %v926 = vsel %vm735, %v710, 0
    %928 = vmatprep.subr.bf16.mxu0 0
    %929 = vmatpush1.bf16.msra.mxu0 %v727
    %930 = vmatprep.subr.bf16.mxu0 0
    %931 = vmatpush1.bf16.msra.mxu0 %v728
    %932 = vmatprep.subr.bf16.mxu0 0
    %933 = vmatpush1.bf16.msra.mxu0 %v729
    %934 = vmatprep.subr.bf16.mxu0 0
    %935 = vmatpush1.bf16.msra.mxu0 %v730
    %936 = vmatprep.subr.bf16.mxu0 0
    %937 = vmatpush1.bf16.msra.mxu0 0
    %938 = vmatprep.subr.bf16.mxu0 0
    %939 = vmatpush1.bf16.msra.mxu0 0
    %940 = vmatprep.subr.bf16.mxu0 0
    %941 = vmatpush1.bf16.msra.mxu0 0
    %942 = vmatprep.subr.bf16.mxu0 0
    %943 = vmatpush1.bf16.msra.mxu0 0
    %944 = vmatprep.subr.bf16.mxu0 0
    %945 = vmatpush1.bf16.msra.mxu0 0
    %946 = vmatprep.subr.bf16.mxu0 0
    %947 = vmatpush1.bf16.msra.mxu0 0
    %948 = vmatprep.subr.bf16.mxu0 0
    %949 = vmatpush1.bf16.msra.mxu0 0
    %950 = vmatprep.subr.bf16.mxu0 0
    %951 = vmatpush1.bf16.msra.mxu0 0
    %952 = vmatprep.subr.bf16.mxu0 0
    %953 = vmatpush1.bf16.msra.mxu0 0
    %954 = vmatprep.subr.bf16.mxu0 0
    %955 = vmatpush1.bf16.msra.mxu0 0
    %956 = vmatprep.subr.bf16.mxu0 0
    %957 = vmatpush1.bf16.msra.mxu0 0
    %958 = vmatprep.subr.bf16.mxu0 0
    %959 = vmatpush1.bf16.msra.mxu0 0
    %960 = vmatprep.mubr.bf16.mxu0 0
    %961 = vmatmul.mubr.bf16.gmra.mrb[0].mxu0 %v737
    %v962 = vpop.f32.mrb[0].mxu0
    %v963 = vadd.f32 0.0, %v962
    %v964 = vpop.f32.mrb[0].mxu0
    %v965 = vpop.f32.mrb[0].mxu0
    %v966 = vadd.f32 0.0, %v965
    %v967 = vpop.f32.mrb[0].mxu0
    %968 = vmatprep.mubr.bf16.mxu0 0
    %969 = vmatmul.mubr.bf16.gmra.mrb[0].mxu0 %v740
    %v970 = vpop.f32.mrb[0].mxu0
    %v971 = vadd.f32 0.0, %v970
    %v972 = vpop.f32.mrb[0].mxu0
    %v973 = vpop.f32.mrb[0].mxu0
    %v974 = vadd.f32 0.0, %v973
    %v975 = vpop.f32.mrb[0].mxu0
    %976 = vmatprep.mubr.bf16.mxu0 0
    %977 = vmatmul.mubr.bf16.gmra.mrb[0].mxu0 %v743
    %v978 = vpop.f32.mrb[0].mxu0
    %v979 = vadd.f32 0.0, %v978
    %v980 = vpop.f32.mrb[0].mxu0
    %v981 = vpop.f32.mrb[0].mxu0
    %v982 = vadd.f32 0.0, %v981
    %v983 = vpop.f32.mrb[0].mxu0
    %984 = vmatprep.mubr.bf16.mxu0 0
    %985 = vmatmul.mubr.bf16.gmra.mrb[0].mxu0 %v746
    %v986 = vpop.f32.mrb[0].mxu0
    %v987 = vadd.f32 0.0, %v986
    %v988 = vpop.f32.mrb[0].mxu0
    %v989 = vpop.f32.mrb[0].mxu0
    %v990 = vadd.f32 0.0, %v989
    %v991 = vpop.f32.mrb[0].mxu0
    %992 = vmatprep.mubr.bf16.mxu0 0
    %993 = vmatmul.mubr.bf16.gmra.mrb[0].mxu0 %v749
    %v994 = vpop.f32.mrb[0].mxu0
    %v995 = vadd.f32 0.0, %v994
    %v996 = vpop.f32.mrb[0].mxu0
    %v997 = vpop.f32.mrb[0].mxu0
    %v998 = vadd.f32 0.0, %v997
    %v999 = vpop.f32.mrb[0].mxu0
    %1000 = vmatprep.mubr.bf16.mxu0 0
    %1001 = vmatmul.mubr.bf16.gmra.mrb[0].mxu0 %v752
    %v1002 = vpop.f32.mrb[0].mxu0
    %v1003 = vadd.f32 0.0, %v1002
    %v1004 = vpop.f32.mrb[0].mxu0
    %v1005 = vpop.f32.mrb[0].mxu0
    %v1006 = vadd.f32 0.0, %v1005
    %v1007 = vpop.f32.mrb[0].mxu0
    %1008 = vmatprep.mubr.bf16.mxu0 0
    %1009 = vmatmul.mubr.bf16.gmra.mrb[0].mxu0 %v755
    %v1010 = vpop.f32.mrb[0].mxu0
    %v1011 = vadd.f32 0.0, %v1010
    %v1012 = vpop.f32.mrb[0].mxu0
    %v1013 = vpop.f32.mrb[0].mxu0
    %v1014 = vadd.f32 0.0, %v1013
    %v1015 = vpop.f32.mrb[0].mxu0
    %1016 = vmatprep.mubr.bf16.mxu0 0
    %1017 = vmatmul.mubr.bf16.gmra.mrb[0].mxu0 %v758
    %v1018 = vpop.f32.mrb[0].mxu0
    %v1019 = vadd.f32 0.0, %v1018
    %v1020 = vpop.f32.mrb[0].mxu0
    %v1021 = vpop.f32.mrb[0].mxu0
    %v1022 = vadd.f32 0.0, %v1021
    %v1023 = vpop.f32.mrb[0].mxu0
    %1024 = vmatprep.mubr.bf16.mxu0 0
    %1025 = vmatmul.mubr.bf16.gmra.mrb[0].mxu0 %v761
    %v1026 = vpop.f32.mrb[0].mxu0
    %v1027 = vadd.f32 0.0, %v1026
    %v1028 = vpop.f32.mrb[0].mxu0
    %v1029 = vpop.f32.mrb[0].mxu0
    %v1030 = vadd.f32 0.0, %v1029
    %v1031 = vpop.f32.mrb[0].mxu0
    %1032 = vmatprep.mubr.bf16.mxu0 0
    %1033 = vmatmul.mubr.bf16.gmra.mrb[0].mxu0 %v764
    %v1034 = vpop.f32.mrb[0].mxu0
    %v1035 = vadd.f32 0.0, %v1034
    %v1036 = vpop.f32.mrb[0].mxu0
    %v1037 = vpop.f32.mrb[0].mxu0
    %v1038 = vadd.f32 0.0, %v1037
    %v1039 = vpop.f32.mrb[0].mxu0
    %1040 = vmatprep.mubr.bf16.mxu0 0
    %1041 = vmatmul.mubr.bf16.gmra.mrb[0].mxu0 %v767
    %v1042 = vpop.f32.mrb[0].mxu0
    %v1043 = vadd.f32 0.0, %v1042
    %v1044 = vpop.f32.mrb[0].mxu0
    %v1045 = vpop.f32.mrb[0].mxu0
    %v1046 = vadd.f32 0.0, %v1045
    %v1047 = vpop.f32.mrb[0].mxu0
    %1048 = vmatprep.mubr.bf16.mxu0 0
    %1049 = vmatmul.mubr.bf16.gmra.mrb[0].mxu0 %v770
    %v1050 = vpop.f32.mrb[0].mxu0
    %v1051 = vadd.f32 0.0, %v1050
    %v1052 = vpop.f32.mrb[0].mxu0
    %v1053 = vpop.f32.mrb[0].mxu0
    %v1054 = vadd.f32 0.0, %v1053
    %v1055 = vpop.f32.mrb[0].mxu0
    %1056 = vmatprep.mubr.bf16.mxu0 0
    %1057 = vmatmul.mubr.bf16.gmra.mrb[0].mxu0 %v773
    %v1058 = vpop.f32.mrb[0].mxu0
    %v1059 = vadd.f32 0.0, %v1058
    %v1060 = vpop.f32.mrb[0].mxu0
    %v1061 = vpop.f32.mrb[0].mxu0
    %v1062 = vadd.f32 0.0, %v1061
    %v1063 = vpop.f32.mrb[0].mxu0
    %1064 = vmatprep.mubr.bf16.mxu0 0
    %1065 = vmatmul.mubr.bf16.gmra.mrb[0].mxu0 %v776
    %v1066 = vpop.f32.mrb[0].mxu0
    %v1067 = vadd.f32 0.0, %v1066
    %v1068 = vpop.f32.mrb[0].mxu0
    %v1069 = vpop.f32.mrb[0].mxu0
    %v1070 = vadd.f32 0.0, %v1069
    %v1071 = vpop.f32.mrb[0].mxu0
    %1072 = vmatprep.mubr.bf16.mxu0 0
    %1073 = vmatmul.mubr.bf16.gmra.mrb[0].mxu0 %v779
    %v1074 = vpop.f32.mrb[0].mxu0
    %v1075 = vadd.f32 0.0, %v1074
    %v1076 = vpop.f32.mrb[0].mxu0
    %v1077 = vpop.f32.mrb[0].mxu0
    %v1078 = vadd.f32 0.0, %v1077
    %v1079 = vpop.f32.mrb[0].mxu0
    %1080 = vmatprep.mubr.bf16.mxu0 0
    %1081 = vmatmul.mubr.bf16.gmra.mrb[0].mxu0 %v782
    %v1082 = vpop.f32.mrb[0].mxu0
    %v1083 = vadd.f32 0.0, %v1082
    %v1084 = vpop.f32.mrb[0].mxu0
    %v1085 = vpop.f32.mrb[0].mxu0
    %v1086 = vadd.f32 0.0, %v1085
    %v1087 = vpop.f32.mrb[0].mxu0
    %1088 = vmatprep.mubr.bf16.mxu0 0
    %1089 = vmatmul.mubr.bf16.gmra.mrb[0].mxu0 %v785
    %v1090 = vpop.f32.mrb[0].mxu0
    %v1091 = vadd.f32 0.0, %v1090
    %v1092 = vpop.f32.mrb[0].mxu0
    %v1093 = vpop.f32.mrb[0].mxu0
    %v1094 = vadd.f32 0.0, %v1093
    %v1095 = vpop.f32.mrb[0].mxu0
    %1096 = vmatprep.mubr.bf16.mxu0 0
    %1097 = vmatmul.mubr.bf16.gmra.mrb[0].mxu0 %v788
    %v1098 = vpop.f32.mrb[0].mxu0
    %v1099 = vadd.f32 0.0, %v1098
    %v1100 = vpop.f32.mrb[0].mxu0
    %v1101 = vpop.f32.mrb[0].mxu0
    %v1102 = vadd.f32 0.0, %v1101
    %v1103 = vpop.f32.mrb[0].mxu0
    %1104 = vmatprep.mubr.bf16.mxu0 0
    %1105 = vmatmul.mubr.bf16.gmra.mrb[0].mxu0 %v791
    %v1106 = vpop.f32.mrb[0].mxu0
    %v1107 = vadd.f32 0.0, %v1106
    %v1108 = vpop.f32.mrb[0].mxu0
    %v1109 = vpop.f32.mrb[0].mxu0
    %v1110 = vadd.f32 0.0, %v1109
    %v1111 = vpop.f32.mrb[0].mxu0
    %1112 = vmatprep.mubr.bf16.mxu0 0
    %1113 = vmatmul.mubr.bf16.gmra.mrb[0].mxu0 %v794
    %v1114 = vpop.f32.mrb[0].mxu0
    %v1115 = vadd.f32 0.0, %v1114
    %v1116 = vpop.f32.mrb[0].mxu0
    %v1117 = vpop.f32.mrb[0].mxu0
    %v1118 = vadd.f32 0.0, %v1117
    %v1119 = vpop.f32.mrb[0].mxu0
    %1120 = vmatprep.mubr.bf16.mxu0 0
    %1121 = vmatmul.mubr.bf16.gmra.mrb[0].mxu0 %v797
    %v1122 = vpop.f32.mrb[0].mxu0
    %v1123 = vadd.f32 0.0, %v1122
    %v1124 = vpop.f32.mrb[0].mxu0
    %v1125 = vpop.f32.mrb[0].mxu0
    %v1126 = vadd.f32 0.0, %v1125
    %v1127 = vpop.f32.mrb[0].mxu0
    %1128 = vmatprep.mubr.bf16.mxu0 0
    %1129 = vmatmul.mubr.bf16.gmra.mrb[0].mxu0 %v800
    %v1130 = vpop.f32.mrb[0].mxu0
    %v1131 = vadd.f32 0.0, %v1130
    %v1132 = vpop.f32.mrb[0].mxu0
    %v1133 = vpop.f32.mrb[0].mxu0
    %v1134 = vadd.f32 0.0, %v1133
    %v1135 = vpop.f32.mrb[0].mxu0
    %1136 = vmatprep.mubr.bf16.mxu0 0
    %1137 = vmatmul.mubr.bf16.gmra.mrb[0].mxu0 %v803
    %v1138 = vpop.f32.mrb[0].mxu0
    %v1139 = vadd.f32 0.0, %v1138
    %v1140 = vpop.f32.mrb[0].mxu0
    %v1141 = vpop.f32.mrb[0].mxu0
    %v1142 = vadd.f32 0.0, %v1141
    %v1143 = vpop.f32.mrb[0].mxu0
    %1144 = vmatprep.mubr.bf16.mxu0 0
    %1145 = vmatmul.mubr.bf16.gmra.mrb[0].mxu0 %v806
    %v1146 = vpop.f32.mrb[0].mxu0
    %v1147 = vadd.f32 0.0, %v1146
    %v1148 = vpop.f32.mrb[0].mxu0
    %v1149 = vpop.f32.mrb[0].mxu0
    %v1150 = vadd.f32 0.0, %v1149
    %v1151 = vpop.f32.mrb[0].mxu0
    %1152 = vmatprep.mubr.bf16.mxu0 0
    %1153 = vmatmul.mubr.bf16.gmra.mrb[0].mxu0 %v809
    %v1154 = vpop.f32.mrb[0].mxu0
    %v1155 = vadd.f32 0.0, %v1154
    %v1156 = vpop.f32.mrb[0].mxu0
    %v1157 = vpop.f32.mrb[0].mxu0
    %v1158 = vadd.f32 0.0, %v1157
    %v1159 = vpop.f32.mrb[0].mxu0
    %1160 = vmatprep.mubr.bf16.mxu0 0
    %1161 = vmatmul.mubr.bf16.gmra.mrb[0].mxu0 %v812
    %v1162 = vpop.f32.mrb[0].mxu0
    %v1163 = vadd.f32 0.0, %v1162
    %v1164 = vpop.f32.mrb[0].mxu0
    %v1165 = vpop.f32.mrb[0].mxu0
    %v1166 = vadd.f32 0.0, %v1165
    %v1167 = vpop.f32.mrb[0].mxu0
    %1168 = vmatprep.mubr.bf16.mxu0 0
    %1169 = vmatmul.mubr.bf16.gmra.mrb[0].mxu0 %v815
    %v1170 = vpop.f32.mrb[0].mxu0
    %v1171 = vadd.f32 0.0, %v1170
    %v1172 = vpop.f32.mrb[0].mxu0
    %v1173 = vpop.f32.mrb[0].mxu0
    %v1174 = vadd.f32 0.0, %v1173
    %v1175 = vpop.f32.mrb[0].mxu0
    %1176 = vmatprep.mubr.bf16.mxu0 0
    %1177 = vmatmul.mubr.bf16.gmra.mrb[0].mxu0 %v818
    %v1178 = vpop.f32.mrb[0].mxu0
    %v1179 = vadd.f32 0.0, %v1178
    %v1180 = vpop.f32.mrb[0].mxu0
    %v1181 = vpop.f32.mrb[0].mxu0
    %v1182 = vadd.f32 0.0, %v1181
    %v1183 = vpop.f32.mrb[0].mxu0
    %1184 = vmatprep.mubr.bf16.mxu0 0
    %1185 = vmatmul.mubr.bf16.gmra.mrb[0].mxu0 %v821
    %v1186 = vpop.f32.mrb[0].mxu0
    %v1187 = vadd.f32 0.0, %v1186
    %v1188 = vpop.f32.mrb[0].mxu0
    %v1189 = vpop.f32.mrb[0].mxu0
    %v1190 = vadd.f32 0.0, %v1189
    %v1191 = vpop.f32.mrb[0].mxu0
    %1192 = vmatprep.mubr.bf16.mxu0 0
    %1193 = vmatmul.mubr.bf16.gmra.mrb[0].mxu0 %v824
    %v1194 = vpop.f32.mrb[0].mxu0
    %v1195 = vadd.f32 0.0, %v1194
    %v1196 = vpop.f32.mrb[0].mxu0
    %v1197 = vpop.f32.mrb[0].mxu0
    %v1198 = vadd.f32 0.0, %v1197
    %v1199 = vpop.f32.mrb[0].mxu0
    %1200 = vmatprep.mubr.bf16.mxu0 0
    %1201 = vmatmul.mubr.bf16.gmra.mrb[0].mxu0 %v827
    %v1202 = vpop.f32.mrb[0].mxu0
    %v1203 = vadd.f32 0.0, %v1202
    %v1204 = vpop.f32.mrb[0].mxu0
    %v1205 = vpop.f32.mrb[0].mxu0
    %v1206 = vadd.f32 0.0, %v1205
    %v1207 = vpop.f32.mrb[0].mxu0
    %1208 = vmatprep.mubr.bf16.mxu0 0
    %1209 = vmatmul.mubr.bf16.gmra.mrb[0].mxu0 %v830
    %v1210 = vpop.f32.mrb[0].mxu0
    %v1211 = vadd.f32 0.0, %v1210
    %v1212 = vpop.f32.mrb[0].mxu0
    %v1213 = vpop.f32.mrb[0].mxu0
    %v1214 = vadd.f32 0.0, %v1213
    %v1215 = vpop.f32.mrb[0].mxu0
    %1216 = vmatprep.mubr.bf16.mxu0 0
    %1217 = vmatmul.mubr.bf16.gmra.mrb[0].mxu0 %v833
    %v1218 = vpop.f32.mrb[0].mxu0
    %v1219 = vadd.f32 0.0, %v1218
    %v1220 = vpop.f32.mrb[0].mxu0
    %v1221 = vpop.f32.mrb[0].mxu0
    %v1222 = vadd.f32 0.0, %v1221
    %v1223 = vpop.f32.mrb[0].mxu0
    %1224 = vmatprep.mubr.bf16.mxu0 0
    %1225 = vmatmul.mubr.bf16.gmra.mrb[0].mxu0 %v836
    %v1226 = vpop.f32.mrb[0].mxu0
    %v1227 = vadd.f32 0.0, %v1226
    %v1228 = vpop.f32.mrb[0].mxu0
    %v1229 = vpop.f32.mrb[0].mxu0
    %v1230 = vadd.f32 0.0, %v1229
    %v1231 = vpop.f32.mrb[0].mxu0
    %1232 = vmatprep.mubr.bf16.mxu0 0
    %1233 = vmatmul.mubr.bf16.gmra.mrb[0].mxu0 %v839
    %v1234 = vpop.f32.mrb[0].mxu0
    %v1235 = vadd.f32 0.0, %v1234
    %v1236 = vpop.f32.mrb[0].mxu0
    %v1237 = vpop.f32.mrb[0].mxu0
    %v1238 = vadd.f32 0.0, %v1237
    %v1239 = vpop.f32.mrb[0].mxu0
    %1240 = vmatprep.mubr.bf16.mxu0 0
    %1241 = vmatmul.mubr.bf16.gmra.mrb[0].mxu0 %v842
    %v1242 = vpop.f32.mrb[0].mxu0
    %v1243 = vadd.f32 0.0, %v1242
    %v1244 = vpop.f32.mrb[0].mxu0
    %v1245 = vpop.f32.mrb[0].mxu0
    %v1246 = vadd.f32 0.0, %v1245
    %v1247 = vpop.f32.mrb[0].mxu0
    %1248 = vmatprep.mubr.bf16.mxu0 0
    %1249 = vmatmul.mubr.bf16.gmra.mrb[0].mxu0 %v845
    %v1250 = vpop.f32.mrb[0].mxu0
    %v1251 = vadd.f32 0.0, %v1250
    %v1252 = vpop.f32.mrb[0].mxu0
    %v1253 = vpop.f32.mrb[0].mxu0
    %v1254 = vadd.f32 0.0, %v1253
    %v1255 = vpop.f32.mrb[0].mxu0
    %1256 = vmatprep.mubr.bf16.mxu0 0
    %1257 = vmatmul.mubr.bf16.gmra.mrb[0].mxu0 %v848
    %v1258 = vpop.f32.mrb[0].mxu0
    %v1259 = vadd.f32 0.0, %v1258
    %v1260 = vpop.f32.mrb[0].mxu0
    %v1261 = vpop.f32.mrb[0].mxu0
    %v1262 = vadd.f32 0.0, %v1261
    %v1263 = vpop.f32.mrb[0].mxu0
    %1264 = vmatprep.mubr.bf16.mxu0 0
    %1265 = vmatmul.mubr.bf16.gmra.mrb[0].mxu0 %v851
    %v1266 = vpop.f32.mrb[0].mxu0
    %v1267 = vadd.f32 0.0, %v1266
    %v1268 = vpop.f32.mrb[0].mxu0
    %v1269 = vpop.f32.mrb[0].mxu0
    %v1270 = vadd.f32 0.0, %v1269
    %v1271 = vpop.f32.mrb[0].mxu0
    %1272 = vmatprep.mubr.bf16.mxu0 0
    %1273 = vmatmul.mubr.bf16.gmra.mrb[0].mxu0 %v854
    %v1274 = vpop.f32.mrb[0].mxu0
    %v1275 = vadd.f32 0.0, %v1274
    %v1276 = vpop.f32.mrb[0].mxu0
    %v1277 = vpop.f32.mrb[0].mxu0
    %v1278 = vadd.f32 0.0, %v1277
    %v1279 = vpop.f32.mrb[0].mxu0
    %1280 = vmatprep.mubr.bf16.mxu0 0
    %1281 = vmatmul.mubr.bf16.gmra.mrb[0].mxu0 %v857
    %v1282 = vpop.f32.mrb[0].mxu0
    %v1283 = vadd.f32 0.0, %v1282
    %v1284 = vpop.f32.mrb[0].mxu0
    %v1285 = vpop.f32.mrb[0].mxu0
    %v1286 = vadd.f32 0.0, %v1285
    %v1287 = vpop.f32.mrb[0].mxu0
    %1288 = vmatprep.mubr.bf16.mxu0 0
    %1289 = vmatmul.mubr.bf16.gmra.mrb[0].mxu0 %v860
    %v1290 = vpop.f32.mrb[0].mxu0
    %v1291 = vadd.f32 0.0, %v1290
    %v1292 = vpop.f32.mrb[0].mxu0
    %v1293 = vpop.f32.mrb[0].mxu0
    %v1294 = vadd.f32 0.0, %v1293
    %v1295 = vpop.f32.mrb[0].mxu0
    %1296 = vmatprep.mubr.bf16.mxu0 0
    %1297 = vmatmul.mubr.bf16.gmra.mrb[0].mxu0 %v863
    %v1298 = vpop.f32.mrb[0].mxu0
    %v1299 = vadd.f32 0.0, %v1298
    %v1300 = vpop.f32.mrb[0].mxu0
    %v1301 = vpop.f32.mrb[0].mxu0
    %v1302 = vadd.f32 0.0, %v1301
    %v1303 = vpop.f32.mrb[0].mxu0
    %1304 = vmatprep.mubr.bf16.mxu0 0
    %1305 = vmatmul.mubr.bf16.gmra.mrb[0].mxu0 %v866
    %v1306 = vpop.f32.mrb[0].mxu0
    %v1307 = vadd.f32 0.0, %v1306
    %v1308 = vpop.f32.mrb[0].mxu0
    %v1309 = vpop.f32.mrb[0].mxu0
    %v1310 = vadd.f32 0.0, %v1309
    %v1311 = vpop.f32.mrb[0].mxu0
    %1312 = vmatprep.mubr.bf16.mxu0 0
    %1313 = vmatmul.mubr.bf16.gmra.mrb[0].mxu0 %v869
    %v1314 = vpop.f32.mrb[0].mxu0
    %v1315 = vadd.f32 0.0, %v1314
    %v1316 = vpop.f32.mrb[0].mxu0
    %v1317 = vpop.f32.mrb[0].mxu0
    %v1318 = vadd.f32 0.0, %v1317
    %v1319 = vpop.f32.mrb[0].mxu0
    %1320 = vmatprep.mubr.bf16.mxu0 0
    %1321 = vmatmul.mubr.bf16.gmra.mrb[0].mxu0 %v872
    %v1322 = vpop.f32.mrb[0].mxu0
    %v1323 = vadd.f32 0.0, %v1322
    %v1324 = vpop.f32.mrb[0].mxu0
    %v1325 = vpop.f32.mrb[0].mxu0
    %v1326 = vadd.f32 0.0, %v1325
    %v1327 = vpop.f32.mrb[0].mxu0
    %1328 = vmatprep.mubr.bf16.mxu0 0
    %1329 = vmatmul.mubr.bf16.gmra.mrb[0].mxu0 %v875
    %v1330 = vpop.f32.mrb[0].mxu0
    %v1331 = vadd.f32 0.0, %v1330
    %v1332 = vpop.f32.mrb[0].mxu0
    %v1333 = vpop.f32.mrb[0].mxu0
    %v1334 = vadd.f32 0.0, %v1333
    %v1335 = vpop.f32.mrb[0].mxu0
    %1336 = vmatprep.mubr.bf16.mxu0 0
    %1337 = vmatmul.mubr.bf16.gmra.mrb[0].mxu0 %v878
    %v1338 = vpop.f32.mrb[0].mxu0
    %v1339 = vadd.f32 0.0, %v1338
    %v1340 = vpop.f32.mrb[0].mxu0
    %v1341 = vpop.f32.mrb[0].mxu0
    %v1342 = vadd.f32 0.0, %v1341
    %v1343 = vpop.f32.mrb[0].mxu0
    %1344 = vmatprep.mubr.bf16.mxu0 0
    %1345 = vmatmul.mubr.bf16.gmra.mrb[0].mxu0 %v881
    %v1346 = vpop.f32.mrb[0].mxu0
    %v1347 = vadd.f32 0.0, %v1346
    %v1348 = vpop.f32.mrb[0].mxu0
    %v1349 = vpop.f32.mrb[0].mxu0
    %v1350 = vadd.f32 0.0, %v1349
    %v1351 = vpop.f32.mrb[0].mxu0
    %1352 = vmatprep.mubr.bf16.mxu0 0
    %1353 = vmatmul.mubr.bf16.gmra.mrb[0].mxu0 %v884
    %v1354 = vpop.f32.mrb[0].mxu0
    %v1355 = vadd.f32 0.0, %v1354
    %v1356 = vpop.f32.mrb[0].mxu0
    %v1357 = vpop.f32.mrb[0].mxu0
    %v1358 = vadd.f32 0.0, %v1357
    %v1359 = vpop.f32.mrb[0].mxu0
    %1360 = vmatprep.mubr.bf16.mxu0 0
    %1361 = vmatmul.mubr.bf16.gmra.mrb[0].mxu0 %v887
    %v1362 = vpop.f32.mrb[0].mxu0
    %v1363 = vadd.f32 0.0, %v1362
    %v1364 = vpop.f32.mrb[0].mxu0
    %v1365 = vpop.f32.mrb[0].mxu0
    %v1366 = vadd.f32 0.0, %v1365
    %v1367 = vpop.f32.mrb[0].mxu0
    %1368 = vmatprep.mubr.bf16.mxu0 0
    %1369 = vmatmul.mubr.bf16.gmra.mrb[0].mxu0 %v890
    %v1370 = vpop.f32.mrb[0].mxu0
    %v1371 = vadd.f32 0.0, %v1370
    %v1372 = vpop.f32.mrb[0].mxu0
    %v1373 = vpop.f32.mrb[0].mxu0
    %v1374 = vadd.f32 0.0, %v1373
    %v1375 = vpop.f32.mrb[0].mxu0
    %1376 = vmatprep.mubr.bf16.mxu0 0
    %1377 = vmatmul.mubr.bf16.gmra.mrb[0].mxu0 %v893
    %v1378 = vpop.f32.mrb[0].mxu0
    %v1379 = vadd.f32 0.0, %v1378
    %v1380 = vpop.f32.mrb[0].mxu0
    %v1381 = vpop.f32.mrb[0].mxu0
    %v1382 = vadd.f32 0.0, %v1381
    %v1383 = vpop.f32.mrb[0].mxu0
    %1384 = vmatprep.mubr.bf16.mxu0 0
    %1385 = vmatmul.mubr.bf16.gmra.mrb[0].mxu0 %v896
    %v1386 = vpop.f32.mrb[0].mxu0
    %v1387 = vadd.f32 0.0, %v1386
    %v1388 = vpop.f32.mrb[0].mxu0
    %v1389 = vpop.f32.mrb[0].mxu0
    %v1390 = vadd.f32 0.0, %v1389
    %v1391 = vpop.f32.mrb[0].mxu0
    %1392 = vmatprep.mubr.bf16.mxu0 0
    %1393 = vmatmul.mubr.bf16.gmra.mrb[0].mxu0 %v899
    %v1394 = vpop.f32.mrb[0].mxu0
    %v1395 = vadd.f32 0.0, %v1394
    %v1396 = vpop.f32.mrb[0].mxu0
    %v1397 = vpop.f32.mrb[0].mxu0
    %v1398 = vadd.f32 0.0, %v1397
    %v1399 = vpop.f32.mrb[0].mxu0
    %1400 = vmatprep.mubr.bf16.mxu0 0
    %1401 = vmatmul.mubr.bf16.gmra.mrb[0].mxu0 %v902
    %v1402 = vpop.f32.mrb[0].mxu0
    %v1403 = vadd.f32 0.0, %v1402
    %v1404 = vpop.f32.mrb[0].mxu0
    %v1405 = vpop.f32.mrb[0].mxu0
    %v1406 = vadd.f32 0.0, %v1405
    %v1407 = vpop.f32.mrb[0].mxu0
    %1408 = vmatprep.mubr.bf16.mxu0 0
    %1409 = vmatmul.mubr.bf16.gmra.mrb[0].mxu0 %v905
    %v1410 = vpop.f32.mrb[0].mxu0
    %v1411 = vadd.f32 0.0, %v1410
    %v1412 = vpop.f32.mrb[0].mxu0
    %v1413 = vpop.f32.mrb[0].mxu0
    %v1414 = vadd.f32 0.0, %v1413
    %v1415 = vpop.f32.mrb[0].mxu0
    %1416 = vmatprep.mubr.bf16.mxu0 0
    %1417 = vmatmul.mubr.bf16.gmra.mrb[0].mxu0 %v908
    %v1418 = vpop.f32.mrb[0].mxu0
    %v1419 = vadd.f32 0.0, %v1418
    %v1420 = vpop.f32.mrb[0].mxu0
    %v1421 = vpop.f32.mrb[0].mxu0
    %v1422 = vadd.f32 0.0, %v1421
    %v1423 = vpop.f32.mrb[0].mxu0
    %1424 = vmatprep.mubr.bf16.mxu0 0
    %1425 = vmatmul.mubr.bf16.gmra.mrb[0].mxu0 %v911
    %v1426 = vpop.f32.mrb[0].mxu0
    %v1427 = vadd.f32 0.0, %v1426
    %v1428 = vpop.f32.mrb[0].mxu0
    %v1429 = vpop.f32.mrb[0].mxu0
    %v1430 = vadd.f32 0.0, %v1429
    %v1431 = vpop.f32.mrb[0].mxu0
    %1432 = vmatprep.mubr.bf16.mxu0 0
    %1433 = vmatmul.mubr.bf16.gmra.mrb[0].mxu0 %v914
    %v1434 = vpop.f32.mrb[0].mxu0
    %v1435 = vadd.f32 0.0, %v1434
    %v1436 = vpop.f32.mrb[0].mxu0
    %v1437 = vpop.f32.mrb[0].mxu0
    %v1438 = vadd.f32 0.0, %v1437
    %v1439 = vpop.f32.mrb[0].mxu0
    %1440 = vmatprep.mubr.bf16.mxu0 0
    %1441 = vmatmul.mubr.bf16.gmra.mrb[0].mxu0 %v917
    %v1442 = vpop.f32.mrb[0].mxu0
    %v1443 = vadd.f32 0.0, %v1442
    %v1444 = vpop.f32.mrb[0].mxu0
    %v1445 = vpop.f32.mrb[0].mxu0
    %v1446 = vadd.f32 0.0, %v1445
    %v1447 = vpop.f32.mrb[0].mxu0
    %1448 = vmatprep.mubr.bf16.mxu0 0
    %1449 = vmatmul.mubr.bf16.gmra.mrb[0].mxu0 %v920
    %v1450 = vpop.f32.mrb[0].mxu0
    %v1451 = vadd.f32 0.0, %v1450
    %v1452 = vpop.f32.mrb[0].mxu0
    %v1453 = vpop.f32.mrb[0].mxu0
    %v1454 = vadd.f32 0.0, %v1453
    %v1455 = vpop.f32.mrb[0].mxu0
    %1456 = vmatprep.mubr.bf16.mxu0 0
    %1457 = vmatmul.mubr.bf16.gmra.mrb[0].mxu0 %v923
    %v1458 = vpop.f32.mrb[0].mxu0
    %v1459 = vadd.f32 0.0, %v1458
    %v1460 = vpop.f32.mrb[0].mxu0
    %v1461 = vpop.f32.mrb[0].mxu0
    %v1462 = vadd.f32 0.0, %v1461
    %v1463 = vpop.f32.mrb[0].mxu0
    %1464 = vmatprep.mubr.bf16.mxu0 0
    %1465 = vmatmul.mubr.bf16.gmra.mrb[0].mxu0 %v926
    %v1466 = vpop.f32.mrb[0].mxu0
    %v1467 = vadd.f32 0.0, %v1466
    %v1468 = vpop.f32.mrb[0].mxu0
    %v1469 = vpop.f32.mrb[0].mxu0
    %v1470 = vadd.f32 0.0, %v1469
    %v1471 = vpop.f32.mrb[0].mxu0
    %1472 = vdwg.mxu0
    %v1481 = vunpack.c.l.b16 %v108
    %v1482 = vunpack.c.l.b16 %v109
    %v1483 = vunpack.c.l.b16 %v110
    %v1484 = vunpack.c.l.b16 %v111
    %v1485 = vunpack.c.l.b16 %v112
    %v1486 = vunpack.c.l.b16 %v113
    %v1487 = vunpack.c.l.b16 %v114
    %v1488 = vunpack.c.l.b16 %v115
    %v1489 = vpack.c.b16 %v1482, %v1481
    %v1490 = vpack.c.b16 %v1484, %v1483
    %v1491 = vpack.c.b16 %v1486, %v1485
    %v1492 = vpack.c.b16 %v1488, %v1487
    %1497 = vmatprep.subr.bf16.mxu0 0
    %1498 = vmatpush1.bf16.msra.mxu0 %v1489
    %1499 = vmatprep.subr.bf16.mxu0 0
    %1500 = vmatpush1.bf16.msra.mxu0 %v1490
    %1501 = vmatprep.subr.bf16.mxu0 0
    %1502 = vmatpush1.bf16.msra.mxu0 %v1491
    %1503 = vmatprep.subr.bf16.mxu0 0
    %1504 = vmatpush1.bf16.msra.mxu0 %v1492
    %1505 = vmatprep.subr.bf16.mxu0 0
    %1506 = vmatpush1.bf16.msra.mxu0 0
    %1507 = vmatprep.subr.bf16.mxu0 0
    %1508 = vmatpush1.bf16.msra.mxu0 0
    %1509 = vmatprep.subr.bf16.mxu0 0
    %1510 = vmatpush1.bf16.msra.mxu0 0
    %1511 = vmatprep.subr.bf16.mxu0 0
    %1512 = vmatpush1.bf16.msra.mxu0 0
    %1513 = vmatprep.subr.bf16.mxu0 0
    %1514 = vmatpush1.bf16.msra.mxu0 0
    %1515 = vmatprep.subr.bf16.mxu0 0
    %1516 = vmatpush1.bf16.msra.mxu0 0
    %1517 = vmatprep.subr.bf16.mxu0 0
    %1518 = vmatpush1.bf16.msra.mxu0 0
    %1519 = vmatprep.subr.bf16.mxu0 0
    %1520 = vmatpush1.bf16.msra.mxu0 0
    %1521 = vmatprep.subr.bf16.mxu0 0
    %1522 = vmatpush1.bf16.msra.mxu0 0
    %1523 = vmatprep.subr.bf16.mxu0 0
    %1524 = vmatpush1.bf16.msra.mxu0 0
    %1525 = vmatprep.subr.bf16.mxu0 0
    %1526 = vmatpush1.bf16.msra.mxu0 0
    %1527 = vmatprep.subr.bf16.mxu0 0
    %1528 = vmatpush1.bf16.msra.mxu0 0
    %1529 = vmatprep.mubr.bf16.mxu0 0
    %1530 = vmatmul.mubr.bf16.gmra.mrb[0].mxu0 %v737
    %v1531 = vpop.f32.mrb[0].mxu0
    %v1532 = vadd.f32 0.0, %v1531
    %v1533 = vpop.f32.mrb[0].mxu0
    %v1534 = vpop.f32.mrb[0].mxu0
    %v1535 = vadd.f32 0.0, %v1534
    %v1536 = vpop.f32.mrb[0].mxu0
    %1537 = vmatprep.mubr.bf16.mxu0 0
    %1538 = vmatmul.mubr.bf16.gmra.mrb[0].mxu0 %v740
    %v1539 = vpop.f32.mrb[0].mxu0
    %v1540 = vadd.f32 0.0, %v1539
    %v1541 = vpop.f32.mrb[0].mxu0
    %v1542 = vpop.f32.mrb[0].mxu0
    %v1543 = vadd.f32 0.0, %v1542
    %v1544 = vpop.f32.mrb[0].mxu0
    %1545 = vmatprep.mubr.bf16.mxu0 0
    %1546 = vmatmul.mubr.bf16.gmra.mrb[0].mxu0 %v743
    %v1547 = vpop.f32.mrb[0].mxu0
    %v1548 = vadd.f32 0.0, %v1547
    %v1549 = vpop.f32.mrb[0].mxu0
    %v1550 = vpop.f32.mrb[0].mxu0
    %v1551 = vadd.f32 0.0, %v1550
    %v1552 = vpop.f32.mrb[0].mxu0
    %1553 = vmatprep.mubr.bf16.mxu0 0
    %1554 = vmatmul.mubr.bf16.gmra.mrb[0].mxu0 %v746
    %v1555 = vpop.f32.mrb[0].mxu0
    %v1556 = vadd.f32 0.0, %v1555
    %v1557 = vpop.f32.mrb[0].mxu0
    %v1558 = vpop.f32.mrb[0].mxu0
    %v1559 = vadd.f32 0.0, %v1558
    %v1560 = vpop.f32.mrb[0].mxu0
    %1561 = vmatprep.mubr.bf16.mxu0 0
    %1562 = vmatmul.mubr.bf16.gmra.mrb[0].mxu0 %v749
    %v1563 = vpop.f32.mrb[0].mxu0
    %v1564 = vadd.f32 0.0, %v1563
    %v1565 = vpop.f32.mrb[0].mxu0
    %v1566 = vpop.f32.mrb[0].mxu0
    %v1567 = vadd.f32 0.0, %v1566
    %v1568 = vpop.f32.mrb[0].mxu0
    %1569 = vmatprep.mubr.bf16.mxu0 0
    %1570 = vmatmul.mubr.bf16.gmra.mrb[0].mxu0 %v752
    %v1571 = vpop.f32.mrb[0].mxu0
    %v1572 = vadd.f32 0.0, %v1571
    %v1573 = vpop.f32.mrb[0].mxu0
    %v1574 = vpop.f32.mrb[0].mxu0
    %v1575 = vadd.f32 0.0, %v1574
    %v1576 = vpop.f32.mrb[0].mxu0
    %1577 = vmatprep.mubr.bf16.mxu0 0
    %1578 = vmatmul.mubr.bf16.gmra.mrb[0].mxu0 %v755
    %v1579 = vpop.f32.mrb[0].mxu0
    %v1580 = vadd.f32 0.0, %v1579
    %v1581 = vpop.f32.mrb[0].mxu0
    %v1582 = vpop.f32.mrb[0].mxu0
    %v1583 = vadd.f32 0.0, %v1582
    %v1584 = vpop.f32.mrb[0].mxu0
    %1585 = vmatprep.mubr.bf16.mxu0 0
    %1586 = vmatmul.mubr.bf16.gmra.mrb[0].mxu0 %v758
    %v1587 = vpop.f32.mrb[0].mxu0
    %v1588 = vadd.f32 0.0, %v1587
    %v1589 = vpop.f32.mrb[0].mxu0
    %v1590 = vpop.f32.mrb[0].mxu0
    %v1591 = vadd.f32 0.0, %v1590
    %v1592 = vpop.f32.mrb[0].mxu0
    %1593 = vmatprep.mubr.bf16.mxu0 0
    %1594 = vmatmul.mubr.bf16.gmra.mrb[0].mxu0 %v761
    %v1595 = vpop.f32.mrb[0].mxu0
    %v1596 = vadd.f32 0.0, %v1595
    %v1597 = vpop.f32.mrb[0].mxu0
    %v1598 = vpop.f32.mrb[0].mxu0
    %v1599 = vadd.f32 0.0, %v1598
    %v1600 = vpop.f32.mrb[0].mxu0
    %1601 = vmatprep.mubr.bf16.mxu0 0
    %1602 = vmatmul.mubr.bf16.gmra.mrb[0].mxu0 %v764
    %v1603 = vpop.f32.mrb[0].mxu0
    %v1604 = vadd.f32 0.0, %v1603
    %v1605 = vpop.f32.mrb[0].mxu0
    %v1606 = vpop.f32.mrb[0].mxu0
    %v1607 = vadd.f32 0.0, %v1606
    %v1608 = vpop.f32.mrb[0].mxu0
    %1609 = vmatprep.mubr.bf16.mxu0 0
    %1610 = vmatmul.mubr.bf16.gmra.mrb[0].mxu0 %v767
    %v1611 = vpop.f32.mrb[0].mxu0
    %v1612 = vadd.f32 0.0, %v1611
    %v1613 = vpop.f32.mrb[0].mxu0
    %v1614 = vpop.f32.mrb[0].mxu0
    %v1615 = vadd.f32 0.0, %v1614
    %v1616 = vpop.f32.mrb[0].mxu0
    %1617 = vmatprep.mubr.bf16.mxu0 0
    %1618 = vmatmul.mubr.bf16.gmra.mrb[0].mxu0 %v770
    %v1619 = vpop.f32.mrb[0].mxu0
    %v1620 = vadd.f32 0.0, %v1619
    %v1621 = vpop.f32.mrb[0].mxu0
    %v1622 = vpop.f32.mrb[0].mxu0
    %v1623 = vadd.f32 0.0, %v1622
    %v1624 = vpop.f32.mrb[0].mxu0
    %1625 = vmatprep.mubr.bf16.mxu0 0
    %1626 = vmatmul.mubr.bf16.gmra.mrb[0].mxu0 %v773
    %v1627 = vpop.f32.mrb[0].mxu0
    %v1628 = vadd.f32 0.0, %v1627
    %v1629 = vpop.f32.mrb[0].mxu0
    %v1630 = vpop.f32.mrb[0].mxu0
    %v1631 = vadd.f32 0.0, %v1630
    %v1632 = vpop.f32.mrb[0].mxu0
    %1633 = vmatprep.mubr.bf16.mxu0 0
    %1634 = vmatmul.mubr.bf16.gmra.mrb[0].mxu0 %v776
    %v1635 = vpop.f32.mrb[0].mxu0
    %v1636 = vadd.f32 0.0, %v1635
    %v1637 = vpop.f32.mrb[0].mxu0
    %v1638 = vpop.f32.mrb[0].mxu0
    %v1639 = vadd.f32 0.0, %v1638
    %v1640 = vpop.f32.mrb[0].mxu0
    %1641 = vmatprep.mubr.bf16.mxu0 0
    %1642 = vmatmul.mubr.bf16.gmra.mrb[0].mxu0 %v779
    %v1643 = vpop.f32.mrb[0].mxu0
    %v1644 = vadd.f32 0.0, %v1643
    %v1645 = vpop.f32.mrb[0].mxu0
    %v1646 = vpop.f32.mrb[0].mxu0
    %v1647 = vadd.f32 0.0, %v1646
    %v1648 = vpop.f32.mrb[0].mxu0
    %1649 = vmatprep.mubr.bf16.mxu0 0
    %1650 = vmatmul.mubr.bf16.gmra.mrb[0].mxu0 %v782
    %v1651 = vpop.f32.mrb[0].mxu0
    %v1652 = vadd.f32 0.0, %v1651
    %v1653 = vpop.f32.mrb[0].mxu0
    %v1654 = vpop.f32.mrb[0].mxu0
    %v1655 = vadd.f32 0.0, %v1654
    %v1656 = vpop.f32.mrb[0].mxu0
    %1657 = vmatprep.mubr.bf16.mxu0 0
    %1658 = vmatmul.mubr.bf16.gmra.mrb[0].mxu0 %v785
    %v1659 = vpop.f32.mrb[0].mxu0
    %v1660 = vadd.f32 0.0, %v1659
    %v1661 = vpop.f32.mrb[0].mxu0
    %v1662 = vpop.f32.mrb[0].mxu0
    %v1663 = vadd.f32 0.0, %v1662
    %v1664 = vpop.f32.mrb[0].mxu0
    %1665 = vmatprep.mubr.bf16.mxu0 0
    %1666 = vmatmul.mubr.bf16.gmra.mrb[0].mxu0 %v788
    %v1667 = vpop.f32.mrb[0].mxu0
    %v1668 = vadd.f32 0.0, %v1667
    %v1669 = vpop.f32.mrb[0].mxu0
    %v1670 = vpop.f32.mrb[0].mxu0
    %v1671 = vadd.f32 0.0, %v1670
    %v1672 = vpop.f32.mrb[0].mxu0
    %1673 = vmatprep.mubr.bf16.mxu0 0
    %1674 = vmatmul.mubr.bf16.gmra.mrb[0].mxu0 %v791
    %v1675 = vpop.f32.mrb[0].mxu0
    %v1676 = vadd.f32 0.0, %v1675
    %v1677 = vpop.f32.mrb[0].mxu0
    %v1678 = vpop.f32.mrb[0].mxu0
    %v1679 = vadd.f32 0.0, %v1678
    %v1680 = vpop.f32.mrb[0].mxu0
    %1681 = vmatprep.mubr.bf16.mxu0 0
    %1682 = vmatmul.mubr.bf16.gmra.mrb[0].mxu0 %v794
    %v1683 = vpop.f32.mrb[0].mxu0
    %v1684 = vadd.f32 0.0, %v1683
    %v1685 = vpop.f32.mrb[0].mxu0
    %v1686 = vpop.f32.mrb[0].mxu0
    %v1687 = vadd.f32 0.0, %v1686
    %v1688 = vpop.f32.mrb[0].mxu0
    %1689 = vmatprep.mubr.bf16.mxu0 0
    %1690 = vmatmul.mubr.bf16.gmra.mrb[0].mxu0 %v797
    %v1691 = vpop.f32.mrb[0].mxu0
    %v1692 = vadd.f32 0.0, %v1691
    %v1693 = vpop.f32.mrb[0].mxu0
    %v1694 = vpop.f32.mrb[0].mxu0
    %v1695 = vadd.f32 0.0, %v1694
    %v1696 = vpop.f32.mrb[0].mxu0
    %1697 = vmatprep.mubr.bf16.mxu0 0
    %1698 = vmatmul.mubr.bf16.gmra.mrb[0].mxu0 %v800
    %v1699 = vpop.f32.mrb[0].mxu0
    %v1700 = vadd.f32 0.0, %v1699
    %v1701 = vpop.f32.mrb[0].mxu0
    %v1702 = vpop.f32.mrb[0].mxu0
    %v1703 = vadd.f32 0.0, %v1702
    %v1704 = vpop.f32.mrb[0].mxu0
    %1705 = vmatprep.mubr.bf16.mxu0 0
    %1706 = vmatmul.mubr.bf16.gmra.mrb[0].mxu0 %v803
    %v1707 = vpop.f32.mrb[0].mxu0
    %v1708 = vadd.f32 0.0, %v1707
    %v1709 = vpop.f32.mrb[0].mxu0
    %v1710 = vpop.f32.mrb[0].mxu0
    %v1711 = vadd.f32 0.0, %v1710
    %v1712 = vpop.f32.mrb[0].mxu0
    %1713 = vmatprep.mubr.bf16.mxu0 0
    %1714 = vmatmul.mubr.bf16.gmra.mrb[0].mxu0 %v806
    %v1715 = vpop.f32.mrb[0].mxu0
    %v1716 = vadd.f32 0.0, %v1715
    %v1717 = vpop.f32.mrb[0].mxu0
    %v1718 = vpop.f32.mrb[0].mxu0
    %v1719 = vadd.f32 0.0, %v1718
    %v1720 = vpop.f32.mrb[0].mxu0
    %1721 = vmatprep.mubr.bf16.mxu0 0
    %1722 = vmatmul.mubr.bf16.gmra.mrb[0].mxu0 %v809
    %v1723 = vpop.f32.mrb[0].mxu0
    %v1724 = vadd.f32 0.0, %v1723
    %v1725 = vpop.f32.mrb[0].mxu0
    %v1726 = vpop.f32.mrb[0].mxu0
    %v1727 = vadd.f32 0.0, %v1726
    %v1728 = vpop.f32.mrb[0].mxu0
    %1729 = vmatprep.mubr.bf16.mxu0 0
    %1730 = vmatmul.mubr.bf16.gmra.mrb[0].mxu0 %v812
    %v1731 = vpop.f32.mrb[0].mxu0
    %v1732 = vadd.f32 0.0, %v1731
    %v1733 = vpop.f32.mrb[0].mxu0
    %v1734 = vpop.f32.mrb[0].mxu0
    %v1735 = vadd.f32 0.0, %v1734
    %v1736 = vpop.f32.mrb[0].mxu0
    %1737 = vmatprep.mubr.bf16.mxu0 0
    %1738 = vmatmul.mubr.bf16.gmra.mrb[0].mxu0 %v815
    %v1739 = vpop.f32.mrb[0].mxu0
    %v1740 = vadd.f32 0.0, %v1739
    %v1741 = vpop.f32.mrb[0].mxu0
    %v1742 = vpop.f32.mrb[0].mxu0
    %v1743 = vadd.f32 0.0, %v1742
    %v1744 = vpop.f32.mrb[0].mxu0
    %1745 = vmatprep.mubr.bf16.mxu0 0
    %1746 = vmatmul.mubr.bf16.gmra.mrb[0].mxu0 %v818
    %v1747 = vpop.f32.mrb[0].mxu0
    %v1748 = vadd.f32 0.0, %v1747
    %v1749 = vpop.f32.mrb[0].mxu0
    %v1750 = vpop.f32.mrb[0].mxu0
    %v1751 = vadd.f32 0.0, %v1750
    %v1752 = vpop.f32.mrb[0].mxu0
    %1753 = vmatprep.mubr.bf16.mxu0 0
    %1754 = vmatmul.mubr.bf16.gmra.mrb[0].mxu0 %v821
    %v1755 = vpop.f32.mrb[0].mxu0
    %v1756 = vadd.f32 0.0, %v1755
    %v1757 = vpop.f32.mrb[0].mxu0
    %v1758 = vpop.f32.mrb[0].mxu0
    %v1759 = vadd.f32 0.0, %v1758
    %v1760 = vpop.f32.mrb[0].mxu0
    %1761 = vmatprep.mubr.bf16.mxu0 0
    %1762 = vmatmul.mubr.bf16.gmra.mrb[0].mxu0 %v824
    %v1763 = vpop.f32.mrb[0].mxu0
    %v1764 = vadd.f32 0.0, %v1763
    %v1765 = vpop.f32.mrb[0].mxu0
    %v1766 = vpop.f32.mrb[0].mxu0
    %v1767 = vadd.f32 0.0, %v1766
    %v1768 = vpop.f32.mrb[0].mxu0
    %1769 = vmatprep.mubr.bf16.mxu0 0
    %1770 = vmatmul.mubr.bf16.gmra.mrb[0].mxu0 %v827
    %v1771 = vpop.f32.mrb[0].mxu0
    %v1772 = vadd.f32 0.0, %v1771
    %v1773 = vpop.f32.mrb[0].mxu0
    %v1774 = vpop.f32.mrb[0].mxu0
    %v1775 = vadd.f32 0.0, %v1774
    %v1776 = vpop.f32.mrb[0].mxu0
    %1777 = vmatprep.mubr.bf16.mxu0 0
    %1778 = vmatmul.mubr.bf16.gmra.mrb[0].mxu0 %v830
    %v1779 = vpop.f32.mrb[0].mxu0
    %v1780 = vadd.f32 0.0, %v1779
    %v1781 = vpop.f32.mrb[0].mxu0
    %v1782 = vpop.f32.mrb[0].mxu0
    %v1783 = vadd.f32 0.0, %v1782
    %v1784 = vpop.f32.mrb[0].mxu0
    %1785 = vmatprep.mubr.bf16.mxu0 0
    %1786 = vmatmul.mubr.bf16.gmra.mrb[0].mxu0 %v833
    %v1787 = vpop.f32.mrb[0].mxu0
    %v1788 = vadd.f32 0.0, %v1787
    %v1789 = vpop.f32.mrb[0].mxu0
    %v1790 = vpop.f32.mrb[0].mxu0
    %v1791 = vadd.f32 0.0, %v1790
    %v1792 = vpop.f32.mrb[0].mxu0
    %1793 = vmatprep.mubr.bf16.mxu0 0
    %1794 = vmatmul.mubr.bf16.gmra.mrb[0].mxu0 %v836
    %v1795 = vpop.f32.mrb[0].mxu0
    %v1796 = vadd.f32 0.0, %v1795
    %v1797 = vpop.f32.mrb[0].mxu0
    %v1798 = vpop.f32.mrb[0].mxu0
    %v1799 = vadd.f32 0.0, %v1798
    %v1800 = vpop.f32.mrb[0].mxu0
    %1801 = vmatprep.mubr.bf16.mxu0 0
    %1802 = vmatmul.mubr.bf16.gmra.mrb[0].mxu0 %v839
    %v1803 = vpop.f32.mrb[0].mxu0
    %v1804 = vadd.f32 0.0, %v1803
    %v1805 = vpop.f32.mrb[0].mxu0
    %v1806 = vpop.f32.mrb[0].mxu0
    %v1807 = vadd.f32 0.0, %v1806
    %v1808 = vpop.f32.mrb[0].mxu0
    %1809 = vmatprep.mubr.bf16.mxu0 0
    %1810 = vmatmul.mubr.bf16.gmra.mrb[0].mxu0 %v842
    %v1811 = vpop.f32.mrb[0].mxu0
    %v1812 = vadd.f32 0.0, %v1811
    %v1813 = vpop.f32.mrb[0].mxu0
    %v1814 = vpop.f32.mrb[0].mxu0
    %v1815 = vadd.f32 0.0, %v1814
    %v1816 = vpop.f32.mrb[0].mxu0
    %1817 = vmatprep.mubr.bf16.mxu0 0
    %1818 = vmatmul.mubr.bf16.gmra.mrb[0].mxu0 %v845
    %v1819 = vpop.f32.mrb[0].mxu0
    %v1820 = vadd.f32 0.0, %v1819
    %v1821 = vpop.f32.mrb[0].mxu0
    %v1822 = vpop.f32.mrb[0].mxu0
    %v1823 = vadd.f32 0.0, %v1822
    %v1824 = vpop.f32.mrb[0].mxu0
    %1825 = vmatprep.mubr.bf16.mxu0 0
    %1826 = vmatmul.mubr.bf16.gmra.mrb[0].mxu0 %v848
    %v1827 = vpop.f32.mrb[0].mxu0
    %v1828 = vadd.f32 0.0, %v1827
    %v1829 = vpop.f32.mrb[0].mxu0
    %v1830 = vpop.f32.mrb[0].mxu0
    %v1831 = vadd.f32 0.0, %v1830
    %v1832 = vpop.f32.mrb[0].mxu0
    %1833 = vmatprep.mubr.bf16.mxu0 0
    %1834 = vmatmul.mubr.bf16.gmra.mrb[0].mxu0 %v851
    %v1835 = vpop.f32.mrb[0].mxu0
    %v1836 = vadd.f32 0.0, %v1835
    %v1837 = vpop.f32.mrb[0].mxu0
    %v1838 = vpop.f32.mrb[0].mxu0
    %v1839 = vadd.f32 0.0, %v1838
    %v1840 = vpop.f32.mrb[0].mxu0
    %1841 = vmatprep.mubr.bf16.mxu0 0
    %1842 = vmatmul.mubr.bf16.gmra.mrb[0].mxu0 %v854
    %v1843 = vpop.f32.mrb[0].mxu0
    %v1844 = vadd.f32 0.0, %v1843
    %v1845 = vpop.f32.mrb[0].mxu0
    %v1846 = vpop.f32.mrb[0].mxu0
    %v1847 = vadd.f32 0.0, %v1846
    %v1848 = vpop.f32.mrb[0].mxu0
    %1849 = vmatprep.mubr.bf16.mxu0 0
    %1850 = vmatmul.mubr.bf16.gmra.mrb[0].mxu0 %v857
    %v1851 = vpop.f32.mrb[0].mxu0
    %v1852 = vadd.f32 0.0, %v1851
    %v1853 = vpop.f32.mrb[0].mxu0
    %v1854 = vpop.f32.mrb[0].mxu0
    %v1855 = vadd.f32 0.0, %v1854
    %v1856 = vpop.f32.mrb[0].mxu0
    %1857 = vmatprep.mubr.bf16.mxu0 0
    %1858 = vmatmul.mubr.bf16.gmra.mrb[0].mxu0 %v860
    %v1859 = vpop.f32.mrb[0].mxu0
    %v1860 = vadd.f32 0.0, %v1859
    %v1861 = vpop.f32.mrb[0].mxu0
    %v1862 = vpop.f32.mrb[0].mxu0
    %v1863 = vadd.f32 0.0, %v1862
    %v1864 = vpop.f32.mrb[0].mxu0
    %1865 = vmatprep.mubr.bf16.mxu0 0
    %1866 = vmatmul.mubr.bf16.gmra.mrb[0].mxu0 %v863
    %v1867 = vpop.f32.mrb[0].mxu0
    %v1868 = vadd.f32 0.0, %v1867
    %v1869 = vpop.f32.mrb[0].mxu0
    %v1870 = vpop.f32.mrb[0].mxu0
    %v1871 = vadd.f32 0.0, %v1870
    %v1872 = vpop.f32.mrb[0].mxu0
    %1873 = vmatprep.mubr.bf16.mxu0 0
    %1874 = vmatmul.mubr.bf16.gmra.mrb[0].mxu0 %v866
    %v1875 = vpop.f32.mrb[0].mxu0
    %v1876 = vadd.f32 0.0, %v1875
    %v1877 = vpop.f32.mrb[0].mxu0
    %v1878 = vpop.f32.mrb[0].mxu0
    %v1879 = vadd.f32 0.0, %v1878
    %v1880 = vpop.f32.mrb[0].mxu0
    %1881 = vmatprep.mubr.bf16.mxu0 0
    %1882 = vmatmul.mubr.bf16.gmra.mrb[0].mxu0 %v869
    %v1883 = vpop.f32.mrb[0].mxu0
    %v1884 = vadd.f32 0.0, %v1883
    %v1885 = vpop.f32.mrb[0].mxu0
    %v1886 = vpop.f32.mrb[0].mxu0
    %v1887 = vadd.f32 0.0, %v1886
    %v1888 = vpop.f32.mrb[0].mxu0
    %1889 = vmatprep.mubr.bf16.mxu0 0
    %1890 = vmatmul.mubr.bf16.gmra.mrb[0].mxu0 %v872
    %v1891 = vpop.f32.mrb[0].mxu0
    %v1892 = vadd.f32 0.0, %v1891
    %v1893 = vpop.f32.mrb[0].mxu0
    %v1894 = vpop.f32.mrb[0].mxu0
    %v1895 = vadd.f32 0.0, %v1894
    %v1896 = vpop.f32.mrb[0].mxu0
    %1897 = vmatprep.mubr.bf16.mxu0 0
    %1898 = vmatmul.mubr.bf16.gmra.mrb[0].mxu0 %v875
    %v1899 = vpop.f32.mrb[0].mxu0
    %v1900 = vadd.f32 0.0, %v1899
    %v1901 = vpop.f32.mrb[0].mxu0
    %v1902 = vpop.f32.mrb[0].mxu0
    %v1903 = vadd.f32 0.0, %v1902
    %v1904 = vpop.f32.mrb[0].mxu0
    %1905 = vmatprep.mubr.bf16.mxu0 0
    %1906 = vmatmul.mubr.bf16.gmra.mrb[0].mxu0 %v878
    %v1907 = vpop.f32.mrb[0].mxu0
    %v1908 = vadd.f32 0.0, %v1907
    %v1909 = vpop.f32.mrb[0].mxu0
    %v1910 = vpop.f32.mrb[0].mxu0
    %v1911 = vadd.f32 0.0, %v1910
    %v1912 = vpop.f32.mrb[0].mxu0
    %1913 = vmatprep.mubr.bf16.mxu0 0
    %1914 = vmatmul.mubr.bf16.gmra.mrb[0].mxu0 %v881
    %v1915 = vpop.f32.mrb[0].mxu0
    %v1916 = vadd.f32 0.0, %v1915
    %v1917 = vpop.f32.mrb[0].mxu0
    %v1918 = vpop.f32.mrb[0].mxu0
    %v1919 = vadd.f32 0.0, %v1918
    %v1920 = vpop.f32.mrb[0].mxu0
    %1921 = vmatprep.mubr.bf16.mxu0 0
    %1922 = vmatmul.mubr.bf16.gmra.mrb[0].mxu0 %v884
    %v1923 = vpop.f32.mrb[0].mxu0
    %v1924 = vadd.f32 0.0, %v1923
    %v1925 = vpop.f32.mrb[0].mxu0
    %v1926 = vpop.f32.mrb[0].mxu0
    %v1927 = vadd.f32 0.0, %v1926
    %v1928 = vpop.f32.mrb[0].mxu0
    %1929 = vmatprep.mubr.bf16.mxu0 0
    %1930 = vmatmul.mubr.bf16.gmra.mrb[0].mxu0 %v887
    %v1931 = vpop.f32.mrb[0].mxu0
    %v1932 = vadd.f32 0.0, %v1931
    %v1933 = vpop.f32.mrb[0].mxu0
    %v1934 = vpop.f32.mrb[0].mxu0
    %v1935 = vadd.f32 0.0, %v1934
    %v1936 = vpop.f32.mrb[0].mxu0
    %1937 = vmatprep.mubr.bf16.mxu0 0
    %1938 = vmatmul.mubr.bf16.gmra.mrb[0].mxu0 %v890
    %v1939 = vpop.f32.mrb[0].mxu0
    %v1940 = vadd.f32 0.0, %v1939
    %v1941 = vpop.f32.mrb[0].mxu0
    %v1942 = vpop.f32.mrb[0].mxu0
    %v1943 = vadd.f32 0.0, %v1942
    %v1944 = vpop.f32.mrb[0].mxu0
    %1945 = vmatprep.mubr.bf16.mxu0 0
    %1946 = vmatmul.mubr.bf16.gmra.mrb[0].mxu0 %v893
    %v1947 = vpop.f32.mrb[0].mxu0
    %v1948 = vadd.f32 0.0, %v1947
    %v1949 = vpop.f32.mrb[0].mxu0
    %v1950 = vpop.f32.mrb[0].mxu0
    %v1951 = vadd.f32 0.0, %v1950
    %v1952 = vpop.f32.mrb[0].mxu0
    %1953 = vmatprep.mubr.bf16.mxu0 0
    %1954 = vmatmul.mubr.bf16.gmra.mrb[0].mxu0 %v896
    %v1955 = vpop.f32.mrb[0].mxu0
    %v1956 = vadd.f32 0.0, %v1955
    %v1957 = vpop.f32.mrb[0].mxu0
    %v1958 = vpop.f32.mrb[0].mxu0
    %v1959 = vadd.f32 0.0, %v1958
    %v1960 = vpop.f32.mrb[0].mxu0
    %1961 = vmatprep.mubr.bf16.mxu0 0
    %1962 = vmatmul.mubr.bf16.gmra.mrb[0].mxu0 %v899
    %v1963 = vpop.f32.mrb[0].mxu0
    %v1964 = vadd.f32 0.0, %v1963
    %v1965 = vpop.f32.mrb[0].mxu0
    %v1966 = vpop.f32.mrb[0].mxu0
    %v1967 = vadd.f32 0.0, %v1966
    %v1968 = vpop.f32.mrb[0].mxu0
    %1969 = vmatprep.mubr.bf16.mxu0 0
    %1970 = vmatmul.mubr.bf16.gmra.mrb[0].mxu0 %v902
    %v1971 = vpop.f32.mrb[0].mxu0
    %v1972 = vadd.f32 0.0, %v1971
    %v1973 = vpop.f32.mrb[0].mxu0
    %v1974 = vpop.f32.mrb[0].mxu0
    %v1975 = vadd.f32 0.0, %v1974
    %v1976 = vpop.f32.mrb[0].mxu0
    %1977 = vmatprep.mubr.bf16.mxu0 0
    %1978 = vmatmul.mubr.bf16.gmra.mrb[0].mxu0 %v905
    %v1979 = vpop.f32.mrb[0].mxu0
    %v1980 = vadd.f32 0.0, %v1979
    %v1981 = vpop.f32.mrb[0].mxu0
    %v1982 = vpop.f32.mrb[0].mxu0
    %v1983 = vadd.f32 0.0, %v1982
    %v1984 = vpop.f32.mrb[0].mxu0
    %1985 = vmatprep.mubr.bf16.mxu0 0
    %1986 = vmatmul.mubr.bf16.gmra.mrb[0].mxu0 %v908
    %v1987 = vpop.f32.mrb[0].mxu0
    %v1988 = vadd.f32 0.0, %v1987
    %v1989 = vpop.f32.mrb[0].mxu0
    %v1990 = vpop.f32.mrb[0].mxu0
    %v1991 = vadd.f32 0.0, %v1990
    %v1992 = vpop.f32.mrb[0].mxu0
    %1993 = vmatprep.mubr.bf16.mxu0 0
    %1994 = vmatmul.mubr.bf16.gmra.mrb[0].mxu0 %v911
    %v1995 = vpop.f32.mrb[0].mxu0
    %v1996 = vadd.f32 0.0, %v1995
    %v1997 = vpop.f32.mrb[0].mxu0
    %v1998 = vpop.f32.mrb[0].mxu0
    %v1999 = vadd.f32 0.0, %v1998
    %v2000 = vpop.f32.mrb[0].mxu0
    %2001 = vmatprep.mubr.bf16.mxu0 0
    %2002 = vmatmul.mubr.bf16.gmra.mrb[0].mxu0 %v914
    %v2003 = vpop.f32.mrb[0].mxu0
    %v2004 = vadd.f32 0.0, %v2003
    %v2005 = vpop.f32.mrb[0].mxu0
    %v2006 = vpop.f32.mrb[0].mxu0
    %v2007 = vadd.f32 0.0, %v2006
    %v2008 = vpop.f32.mrb[0].mxu0
    %2009 = vmatprep.mubr.bf16.mxu0 0
    %2010 = vmatmul.mubr.bf16.gmra.mrb[0].mxu0 %v917
    %v2011 = vpop.f32.mrb[0].mxu0
    %v2012 = vadd.f32 0.0, %v2011
    %v2013 = vpop.f32.mrb[0].mxu0
    %v2014 = vpop.f32.mrb[0].mxu0
    %v2015 = vadd.f32 0.0, %v2014
    %v2016 = vpop.f32.mrb[0].mxu0
    %2017 = vmatprep.mubr.bf16.mxu0 0
    %2018 = vmatmul.mubr.bf16.gmra.mrb[0].mxu0 %v920
    %v2019 = vpop.f32.mrb[0].mxu0
    %v2020 = vadd.f32 0.0, %v2019
    %v2021 = vpop.f32.mrb[0].mxu0
    %v2022 = vpop.f32.mrb[0].mxu0
    %v2023 = vadd.f32 0.0, %v2022
    %v2024 = vpop.f32.mrb[0].mxu0
    %2025 = vmatprep.mubr.bf16.mxu0 0
    %2026 = vmatmul.mubr.bf16.gmra.mrb[0].mxu0 %v923
    %v2027 = vpop.f32.mrb[0].mxu0
    %v2028 = vadd.f32 0.0, %v2027
    %v2029 = vpop.f32.mrb[0].mxu0
    %v2030 = vpop.f32.mrb[0].mxu0
    %v2031 = vadd.f32 0.0, %v2030
    %v2032 = vpop.f32.mrb[0].mxu0
    %2033 = vmatprep.mubr.bf16.mxu0 0
    %2034 = vmatmul.mubr.bf16.gmra.mrb[0].mxu0 %v926
    %v2035 = vpop.f32.mrb[0].mxu0
    %v2036 = vadd.f32 0.0, %v2035
    %v2037 = vpop.f32.mrb[0].mxu0
    %v2038 = vpop.f32.mrb[0].mxu0
    %v2039 = vadd.f32 0.0, %v2038
    %v2040 = vpop.f32.mrb[0].mxu0
    %2041 = vdwg.mxu0
    %v2042 = vpack.c.bf16 %v966, %v963
    %v2043 = vpack.c.bf16 %v974, %v971
    %v2044 = vpack.c.bf16 %v982, %v979
    %v2045 = vpack.c.bf16 %v990, %v987
    %v2046 = vpack.c.bf16 %v998, %v995
    %v2047 = vpack.c.bf16 %v1006, %v1003
    %v2048 = vpack.c.bf16 %v1014, %v1011
    %v2049 = vpack.c.bf16 %v1022, %v1019
    %v2050 = vpack.c.bf16 %v1030, %v1027
    %v2051 = vpack.c.bf16 %v1038, %v1035
    %v2052 = vpack.c.bf16 %v1046, %v1043
    %v2053 = vpack.c.bf16 %v1054, %v1051
    %v2054 = vpack.c.bf16 %v1062, %v1059
    %v2055 = vpack.c.bf16 %v1070, %v1067
    %v2056 = vpack.c.bf16 %v1078, %v1075
    %v2057 = vpack.c.bf16 %v1086, %v1083
    %v2058 = vpack.c.bf16 %v1094, %v1091
    %v2059 = vpack.c.bf16 %v1102, %v1099
    %v2060 = vpack.c.bf16 %v1110, %v1107
    %v2061 = vpack.c.bf16 %v1118, %v1115
    %v2062 = vpack.c.bf16 %v1126, %v1123
    %v2063 = vpack.c.bf16 %v1134, %v1131
    %v2064 = vpack.c.bf16 %v1142, %v1139
    %v2065 = vpack.c.bf16 %v1150, %v1147
    %v2066 = vpack.c.bf16 %v1158, %v1155
    %v2067 = vpack.c.bf16 %v1166, %v1163
    %v2068 = vpack.c.bf16 %v1174, %v1171
    %v2069 = vpack.c.bf16 %v1182, %v1179
    %v2070 = vpack.c.bf16 %v1190, %v1187
    %v2071 = vpack.c.bf16 %v1198, %v1195
    %v2072 = vpack.c.bf16 %v1206, %v1203
    %v2073 = vpack.c.bf16 %v1214, %v1211
    %v2074 = vpack.c.bf16 %v1222, %v1219
    %v2075 = vpack.c.bf16 %v1230, %v1227
    %v2076 = vpack.c.bf16 %v1238, %v1235
    %v2077 = vpack.c.bf16 %v1246, %v1243
    %v2078 = vpack.c.bf16 %v1254, %v1251
    %v2079 = vpack.c.bf16 %v1262, %v1259
    %v2080 = vpack.c.bf16 %v1270, %v1267
    %v2081 = vpack.c.bf16 %v1278, %v1275
    %v2082 = vpack.c.bf16 %v1286, %v1283
    %v2083 = vpack.c.bf16 %v1294, %v1291
    %v2084 = vpack.c.bf16 %v1302, %v1299
    %v2085 = vpack.c.bf16 %v1310, %v1307
    %v2086 = vpack.c.bf16 %v1318, %v1315
    %v2087 = vpack.c.bf16 %v1326, %v1323
    %v2088 = vpack.c.bf16 %v1334, %v1331
    %v2089 = vpack.c.bf16 %v1342, %v1339
    %v2090 = vpack.c.bf16 %v1350, %v1347
    %v2091 = vpack.c.bf16 %v1358, %v1355
    %v2092 = vpack.c.bf16 %v1366, %v1363
    %v2093 = vpack.c.bf16 %v1374, %v1371
    %v2094 = vpack.c.bf16 %v1382, %v1379
    %v2095 = vpack.c.bf16 %v1390, %v1387
    %v2096 = vpack.c.bf16 %v1398, %v1395
    %v2097 = vpack.c.bf16 %v1406, %v1403
    %v2098 = vpack.c.bf16 %v1414, %v1411
    %v2099 = vpack.c.bf16 %v1422, %v1419
    %v2100 = vpack.c.bf16 %v1430, %v1427
    %v2101 = vpack.c.bf16 %v1438, %v1435
    %v2102 = vpack.c.bf16 %v1446, %v1443
    %v2103 = vpack.c.bf16 %v1454, %v1451
    %v2104 = vpack.c.bf16 %v1462, %v1459
    %v2105 = vpack.c.bf16 %v1470, %v1467
    %v2106 = vpack.c.bf16 %v1535, %v1532
    %v2107 = vpack.c.bf16 %v1543, %v1540
    %v2108 = vpack.c.bf16 %v1551, %v1548
    %v2109 = vpack.c.bf16 %v1559, %v1556
    %v2110 = vpack.c.bf16 %v1567, %v1564
    %v2111 = vpack.c.bf16 %v1575, %v1572
    %v2112 = vpack.c.bf16 %v1583, %v1580
    %v2113 = vpack.c.bf16 %v1591, %v1588
    %v2114 = vpack.c.bf16 %v1599, %v1596
    %v2115 = vpack.c.bf16 %v1607, %v1604
    %v2116 = vpack.c.bf16 %v1615, %v1612
    %v2117 = vpack.c.bf16 %v1623, %v1620
    %v2118 = vpack.c.bf16 %v1631, %v1628
    %v2119 = vpack.c.bf16 %v1639, %v1636
    %v2120 = vpack.c.bf16 %v1647, %v1644
    %v2121 = vpack.c.bf16 %v1655, %v1652
    %v2122 = vpack.c.bf16 %v1663, %v1660
    %v2123 = vpack.c.bf16 %v1671, %v1668
    %v2124 = vpack.c.bf16 %v1679, %v1676
    %v2125 = vpack.c.bf16 %v1687, %v1684
    %v2126 = vpack.c.bf16 %v1695, %v1692
    %v2127 = vpack.c.bf16 %v1703, %v1700
    %v2128 = vpack.c.bf16 %v1711, %v1708
    %v2129 = vpack.c.bf16 %v1719, %v1716
    %v2130 = vpack.c.bf16 %v1727, %v1724
    %v2131 = vpack.c.bf16 %v1735, %v1732
    %v2132 = vpack.c.bf16 %v1743, %v1740
    %v2133 = vpack.c.bf16 %v1751, %v1748
    %v2134 = vpack.c.bf16 %v1759, %v1756
    %v2135 = vpack.c.bf16 %v1767, %v1764
    %v2136 = vpack.c.bf16 %v1775, %v1772
    %v2137 = vpack.c.bf16 %v1783, %v1780
    %v2138 = vpack.c.bf16 %v1791, %v1788
    %v2139 = vpack.c.bf16 %v1799, %v1796
    %v2140 = vpack.c.bf16 %v1807, %v1804
    %v2141 = vpack.c.bf16 %v1815, %v1812
    %v2142 = vpack.c.bf16 %v1823, %v1820
    %v2143 = vpack.c.bf16 %v1831, %v1828
    %v2144 = vpack.c.bf16 %v1839, %v1836
    %v2145 = vpack.c.bf16 %v1847, %v1844
    %v2146 = vpack.c.bf16 %v1855, %v1852
    %v2147 = vpack.c.bf16 %v1863, %v1860
    %v2148 = vpack.c.bf16 %v1871, %v1868
    %v2149 = vpack.c.bf16 %v1879, %v1876
    %v2150 = vpack.c.bf16 %v1887, %v1884
    %v2151 = vpack.c.bf16 %v1895, %v1892
    %v2152 = vpack.c.bf16 %v1903, %v1900
    %v2153 = vpack.c.bf16 %v1911, %v1908
    %v2154 = vpack.c.bf16 %v1919, %v1916
    %v2155 = vpack.c.bf16 %v1927, %v1924
    %v2156 = vpack.c.bf16 %v1935, %v1932
    %v2157 = vpack.c.bf16 %v1943, %v1940
    %v2158 = vpack.c.bf16 %v1951, %v1948
    %v2159 = vpack.c.bf16 %v1959, %v1956
    %v2160 = vpack.c.bf16 %v1967, %v1964
    %v2161 = vpack.c.bf16 %v1975, %v1972
    %v2162 = vpack.c.bf16 %v1983, %v1980
    %v2163 = vpack.c.bf16 %v1991, %v1988
    %v2164 = vpack.c.bf16 %v1999, %v1996
    %v2165 = vpack.c.bf16 %v2007, %v2004
    %v2166 = vpack.c.bf16 %v2015, %v2012
    %v2167 = vpack.c.bf16 %v2023, %v2020
    %v2168 = vpack.c.bf16 %v2031, %v2028
    %v2169 = vpack.c.bf16 %v2039, %v2036
    %v2170 = vld [vmem:[%s1] sm:$0xff]
    %v2171 = vld [vmem:[%s1 + $0x8] sm:$0xff]
    %v2172 = vld [vmem:[%s1 + $0x10] sm:$0xff]
    %v2173 = vld [vmem:[%s1 + $0x18] sm:$0xff]
    %2174 = vrot.lane.b32.xlu0 %v2170, 64
    %v2175 = vpop.permute.xlu0 %2174
    %2176 = vrot.lane.b32.xlu0 %v2171, 64
    %v2177 = vpop.permute.xlu0 %2176
    %2178 = vrot.lane.b32.xlu0 %v2172, 64
    %v2179 = vpop.permute.xlu0 %2178
    %2180 = vrot.lane.b32.xlu0 %v2173, 64
    %v2181 = vpop.permute.xlu0 %2180
    %v2182 = vmax.f32 %v2175, 0.0
    %v2183 = vmax.f32 %v2177, 0.0
    %v2184 = vmax.f32 %v2179, 0.0
    %v2185 = vmax.f32 %v2181, 0.0
    %vm2186 = vcmp.ne.f32.partialorder %v2175, %v2175
    %vm2187 = vcmp.ne.f32.partialorder %v2177, %v2177
    %vm2188 = vcmp.ne.f32.partialorder %v2179, %v2179
    %vm2189 = vcmp.ne.f32.partialorder %v2181, %v2181
    %v2190 = vadd.f32 %v2175, 0.0
    %v2191 = vadd.f32 %v2177, 0.0
    %v2192 = vadd.f32 %v2179, 0.0
    %v2193 = vadd.f32 %v2181, 0.0
    %v2194 = vand.u32 2147483647, %v2175
    %v2195 = vand.u32 2147483647, %v2177
    %v2196 = vand.u32 2147483647, %v2179
    %v2197 = vand.u32 2147483647, %v2181
    %v2198 = vsub.f32 0.0, %v2194
    %v2199 = vsub.f32 0.0, %v2195
    %v2200 = vsub.f32 0.0, %v2196
    %v2201 = vsub.f32 0.0, %v2197
    %v2202 = vmul.f32 %v2198, 1.442695
    %v2203 = vpow.pop %v2202
    %v2204 = vmul.f32 %v2199, 1.442695
    %v2205 = vpow.pop %v2204
    %v2206 = vmul.f32 %v2200, 1.442695
    %v2207 = vpow.pop %v2206
    %v2208 = vmul.f32 %v2201, 1.442695
    %v2209 = vpow.pop %v2208
    %v2210 = vadd.f32 %v2203, 1.0
    %v2211 = vlog2.pop %v2210
    %v2212 = vmul.f32 %v2211, 0.6931472
    %v2213 = vmul.f32 -0.5, %v2203
    %v2214 = vadd.f32 %v2213, 1.0
    %v2215 = vmul.f32 %v2214, %v2203
    %v2216 = vand.u32 2147483647, %v2203
    %vm2217 = vcmp.lt.f32.partialorder %v2216, 0.0004427343
    %v2218 = vsel %vm2217, %v2215, %v2212
    %v2219 = vadd.f32 %v2205, 1.0
    %v2220 = vlog2.pop %v2219
    %v2221 = vmul.f32 %v2220, 0.6931472
    %v2222 = vmul.f32 -0.5, %v2205
    %v2223 = vadd.f32 %v2222, 1.0
    %v2224 = vmul.f32 %v2223, %v2205
    %v2225 = vand.u32 2147483647, %v2205
    %vm2226 = vcmp.lt.f32.partialorder %v2225, 0.0004427343
    %v2227 = vsel %vm2226, %v2224, %v2221
    %v2228 = vadd.f32 %v2207, 1.0
    %v2229 = vlog2.pop %v2228
    %v2230 = vmul.f32 %v2229, 0.6931472
    %v2231 = vmul.f32 -0.5, %v2207
    %v2232 = vadd.f32 %v2231, 1.0
    %v2233 = vmul.f32 %v2232, %v2207
    %v2234 = vand.u32 2147483647, %v2207
    %vm2235 = vcmp.lt.f32.partialorder %v2234, 0.0004427343
    %v2236 = vsel %vm2235, %v2233, %v2230
    %v2237 = vadd.f32 %v2209, 1.0
    %v2238 = vlog2.pop %v2237
    %v2239 = vmul.f32 %v2238, 0.6931472
    %v2240 = vmul.f32 -0.5, %v2209
    %v2241 = vadd.f32 %v2240, 1.0
    %v2242 = vmul.f32 %v2241, %v2209
    %v2243 = vand.u32 2147483647, %v2209
    %vm2244 = vcmp.lt.f32.partialorder %v2243, 0.0004427343
    %v2245 = vsel %vm2244, %v2242, %v2239
    %v2246 = vadd.f32 %v2182, %v2218
    %v2247 = vadd.f32 %v2183, %v2227
    %v2248 = vadd.f32 %v2184, %v2236
    %v2249 = vadd.f32 %v2185, %v2245
    %v2250 = vsel %vm2186, %v2190, %v2246
    %v2251 = vsel %vm2187, %v2191, %v2247
    %v2252 = vsel %vm2188, %v2192, %v2248
    %v2253 = vsel %vm2189, %v2193, %v2249
    %v2254 = vadd.f32 %v2250, 1e-08
    %v2255 = vadd.f32 %v2251, 1e-08
    %v2256 = vadd.f32 %v2252, 1e-08
    %v2257 = vadd.f32 %v2253, 1e-08
    %v2258 = vld [vmem:[#allocation2] sm:$0xff]
    %v2259 = vld [vmem:[#allocation2 + $0x8] sm:$0xff]
    %v2260 = vld [vmem:[#allocation2 + $0x10] sm:$0xff]
    %v2261 = vld [vmem:[#allocation2 + $0x18] sm:$0xff]
    %v2262 = vmul.f32 %v2254, %v2258
    %v2263 = vmul.f32 %v2255, %v2259
    %v2264 = vmul.f32 %v2256, %v2260
    %v2265 = vmul.f32 %v2257, %v2261
    %v2266 = vadd.f32 %v2170, %v2262
    %v2267 = vadd.f32 %v2171, %v2263
    %v2268 = vadd.f32 %v2172, %v2264
    %v2269 = vadd.f32 %v2173, %v2265
    %2270 = vadd.xlane.f32.xlu0 %v2266
    %v2271 = vpop.xlane.xlu0 %2270
    %2272 = vadd.xlane.f32.xlu0 %v2267
    %v2273 = vpop.xlane.xlu0 %2272
    %2274 = vadd.xlane.f32.xlu0 %v2268
    %v2275 = vpop.xlane.xlu0 %2274
    %2276 = vadd.xlane.f32.xlu0 %v2269
    %v2277 = vpop.xlane.xlu0 %2276
    %v2278 = vsel %vm262, 1, 0
    %vm2279 = vcmp.eq.s32.totalorder %v2278, 1
    %v2280 = vsel %vm2279, %v2266, 0.0
    %v2281 = vsel %vm2279, %v2267, 0.0
    %v2282 = vsel %vm2279, %v2268, 0.0
    %v2283 = vsel %vm2279, %v2269, 0.0
    %2284 = vadd.xlane.f32.xlu0 %v2280
    %v2285 = vpop.xlane.xlu0 %2284
    %2286 = vadd.xlane.f32.xlu0 %v2281
    %v2287 = vpop.xlane.xlu0 %2286
    %2288 = vadd.xlane.f32.xlu0 %v2282
    %v2289 = vpop.xlane.xlu0 %2288
    %2290 = vadd.xlane.f32.xlu0 %v2283
    %v2291 = vpop.xlane.xlu0 %2290
    %v2292 = vsub.f32 %v2271, %v2285
    %v2293 = vsub.f32 %v2273, %v2287
    %v2294 = vsub.f32 %v2275, %v2289
    %v2295 = vsub.f32 %v2277, %v2291
    %v2296 = vsel %vm2279, %v2285, %v2292
    %v2297 = vsel %vm2279, %v2287, %v2293
    %v2298 = vsel %vm2279, %v2289, %v2294
    %v2299 = vsel %vm2279, %v2291, %v2295
    %v2300 = vmul.f32 %v2296, 0.015625
    %v2301 = vmul.f32 %v2297, 0.015625
    %v2302 = vmul.f32 %v2298, 0.015625
    %v2303 = vmul.f32 %v2299, 0.015625
    %v2304 = vsub.f32 %v2266, %v2300
    %v2305 = vsub.f32 %v2267, %v2301
    %v2306 = vsub.f32 %v2268, %v2302
    %v2307 = vsub.f32 %v2269, %v2303
    %v2308 = vmul.f32 %v2304, %v2304
    %v2309 = vmul.f32 %v2305, %v2305
    %v2310 = vmul.f32 %v2306, %v2306
    %v2311 = vmul.f32 %v2307, %v2307
    %2312 = vadd.xlane.f32.xlu0 %v2308
    %v2313 = vpop.xlane.xlu0 %2312
    %2314 = vadd.xlane.f32.xlu0 %v2309
    %v2315 = vpop.xlane.xlu0 %2314
    %2316 = vadd.xlane.f32.xlu0 %v2310
    %v2317 = vpop.xlane.xlu0 %2316
    %2318 = vadd.xlane.f32.xlu0 %v2311
    %v2319 = vpop.xlane.xlu0 %2318
    %v2320 = vsel %vm2279, %v2308, 0.0
    %v2321 = vsel %vm2279, %v2309, 0.0
    %v2322 = vsel %vm2279, %v2310, 0.0
    %v2323 = vsel %vm2279, %v2311, 0.0
    %2324 = vadd.xlane.f32.xlu0 %v2320
    %v2325 = vpop.xlane.xlu0 %2324
    %2326 = vadd.xlane.f32.xlu0 %v2321
    %v2327 = vpop.xlane.xlu0 %2326
    %2328 = vadd.xlane.f32.xlu0 %v2322
    %v2329 = vpop.xlane.xlu0 %2328
    %2330 = vadd.xlane.f32.xlu0 %v2323
    %v2331 = vpop.xlane.xlu0 %2330
    %v2332 = vsub.f32 %v2313, %v2325
    %v2333 = vsub.f32 %v2315, %v2327
    %v2334 = vsub.f32 %v2317, %v2329
    %v2335 = vsub.f32 %v2319, %v2331
    %v2336 = vsel %vm2279, %v2325, %v2332
    %v2337 = vsel %vm2279, %v2327, %v2333
    %v2338 = vsel %vm2279, %v2329, %v2334
    %v2339 = vsel %vm2279, %v2331, %v2335
    %v2340 = vmul.f32 %v2336, 0.015625
    %v2341 = vmul.f32 %v2337, 0.015625
    %v2342 = vmul.f32 %v2338, 0.015625
    %v2343 = vmul.f32 %v2339, 0.015625
    %v2344 = vadd.f32 %v2340, 1e-05
    %v2345 = vadd.f32 %v2341, 1e-05
    %v2346 = vadd.f32 %v2342, 1e-05
    %v2347 = vadd.f32 %v2343, 1e-05
    %v2348 = vrsqrt.pop %v2344
    %v2349 = vrsqrt.pop %v2345
    %v2350 = vrsqrt.pop %v2346
    %v2351 = vrsqrt.pop %v2347
    %v2352 = vmul.f32 %v2304, %v2348
    %v2353 = vmul.f32 %v2305, %v2349
    %v2354 = vmul.f32 %v2306, %v2350
    %v2355 = vmul.f32 %v2307, %v2351
    %v2357 = vlaneseq
    %v2358 = vshrl.u32 %v2357, 7
    %v2359 = vsub.s32 0, %v2358
    %v2360 = vrot.slane %v252, %v2359
    %v2362 = vmul.f32 %v2352, %v2360
    %v2363 = vmul.f32 %v2353, %v2360
    %v2364 = vmul.f32 %v2354, %v2360
    %v2365 = vmul.f32 %v2355, %v2360
    %v2367 = vlaneseq
    %v2368 = vshrl.u32 %v2367, 7
    %v2369 = vsub.s32 0, %v2368
    %v2370 = vrot.slane %v253, %v2369
    %v2372 = vadd.f32 %v2362, %v2370
    %v2373 = vadd.f32 %v2363, %v2370
    %v2374 = vadd.f32 %v2364, %v2370
    %v2375 = vadd.f32 %v2365, %v2370
    %2376 = vmatprep.subr.mxu0 0.0
    %2377 = vmatpush1.msra.mxu0 %v84
    %2378 = vmatprep.subr.mxu0 0.0
    %2379 = vmatpush1.msra.mxu0 %v85
    %2380 = vmatprep.subr.mxu0 0.0
    %2381 = vmatpush1.msra.mxu0 %v86
    %2382 = vmatprep.subr.mxu0 0.0
    %2383 = vmatpush1.msra.mxu0 %v87
    %2384 = vmatprep.subr.mxu0 0.0
    %2385 = vmatpush1.msra.mxu0 %v88
    %2386 = vmatprep.subr.mxu0 0.0
    %2387 = vmatpush1.msra.mxu0 %v89
    %2388 = vmatprep.subr.mxu0 0.0
    %2389 = vmatpush1.msra.mxu0 %v90
    %2390 = vmatprep.subr.mxu0 0.0
    %2391 = vmatpush1.msra.mxu0 %v91
    %2392 = vmatprep.subr.mxu0 0.0
    %2393 = vmatpush1.msra.mxu0 %v92
    %2394 = vmatprep.subr.mxu0 0.0
    %2395 = vmatpush1.msra.mxu0 %v93
    %2396 = vmatprep.subr.mxu0 0.0
    %2397 = vmatpush1.msra.mxu0 %v94
    %2398 = vmatprep.subr.mxu0 0.0
    %2399 = vmatpush1.msra.mxu0 %v95
    %2400 = vmatprep.subr.mxu0 0.0
    %2401 = vmatpush1.msra.mxu0 %v96
    %2402 = vmatprep.subr.mxu0 0.0
    %2403 = vmatpush1.msra.mxu0 %v97
    %2404 = vmatprep.subr.mxu0 0.0
    %2405 = vmatpush1.msra.mxu0 %v98
    %2406 = vmatprep.subr.mxu0 0.0
    %2407 = vmatpush1.msra.mxu0 %v99
    %2408 = vmatprep.subr.mxu0 0.0
    %2409 = vmatpush1.msra.mxu0 0.0
    %2410 = vmatprep.subr.mxu0 0.0
    %2411 = vmatpush1.msra.mxu0 0.0
    %2412 = vmatprep.subr.mxu0 0.0
    %2413 = vmatpush1.msra.mxu0 0.0
    %2414 = vmatprep.subr.mxu0 0.0
    %2415 = vmatpush1.msra.mxu0 0.0
    %2416 = vmatprep.subr.mxu0 0.0
    %2417 = vmatpush1.msra.mxu0 0.0
    %2418 = vmatprep.subr.mxu0 0.0
    %2419 = vmatpush1.msra.mxu0 0.0
    %2420 = vmatprep.subr.mxu0 0.0
    %2421 = vmatpush1.msra.mxu0 0.0
    %2422 = vmatprep.subr.mxu0 0.0
    %2423 = vmatpush1.msra.mxu0 0.0
    %2424 = vmatprep.subr.mxu0 0.0
    %2425 = vmatpush1.msra.mxu0 0.0
    %2426 = vmatprep.subr.mxu0 0.0
    %2427 = vmatpush1.msra.mxu0 0.0
    %2428 = vmatprep.subr.mxu0 0.0
    %2429 = vmatpush1.msra.mxu0 0.0
    %2430 = vmatprep.subr.mxu0 0.0
    %2431 = vmatpush1.msra.mxu0 0.0
    %2432 = vmatprep.subr.mxu0 0.0
    %2433 = vmatpush1.msra.mxu0 0.0
    %2434 = vmatprep.subr.mxu0 0.0
    %2435 = vmatpush1.msra.mxu0 0.0
    %2436 = vmatprep.subr.mxu0 0.0
    %2437 = vmatpush1.msra.mxu0 0.0
    %2438 = vmatprep.subr.mxu0 0.0
    %2439 = vmatpush1.msra.mxu0 0.0
    %2440 = vmatprep.mubr.f32.mxu0 0.0
    %2441 = vmatmul.mubr.f32.gmra.mrb[0].mxu0 %v2372
    %v2442 = vpop.f32.mrb[0].mxu0
    %v2443 = vadd.f32 0.0, %v2442
    %v2444 = vpop.f32.mrb[0].mxu0
    %2445 = vmatprep.mubr.f32.mxu0 0.0
    %2446 = vmatmul.mubr.f32.gmra.mrb[0].mxu0 %v2373
    %v2447 = vpop.f32.mrb[0].mxu0
    %v2448 = vadd.f32 0.0, %v2447
    %v2449 = vpop.f32.mrb[0].mxu0
    %2450 = vmatprep.mubr.f32.mxu0 0.0
    %2451 = vmatmul.mubr.f32.gmra.mrb[0].mxu0 %v2374
    %v2452 = vpop.f32.mrb[0].mxu0
    %v2453 = vadd.f32 0.0, %v2452
    %v2454 = vpop.f32.mrb[0].mxu0
    %2455 = vmatprep.mubr.f32.mxu0 0.0
    %2456 = vmatmul.mubr.f32.gmra.mrb[0].mxu0 %v2375
    %v2457 = vpop.f32.mrb[0].mxu0
    %v2458 = vadd.f32 0.0, %v2457
    %v2459 = vpop.f32.mrb[0].mxu0
    %2460 = vdwg.mxu0
    %v2461 = vmul.f32 %v2443, 0.125
    %v2462 = vmul.f32 %v2448, 0.125
    %v2463 = vmul.f32 %v2453, 0.125
    %v2464 = vmul.f32 %v2458, 0.125
    %v2465 = vpack.c.bf16 %v2461, %v2461
    %v2466 = vpack.c.bf16 %v2462, %v2462
    %v2467 = vpack.c.bf16 %v2463, %v2463
    %v2468 = vpack.c.bf16 %v2464, %v2464
    %v2470 = vsel %vm735, %v2465, 0
    %v2473 = vsel %vm735, %v2042, 0
    %v2476 = vsel %vm735, %v2043, 0
    %v2479 = vsel %vm735, %v2044, 0
    %v2482 = vsel %vm735, %v2045, 0
    %v2485 = vsel %vm735, %v2046, 0
    %v2488 = vsel %vm735, %v2047, 0
    %v2491 = vsel %vm735, %v2048, 0
    %v2494 = vsel %vm735, %v2049, 0
    %v2497 = vsel %vm735, %v2050, 0
    %v2500 = vsel %vm735, %v2051, 0
    %v2503 = vsel %vm735, %v2052, 0
    %v2506 = vsel %vm735, %v2053, 0
    %v2509 = vsel %vm735, %v2054, 0
    %v2512 = vsel %vm735, %v2055, 0
    %v2515 = vsel %vm735, %v2056, 0
    %v2518 = vsel %vm735, %v2057, 0
    %2520 = vmatprep.subr.bf16.mxu0 0
    %2521 = vmatpush1.bf16.xpose.msra.mxu0 %v2473
    %2522 = vmatprep.subr.bf16.mxu0 0
    %2523 = vmatpush1.bf16.xpose.msra.mxu0 %v2476
    %2524 = vmatprep.subr.bf16.mxu0 0
    %2525 = vmatpush1.bf16.xpose.msra.mxu0 %v2479
    %2526 = vmatprep.subr.bf16.mxu0 0
    %2527 = vmatpush1.bf16.xpose.msra.mxu0 %v2482
    %2528 = vmatprep.subr.bf16.mxu0 0
    %2529 = vmatpush1.bf16.xpose.msra.mxu0 %v2485
    %2530 = vmatprep.subr.bf16.mxu0 0
    %2531 = vmatpush1.bf16.xpose.msra.mxu0 %v2488
    %2532 = vmatprep.subr.bf16.mxu0 0
    %2533 = vmatpush1.bf16.xpose.msra.mxu0 %v2491
    %2534 = vmatprep.subr.bf16.mxu0 0
    %2535 = vmatpush1.bf16.xpose.msra.mxu0 %v2494
    %2536 = vmatprep.subr.bf16.mxu0 0
    %2537 = vmatpush1.bf16.xpose.msra.mxu0 %v2497
    %2538 = vmatprep.subr.bf16.mxu0 0
    %2539 = vmatpush1.bf16.xpose.msra.mxu0 %v2500
    %2540 = vmatprep.subr.bf16.mxu0 0
    %2541 = vmatpush1.bf16.xpose.msra.mxu0 %v2503
    %2542 = vmatprep.subr.bf16.mxu0 0
    %2543 = vmatpush1.bf16.xpose.msra.mxu0 %v2506
    %2544 = vmatprep.subr.bf16.mxu0 0
    %2545 = vmatpush1.bf16.xpose.msra.mxu0 %v2509
    %2546 = vmatprep.subr.bf16.mxu0 0
    %2547 = vmatpush1.bf16.xpose.msra.mxu0 %v2512
    %2548 = vmatprep.subr.bf16.mxu0 0
    %2549 = vmatpush1.bf16.xpose.msra.mxu0 %v2515
    %2550 = vmatprep.subr.bf16.mxu0 0
    %2551 = vmatpush1.bf16.xpose.msra.mxu0 %v2518
    %2552 = vmatprep.mubr.bf16.mxu0 0
    %2553 = vmatmul.mubr.bf16.gmra.mrb[0].mxu0 %v2470
    %v2554 = vpop.f32.mrb[0].mxu0
    %v2555 = vadd.f32 0.0, %v2554
    %v2556 = vpop.f32.mrb[0].mxu0
    %v2557 = vadd.f32 0.0, %v2556
    %v2558 = vpop.f32.mrb[0].mxu0
    %v2559 = vpop.f32.mrb[0].mxu0
    %2560 = vdwg.mxu0
    %v2562 = vsel %vm735, %v2466, 0
    %v2565 = vsel %vm735, %v2058, 0
    %v2568 = vsel %vm735, %v2059, 0
    %v2571 = vsel %vm735, %v2060, 0
    %v2574 = vsel %vm735, %v2061, 0
    %v2577 = vsel %vm735, %v2062, 0
    %v2580 = vsel %vm735, %v2063, 0
    %v2583 = vsel %vm735, %v2064, 0
    %v2586 = vsel %vm735, %v2065, 0
    %v2589 = vsel %vm735, %v2066, 0
    %v2592 = vsel %vm735, %v2067, 0
    %v2595 = vsel %vm735, %v2068, 0
    %v2598 = vsel %vm735, %v2069, 0
    %v2601 = vsel %vm735, %v2070, 0
    %v2604 = vsel %vm735, %v2071, 0
    %v2607 = vsel %vm735, %v2072, 0
    %v2610 = vsel %vm735, %v2073, 0
    %2612 = vmatprep.subr.bf16.mxu0 0
    %2613 = vmatpush1.bf16.xpose.msra.mxu0 %v2565
    %2614 = vmatprep.subr.bf16.mxu0 0
    %2615 = vmatpush1.bf16.xpose.msra.mxu0 %v2568
    %2616 = vmatprep.subr.bf16.mxu0 0
    %2617 = vmatpush1.bf16.xpose.msra.mxu0 %v2571
    %2618 = vmatprep.subr.bf16.mxu0 0
    %2619 = vmatpush1.bf16.xpose.msra.mxu0 %v2574
    %2620 = vmatprep.subr.bf16.mxu0 0
    %2621 = vmatpush1.bf16.xpose.msra.mxu0 %v2577
    %2622 = vmatprep.subr.bf16.mxu0 0
    %2623 = vmatpush1.bf16.xpose.msra.mxu0 %v2580
    %2624 = vmatprep.subr.bf16.mxu0 0
    %2625 = vmatpush1.bf16.xpose.msra.mxu0 %v2583
    %2626 = vmatprep.subr.bf16.mxu0 0
    %2627 = vmatpush1.bf16.xpose.msra.mxu0 %v2586
    %2628 = vmatprep.subr.bf16.mxu0 0
    %2629 = vmatpush1.bf16.xpose.msra.mxu0 %v2589
    %2630 = vmatprep.subr.bf16.mxu0 0
    %2631 = vmatpush1.bf16.xpose.msra.mxu0 %v2592
    %2632 = vmatprep.subr.bf16.mxu0 0
    %2633 = vmatpush1.bf16.xpose.msra.mxu0 %v2595
    %2634 = vmatprep.subr.bf16.mxu0 0
    %2635 = vmatpush1.bf16.xpose.msra.mxu0 %v2598
    %2636 = vmatprep.subr.bf16.mxu0 0
    %2637 = vmatpush1.bf16.xpose.msra.mxu0 %v2601
    %2638 = vmatprep.subr.bf16.mxu0 0
    %2639 = vmatpush1.bf16.xpose.msra.mxu0 %v2604
    %2640 = vmatprep.subr.bf16.mxu0 0
    %2641 = vmatpush1.bf16.xpose.msra.mxu0 %v2607
    %2642 = vmatprep.subr.bf16.mxu0 0
    %2643 = vmatpush1.bf16.xpose.msra.mxu0 %v2610
    %2644 = vmatprep.mubr.bf16.mxu0 0
    %2645 = vmatmul.mubr.bf16.gmra.mrb[0].mxu0 %v2562
    %v2646 = vpop.f32.mrb[0].mxu0
    %v2647 = vadd.f32 0.0, %v2646
    %v2648 = vpop.f32.mrb[0].mxu0
    %v2649 = vadd.f32 0.0, %v2648
    %v2650 = vpop.f32.mrb[0].mxu0
    %v2651 = vpop.f32.mrb[0].mxu0
    %2652 = vdwg.mxu0
    %v2654 = vsel %vm735, %v2467, 0
    %v2657 = vsel %vm735, %v2074, 0
    %v2660 = vsel %vm735, %v2075, 0
    %v2663 = vsel %vm735, %v2076, 0
    %v2666 = vsel %vm735, %v2077, 0
    %v2669 = vsel %vm735, %v2078, 0
    %v2672 = vsel %vm735, %v2079, 0
    %v2675 = vsel %vm735, %v2080, 0
    %v2678 = vsel %vm735, %v2081, 0
    %v2681 = vsel %vm735, %v2082, 0
    %v2684 = vsel %vm735, %v2083, 0
    %v2687 = vsel %vm735, %v2084, 0
    %v2690 = vsel %vm735, %v2085, 0
    %v2693 = vsel %vm735, %v2086, 0
    %v2696 = vsel %vm735, %v2087, 0
    %v2699 = vsel %vm735, %v2088, 0
    %v2702 = vsel %vm735, %v2089, 0
    %2704 = vmatprep.subr.bf16.mxu0 0
    %2705 = vmatpush1.bf16.xpose.msra.mxu0 %v2657
    %2706 = vmatprep.subr.bf16.mxu0 0
    %2707 = vmatpush1.bf16.xpose.msra.mxu0 %v2660
    %2708 = vmatprep.subr.bf16.mxu0 0
    %2709 = vmatpush1.bf16.xpose.msra.mxu0 %v2663
    %2710 = vmatprep.subr.bf16.mxu0 0
    %2711 = vmatpush1.bf16.xpose.msra.mxu0 %v2666
    %2712 = vmatprep.subr.bf16.mxu0 0
    %2713 = vmatpush1.bf16.xpose.msra.mxu0 %v2669
    %2714 = vmatprep.subr.bf16.mxu0 0
    %2715 = vmatpush1.bf16.xpose.msra.mxu0 %v2672
    %2716 = vmatprep.subr.bf16.mxu0 0
    %2717 = vmatpush1.bf16.xpose.msra.mxu0 %v2675
    %2718 = vmatprep.subr.bf16.mxu0 0
    %2719 = vmatpush1.bf16.xpose.msra.mxu0 %v2678
    %2720 = vmatprep.subr.bf16.mxu0 0
    %2721 = vmatpush1.bf16.xpose.msra.mxu0 %v2681
    %2722 = vmatprep.subr.bf16.mxu0 0
    %2723 = vmatpush1.bf16.xpose.msra.mxu0 %v2684
    %2724 = vmatprep.subr.bf16.mxu0 0
    %2725 = vmatpush1.bf16.xpose.msra.mxu0 %v2687
    %2726 = vmatprep.subr.bf16.mxu0 0
    %2727 = vmatpush1.bf16.xpose.msra.mxu0 %v2690
    %2728 = vmatprep.subr.bf16.mxu0 0
    %2729 = vmatpush1.bf16.xpose.msra.mxu0 %v2693
    %2730 = vmatprep.subr.bf16.mxu0 0
    %2731 = vmatpush1.bf16.xpose.msra.mxu0 %v2696
    %2732 = vmatprep.subr.bf16.mxu0 0
    %2733 = vmatpush1.bf16.xpose.msra.mxu0 %v2699
    %2734 = vmatprep.subr.bf16.mxu0 0
    %2735 = vmatpush1.bf16.xpose.msra.mxu0 %v2702
    %2736 = vmatprep.mubr.bf16.mxu0 0
    %2737 = vmatmul.mubr.bf16.gmra.mrb[0].mxu0 %v2654
    %v2738 = vpop.f32.mrb[0].mxu0
    %v2739 = vadd.f32 0.0, %v2738
    %v2740 = vpop.f32.mrb[0].mxu0
    %v2741 = vadd.f32 0.0, %v2740
    %v2742 = vpop.f32.mrb[0].mxu0
    %v2743 = vpop.f32.mrb[0].mxu0
    %2744 = vdwg.mxu0
    %v2746 = vsel %vm735, %v2468, 0
    %v2749 = vsel %vm735, %v2090, 0
    %v2752 = vsel %vm735, %v2091, 0
    %v2755 = vsel %vm735, %v2092, 0
    %v2758 = vsel %vm735, %v2093, 0
    %v2761 = vsel %vm735, %v2094, 0
    %v2764 = vsel %vm735, %v2095, 0
    %v2767 = vsel %vm735, %v2096, 0
    %v2770 = vsel %vm735, %v2097, 0
    %v2773 = vsel %vm735, %v2098, 0
    %v2776 = vsel %vm735, %v2099, 0
    %v2779 = vsel %vm735, %v2100, 0
    %v2782 = vsel %vm735, %v2101, 0
    %v2785 = vsel %vm735, %v2102, 0
    %v2788 = vsel %vm735, %v2103, 0
    %v2791 = vsel %vm735, %v2104, 0
    %v2794 = vsel %vm735, %v2105, 0
    %2796 = vmatprep.subr.bf16.mxu0 0
    %2797 = vmatpush1.bf16.xpose.msra.mxu0 %v2749
    %2798 = vmatprep.subr.bf16.mxu0 0
    %2799 = vmatpush1.bf16.xpose.msra.mxu0 %v2752
    %2800 = vmatprep.subr.bf16.mxu0 0
    %2801 = vmatpush1.bf16.xpose.msra.mxu0 %v2755
    %2802 = vmatprep.subr.bf16.mxu0 0
    %2803 = vmatpush1.bf16.xpose.msra.mxu0 %v2758
    %2804 = vmatprep.subr.bf16.mxu0 0
    %2805 = vmatpush1.bf16.xpose.msra.mxu0 %v2761
    %2806 = vmatprep.subr.bf16.mxu0 0
    %2807 = vmatpush1.bf16.xpose.msra.mxu0 %v2764
    %2808 = vmatprep.subr.bf16.mxu0 0
    %2809 = vmatpush1.bf16.xpose.msra.mxu0 %v2767
    %2810 = vmatprep.subr.bf16.mxu0 0
    %2811 = vmatpush1.bf16.xpose.msra.mxu0 %v2770
    %2812 = vmatprep.subr.bf16.mxu0 0
    %2813 = vmatpush1.bf16.xpose.msra.mxu0 %v2773
    %2814 = vmatprep.subr.bf16.mxu0 0
    %2815 = vmatpush1.bf16.xpose.msra.mxu0 %v2776
    %2816 = vmatprep.subr.bf16.mxu0 0
    %2817 = vmatpush1.bf16.xpose.msra.mxu0 %v2779
    %2818 = vmatprep.subr.bf16.mxu0 0
    %2819 = vmatpush1.bf16.xpose.msra.mxu0 %v2782
    %2820 = vmatprep.subr.bf16.mxu0 0
    %2821 = vmatpush1.bf16.xpose.msra.mxu0 %v2785
    %2822 = vmatprep.subr.bf16.mxu0 0
    %2823 = vmatpush1.bf16.xpose.msra.mxu0 %v2788
    %2824 = vmatprep.subr.bf16.mxu0 0
    %2825 = vmatpush1.bf16.xpose.msra.mxu0 %v2791
    %2826 = vmatprep.subr.bf16.mxu0 0
    %2827 = vmatpush1.bf16.xpose.msra.mxu0 %v2794
    %2828 = vmatprep.mubr.bf16.mxu0 0
    %2829 = vmatmul.mubr.bf16.gmra.mrb[0].mxu0 %v2746
    %v2830 = vpop.f32.mrb[0].mxu0
    %v2831 = vadd.f32 0.0, %v2830
    %v2832 = vpop.f32.mrb[0].mxu0
    %v2833 = vadd.f32 0.0, %v2832
    %v2834 = vpop.f32.mrb[0].mxu0
    %v2835 = vpop.f32.mrb[0].mxu0
    %2836 = vdwg.mxu0
    %v2837 = vrot.slane %v2555, 4
    %v2838 = vmax.f32 %v2555, %v2837
    %v2839 = vrot.slane %v2838, 2
    %v2840 = vmax.f32 %v2838, %v2839
    %v2841 = vrot.slane %v2840, 1
    %v2842 = vmax.f32 %v2840, %v2841
    %v2843 = vrot.slane %v2557, 4
    %v2844 = vmax.f32 %v2557, %v2843
    %v2845 = vrot.slane %v2844, 2
    %v2846 = vmax.f32 %v2844, %v2845
    %v2847 = vrot.slane %v2846, 1
    %v2848 = vmax.f32 %v2846, %v2847
    %v2849 = vrot.slane %v2647, 4
    %v2850 = vmax.f32 %v2647, %v2849
    %v2851 = vrot.slane %v2850, 2
    %v2852 = vmax.f32 %v2850, %v2851
    %v2853 = vrot.slane %v2852, 1
    %v2854 = vmax.f32 %v2852, %v2853
    %v2855 = vrot.slane %v2649, 4
    %v2856 = vmax.f32 %v2649, %v2855
    %v2857 = vrot.slane %v2856, 2
    %v2858 = vmax.f32 %v2856, %v2857
    %v2859 = vrot.slane %v2858, 1
    %v2860 = vmax.f32 %v2858, %v2859
    %v2861 = vrot.slane %v2739, 4
    %v2862 = vmax.f32 %v2739, %v2861
    %v2863 = vrot.slane %v2862, 2
    %v2864 = vmax.f32 %v2862, %v2863
    %v2865 = vrot.slane %v2864, 1
    %v2866 = vmax.f32 %v2864, %v2865
    %v2867 = vrot.slane %v2741, 4
    %v2868 = vmax.f32 %v2741, %v2867
    %v2869 = vrot.slane %v2868, 2
    %v2870 = vmax.f32 %v2868, %v2869
    %v2871 = vrot.slane %v2870, 1
    %v2872 = vmax.f32 %v2870, %v2871
    %v2873 = vrot.slane %v2831, 4
    %v2874 = vmax.f32 %v2831, %v2873
    %v2875 = vrot.slane %v2874, 2
    %v2876 = vmax.f32 %v2874, %v2875
    %v2877 = vrot.slane %v2876, 1
    %v2878 = vmax.f32 %v2876, %v2877
    %v2879 = vrot.slane %v2833, 4
    %v2880 = vmax.f32 %v2833, %v2879
    %v2881 = vrot.slane %v2880, 2
    %v2882 = vmax.f32 %v2880, %v2881
    %v2883 = vrot.slane %v2882, 1
    %v2884 = vmax.f32 %v2882, %v2883
    %v2885 = vsub.f32 %v2555, %v2842
    %v2886 = vsub.f32 %v2557, %v2848
    %v2887 = vsub.f32 %v2647, %v2854
    %v2888 = vsub.f32 %v2649, %v2860
    %v2889 = vsub.f32 %v2739, %v2866
    %v2890 = vsub.f32 %v2741, %v2872
    %v2891 = vsub.f32 %v2831, %v2878
    %v2892 = vsub.f32 %v2833, %v2884
    %v2893 = vmul.f32 %v2885, 1.442695
    %v2894 = vpow.pop %v2893
    %v2895 = vmul.f32 %v2886, 1.442695
    %v2896 = vpow.pop %v2895
    %v2897 = vmul.f32 %v2887, 1.442695
    %v2898 = vpow.pop %v2897
    %v2899 = vmul.f32 %v2888, 1.442695
    %v2900 = vpow.pop %v2899
    %v2901 = vmul.f32 %v2889, 1.442695
    %v2902 = vpow.pop %v2901
    %v2903 = vmul.f32 %v2890, 1.442695
    %v2904 = vpow.pop %v2903
    %v2905 = vmul.f32 %v2891, 1.442695
    %v2906 = vpow.pop %v2905
    %v2907 = vmul.f32 %v2892, 1.442695
    %v2908 = vpow.pop %v2907
    %v2909 = vrot.slane %v2894, 4
    %v2910 = vadd.f32 %v2894, %v2909
    %v2911 = vrot.slane %v2910, 2
    %v2912 = vadd.f32 %v2910, %v2911
    %v2913 = vrot.slane %v2912, 1
    %v2914 = vadd.f32 %v2912, %v2913
    %v2915 = vrot.slane %v2896, 4
    %v2916 = vadd.f32 %v2896, %v2915
    %v2917 = vrot.slane %v2916, 2
    %v2918 = vadd.f32 %v2916, %v2917
    %v2919 = vrot.slane %v2918, 1
    %v2920 = vadd.f32 %v2918, %v2919
    %v2921 = vrot.slane %v2898, 4
    %v2922 = vadd.f32 %v2898, %v2921
    %v2923 = vrot.slane %v2922, 2
    %v2924 = vadd.f32 %v2922, %v2923
    %v2925 = vrot.slane %v2924, 1
    %v2926 = vadd.f32 %v2924, %v2925
    %v2927 = vrot.slane %v2900, 4
    %v2928 = vadd.f32 %v2900, %v2927
    %v2929 = vrot.slane %v2928, 2
    %v2930 = vadd.f32 %v2928, %v2929
    %v2931 = vrot.slane %v2930, 1
    %v2932 = vadd.f32 %v2930, %v2931
    %v2933 = vrot.slane %v2902, 4
    %v2934 = vadd.f32 %v2902, %v2933
    %v2935 = vrot.slane %v2934, 2
    %v2936 = vadd.f32 %v2934, %v2935
    %v2937 = vrot.slane %v2936, 1
    %v2938 = vadd.f32 %v2936, %v2937
    %v2939 = vrot.slane %v2904, 4
    %v2940 = vadd.f32 %v2904, %v2939
    %v2941 = vrot.slane %v2940, 2
    %v2942 = vadd.f32 %v2940, %v2941
    %v2943 = vrot.slane %v2942, 1
    %v2944 = vadd.f32 %v2942, %v2943
    %v2945 = vrot.slane %v2906, 4
    %v2946 = vadd.f32 %v2906, %v2945
    %v2947 = vrot.slane %v2946, 2
    %v2948 = vadd.f32 %v2946, %v2947
    %v2949 = vrot.slane %v2948, 1
    %v2950 = vadd.f32 %v2948, %v2949
    %v2951 = vrot.slane %v2908, 4
    %v2952 = vadd.f32 %v2908, %v2951
    %v2953 = vrot.slane %v2952, 2
    %v2954 = vadd.f32 %v2952, %v2953
    %v2955 = vrot.slane %v2954, 1
    %v2956 = vadd.f32 %v2954, %v2955
    %v2957 = vrcp.pop %v2914
    %v2958 = vmul.f32 %v2894, %v2957
    %v2959 = vrcp.pop %v2920
    %v2960 = vmul.f32 %v2896, %v2959
    %v2961 = vrcp.pop %v2926
    %v2962 = vmul.f32 %v2898, %v2961
    %v2963 = vrcp.pop %v2932
    %v2964 = vmul.f32 %v2900, %v2963
    %v2965 = vrcp.pop %v2938
    %v2966 = vmul.f32 %v2902, %v2965
    %v2967 = vrcp.pop %v2944
    %v2968 = vmul.f32 %v2904, %v2967
    %v2969 = vrcp.pop %v2950
    %v2970 = vmul.f32 %v2906, %v2969
    %v2971 = vrcp.pop %v2956
    %v2972 = vmul.f32 %v2908, %v2971
    %v2973 = vadd.f32 %v2958, 1e-08
    %v2974 = vadd.f32 %v2960, 1e-08
    %v2975 = vadd.f32 %v2962, 1e-08
    %v2976 = vadd.f32 %v2964, 1e-08
    %v2977 = vadd.f32 %v2966, 1e-08
    %v2978 = vadd.f32 %v2968, 1e-08
    %v2979 = vadd.f32 %v2970, 1e-08
    %v2980 = vadd.f32 %v2972, 1e-08
    %v2981 = vadd.f32 %v2973, %v2974
    %2982 = vadd.xlane.f32.xlu0 %v2981
    %v2983 = vpop.xlane.xlu0 %2982
    %v2984 = vadd.f32 %v2975, %v2976
    %2985 = vadd.xlane.f32.xlu0 %v2984
    %v2986 = vpop.xlane.xlu0 %2985
    %v2987 = vadd.f32 %v2977, %v2978
    %2988 = vadd.xlane.f32.xlu0 %v2987
    %v2989 = vpop.xlane.xlu0 %2988
    %v2990 = vadd.f32 %v2979, %v2980
    %2991 = vadd.xlane.f32.xlu0 %v2990
    %v2992 = vpop.xlane.xlu0 %2991
    %v2993 = vrcp.pop %v2983
    %v2994 = vrcp.pop %v2986
    %v2995 = vrcp.pop %v2989
    %v2996 = vrcp.pop %v2992
    %v2997 = vmul.f32 %v2973, %v2993
    %v2998 = vmul.f32 %v2974, %v2993
    %v2999 = vmul.f32 %v2975, %v2994
    %v3000 = vmul.f32 %v2976, %v2994
    %v3001 = vmul.f32 %v2977, %v2995
    %v3002 = vmul.f32 %v2978, %v2995
    %v3003 = vmul.f32 %v2979, %v2996
    %v3004 = vmul.f32 %v2980, %v2996
    %v3005 = vpack.c.bf16 %v2997, %v2997
    %v3006 = vpack.c.bf16 %v2998, %v2998
    %v3007 = vpack.c.bf16 %v2999, %v2999
    %v3008 = vpack.c.bf16 %v3000, %v3000
    %v3009 = vpack.c.bf16 %v3001, %v3001
    %v3010 = vpack.c.bf16 %v3002, %v3002
    %v3011 = vpack.c.bf16 %v3003, %v3003
    %v3012 = vpack.c.bf16 %v3004, %v3004
    %3013 = vmatprep.subr.bf16.mxu0 0
    %3014 = vmatpush1.bf16.msra.mxu0 %v2106
    %3015 = vmatprep.subr.bf16.mxu0 0
    %3016 = vmatpush1.bf16.msra.mxu0 %v2107
    %3017 = vmatprep.subr.bf16.mxu0 0
    %3018 = vmatpush1.bf16.msra.mxu0 %v2108
    %3019 = vmatprep.subr.bf16.mxu0 0
    %3020 = vmatpush1.bf16.msra.mxu0 %v2109
    %3021 = vmatprep.subr.bf16.mxu0 0
    %3022 = vmatpush1.bf16.msra.mxu0 %v2110
    %3023 = vmatprep.subr.bf16.mxu0 0
    %3024 = vmatpush1.bf16.msra.mxu0 %v2111
    %3025 = vmatprep.subr.bf16.mxu0 0
    %3026 = vmatpush1.bf16.msra.mxu0 %v2112
    %3027 = vmatprep.subr.bf16.mxu0 0
    %3028 = vmatpush1.bf16.msra.mxu0 %v2113
    %3029 = vmatprep.subr.bf16.mxu0 0
    %3030 = vmatpush1.bf16.msra.mxu0 %v2114
    %3031 = vmatprep.subr.bf16.mxu0 0
    %3032 = vmatpush1.bf16.msra.mxu0 %v2115
    %3033 = vmatprep.subr.bf16.mxu0 0
    %3034 = vmatpush1.bf16.msra.mxu0 %v2116
    %3035 = vmatprep.subr.bf16.mxu0 0
    %3036 = vmatpush1.bf16.msra.mxu0 %v2117
    %3037 = vmatprep.subr.bf16.mxu0 0
    %3038 = vmatpush1.bf16.msra.mxu0 %v2118
    %3039 = vmatprep.subr.bf16.mxu0 0
    %3040 = vmatpush1.bf16.msra.mxu0 %v2119
    %3041 = vmatprep.subr.bf16.mxu0 0
    %3042 = vmatpush1.bf16.msra.mxu0 %v2120
    %3043 = vmatprep.subr.bf16.mxu0 0
    %3044 = vmatpush1.bf16.msra.mxu0 %v2121
    %3045 = vmatprep.mubr.bf16.mxu0 %v3006
    %3046 = vmatmul.mubr.bf16.gmra.mrb[0].mxu0 %v3005
    %v3047 = vpop.f32.mrb[0].mxu0
    %v3048 = vadd.f32 0.0, %v3047
    %v3049 = vpop.f32.mrb[0].mxu0
    %v3050 = vpop.f32.mrb[0].mxu0
    %v3051 = vpop.f32.mrb[0].mxu0
    %3052 = vdwg.mxu0
    %3053 = vmatprep.subr.bf16.mxu0 0
    %3054 = vmatpush1.bf16.msra.mxu0 %v2122
    %3055 = vmatprep.subr.bf16.mxu0 0
    %3056 = vmatpush1.bf16.msra.mxu0 %v2123
    %3057 = vmatprep.subr.bf16.mxu0 0
    %3058 = vmatpush1.bf16.msra.mxu0 %v2124
    %3059 = vmatprep.subr.bf16.mxu0 0
    %3060 = vmatpush1.bf16.msra.mxu0 %v2125
    %3061 = vmatprep.subr.bf16.mxu0 0
    %3062 = vmatpush1.bf16.msra.mxu0 %v2126
    %3063 = vmatprep.subr.bf16.mxu0 0
    %3064 = vmatpush1.bf16.msra.mxu0 %v2127
    %3065 = vmatprep.subr.bf16.mxu0 0
    %3066 = vmatpush1.bf16.msra.mxu0 %v2128
    %3067 = vmatprep.subr.bf16.mxu0 0
    %3068 = vmatpush1.bf16.msra.mxu0 %v2129
    %3069 = vmatprep.subr.bf16.mxu0 0
    %3070 = vmatpush1.bf16.msra.mxu0 %v2130
    %3071 = vmatprep.subr.bf16.mxu0 0
    %3072 = vmatpush1.bf16.msra.mxu0 %v2131
    %3073 = vmatprep.subr.bf16.mxu0 0
    %3074 = vmatpush1.bf16.msra.mxu0 %v2132
    %3075 = vmatprep.subr.bf16.mxu0 0
    %3076 = vmatpush1.bf16.msra.mxu0 %v2133
    %3077 = vmatprep.subr.bf16.mxu0 0
    %3078 = vmatpush1.bf16.msra.mxu0 %v2134
    %3079 = vmatprep.subr.bf16.mxu0 0
    %3080 = vmatpush1.bf16.msra.mxu0 %v2135
    %3081 = vmatprep.subr.bf16.mxu0 0
    %3082 = vmatpush1.bf16.msra.mxu0 %v2136
    %3083 = vmatprep.subr.bf16.mxu0 0
    %3084 = vmatpush1.bf16.msra.mxu0 %v2137
    %3085 = vmatprep.mubr.bf16.mxu0 %v3008
    %3086 = vmatmul.mubr.bf16.gmra.mrb[0].mxu0 %v3007
    %v3087 = vpop.f32.mrb[0].mxu0
    %v3088 = vadd.f32 0.0, %v3087
    %v3089 = vpop.f32.mrb[0].mxu0
    %v3090 = vpop.f32.mrb[0].mxu0
    %v3091 = vpop.f32.mrb[0].mxu0
    %3092 = vdwg.mxu0
    %3093 = vmatprep.subr.bf16.mxu0 0
    %3094 = vmatpush1.bf16.msra.mxu0 %v2138
    %3095 = vmatprep.subr.bf16.mxu0 0
    %3096 = vmatpush1.bf16.msra.mxu0 %v2139
    %3097 = vmatprep.subr.bf16.mxu0 0
    %3098 = vmatpush1.bf16.msra.mxu0 %v2140
    %3099 = vmatprep.subr.bf16.mxu0 0
    %3100 = vmatpush1.bf16.msra.mxu0 %v2141
    %3101 = vmatprep.subr.bf16.mxu0 0
    %3102 = vmatpush1.bf16.msra.mxu0 %v2142
    %3103 = vmatprep.subr.bf16.mxu0 0
    %3104 = vmatpush1.bf16.msra.mxu0 %v2143
    %3105 = vmatprep.subr.bf16.mxu0 0
    %3106 = vmatpush1.bf16.msra.mxu0 %v2144
    %3107 = vmatprep.subr.bf16.mxu0 0
    %3108 = vmatpush1.bf16.msra.mxu0 %v2145
    %3109 = vmatprep.subr.bf16.mxu0 0
    %3110 = vmatpush1.bf16.msra.mxu0 %v2146
    %3111 = vmatprep.subr.bf16.mxu0 0
    %3112 = vmatpush1.bf16.msra.mxu0 %v2147
    %3113 = vmatprep.subr.bf16.mxu0 0
    %3114 = vmatpush1.bf16.msra.mxu0 %v2148
    %3115 = vmatprep.subr.bf16.mxu0 0
    %3116 = vmatpush1.bf16.msra.mxu0 %v2149
    %3117 = vmatprep.subr.bf16.mxu0 0
    %3118 = vmatpush1.bf16.msra.mxu0 %v2150
    %3119 = vmatprep.subr.bf16.mxu0 0
    %3120 = vmatpush1.bf16.msra.mxu0 %v2151
    %3121 = vmatprep.subr.bf16.mxu0 0
    %3122 = vmatpush1.bf16.msra.mxu0 %v2152
    %3123 = vmatprep.subr.bf16.mxu0 0
    %3124 = vmatpush1.bf16.msra.mxu0 %v2153
    %3125 = vmatprep.mubr.bf16.mxu0 %v3010
    %3126 = vmatmul.mubr.bf16.gmra.mrb[0].mxu0 %v3009
    %v3127 = vpop.f32.mrb[0].mxu0
    %v3128 = vadd.f32 0.0, %v3127
    %v3129 = vpop.f32.mrb[0].mxu0
    %v3130 = vpop.f32.mrb[0].mxu0
    %v3131 = vpop.f32.mrb[0].mxu0
    %3132 = vdwg.mxu0
    %3133 = vmatprep.subr.bf16.mxu0 0
    %3134 = vmatpush1.bf16.msra.mxu0 %v2154
    %3135 = vmatprep.subr.bf16.mxu0 0
    %3136 = vmatpush1.bf16.msra.mxu0 %v2155
    %3137 = vmatprep.subr.bf16.mxu0 0
    %3138 = vmatpush1.bf16.msra.mxu0 %v2156
    %3139 = vmatprep.subr.bf16.mxu0 0
    %3140 = vmatpush1.bf16.msra.mxu0 %v2157
    %3141 = vmatprep.subr.bf16.mxu0 0
    %3142 = vmatpush1.bf16.msra.mxu0 %v2158
    %3143 = vmatprep.subr.bf16.mxu0 0
    %3144 = vmatpush1.bf16.msra.mxu0 %v2159
    %3145 = vmatprep.subr.bf16.mxu0 0
    %3146 = vmatpush1.bf16.msra.mxu0 %v2160
    %3147 = vmatprep.subr.bf16.mxu0 0
    %3148 = vmatpush1.bf16.msra.mxu0 %v2161
    %3149 = vmatprep.subr.bf16.mxu0 0
    %3150 = vmatpush1.bf16.msra.mxu0 %v2162
    %3151 = vmatprep.subr.bf16.mxu0 0
    %3152 = vmatpush1.bf16.msra.mxu0 %v2163
    %3153 = vmatprep.subr.bf16.mxu0 0
    %3154 = vmatpush1.bf16.msra.mxu0 %v2164
    %3155 = vmatprep.subr.bf16.mxu0 0
    %3156 = vmatpush1.bf16.msra.mxu0 %v2165
    %3157 = vmatprep.subr.bf16.mxu0 0
    %3158 = vmatpush1.bf16.msra.mxu0 %v2166
    %3159 = vmatprep.subr.bf16.mxu0 0
    %3160 = vmatpush1.bf16.msra.mxu0 %v2167
    %3161 = vmatprep.subr.bf16.mxu0 0
    %3162 = vmatpush1.bf16.msra.mxu0 %v2168
    %3163 = vmatprep.subr.bf16.mxu0 0
    %3164 = vmatpush1.bf16.msra.mxu0 %v2169
    %3165 = vmatprep.mubr.bf16.mxu0 %v3012
    %3166 = vmatmul.mubr.bf16.gmra.mrb[0].mxu0 %v3011
    %v3167 = vpop.f32.mrb[0].mxu0
    %v3168 = vadd.f32 0.0, %v3167
    %v3169 = vpop.f32.mrb[0].mxu0
    %v3170 = vpop.f32.mrb[0].mxu0
    %v3171 = vpop.f32.mrb[0].mxu0
    %3172 = vdwg.mxu0
    %v3174 = vlaneseq
    %v3175 = vshrl.u32 %v3174, 7
    %v3176 = vsub.s32 0, %v3175
    %v3177 = vrot.slane %v256, %v3176
    %v3178 = vlaneseq
    %v3179 = vshrl.u32 %v3178, 7
    %v3180 = vsub.s32 1, %v3179
    %v3181 = vrot.slane %v256, %v3180
    %v3182 = vlaneseq
    %v3183 = vshrl.u32 %v3182, 7
    %v3184 = vsub.s32 2, %v3183
    %v3185 = vrot.slane %v256, %v3184
    %v3190 = vsel %vm735, %v3048, 0
    %v3193 = vsel %vm735, %v3088, 0
    %v3196 = vsel %vm735, %v3128, 0
    %v3199 = vsel %vm735, %v3168, 0
    %3201 = vmatprep.subr.mxu0 %v117
    %3202 = vmatpush1.msra.mxu0 %v116
    %3203 = vmatprep.subr.mxu0 %v120
    %3204 = vmatpush1.msra.mxu0 %v119
    %3205 = vmatprep.subr.mxu0 %v123
    %3206 = vmatpush1.msra.mxu0 %v122
    %3207 = vmatprep.subr.mxu0 %v126
    %3208 = vmatpush1.msra.mxu0 %v125
    %3209 = vmatprep.subr.mxu0 %v129
    %3210 = vmatpush1.msra.mxu0 %v128
    %3211 = vmatprep.subr.mxu0 %v132
    %3212 = vmatpush1.msra.mxu0 %v131
    %3213 = vmatprep.subr.mxu0 %v135
    %3214 = vmatpush1.msra.mxu0 %v134
    %3215 = vmatprep.subr.mxu0 %v138
    %3216 = vmatpush1.msra.mxu0 %v137
    %3217 = vmatprep.subr.mxu0 0.0
    %3218 = vmatpush1.msra.mxu0 0.0
    %3219 = vmatprep.subr.mxu0 0.0
    %3220 = vmatpush1.msra.mxu0 0.0
    %3221 = vmatprep.subr.mxu0 0.0
    %3222 = vmatpush1.msra.mxu0 0.0
    %3223 = vmatprep.subr.mxu0 0.0
    %3224 = vmatpush1.msra.mxu0 0.0
    %3225 = vmatprep.subr.mxu0 0.0
    %3226 = vmatpush1.msra.mxu0 0.0
    %3227 = vmatprep.subr.mxu0 0.0
    %3228 = vmatpush1.msra.mxu0 0.0
    %3229 = vmatprep.subr.mxu0 0.0
    %3230 = vmatpush1.msra.mxu0 0.0
    %3231 = vmatprep.subr.mxu0 0.0
    %3232 = vmatpush1.msra.mxu0 0.0
    %3233 = vmatprep.subr.mxu0 0.0
    %3234 = vmatpush1.msra.mxu0 0.0
    %3235 = vmatprep.subr.mxu0 0.0
    %3236 = vmatpush1.msra.mxu0 0.0
    %3237 = vmatprep.subr.mxu0 0.0
    %3238 = vmatpush1.msra.mxu0 0.0
    %3239 = vmatprep.subr.mxu0 0.0
    %3240 = vmatpush1.msra.mxu0 0.0
    %3241 = vmatprep.subr.mxu0 0.0
    %3242 = vmatpush1.msra.mxu0 0.0
    %3243 = vmatprep.subr.mxu0 0.0
    %3244 = vmatpush1.msra.mxu0 0.0
    %3245 = vmatprep.subr.mxu0 0.0
    %3246 = vmatpush1.msra.mxu0 0.0
    %3247 = vmatprep.subr.mxu0 0.0
    %3248 = vmatpush1.msra.mxu0 0.0
    %3249 = vmatprep.subr.mxu0 0.0
    %3250 = vmatpush1.msra.mxu0 0.0
    %3251 = vmatprep.subr.mxu0 0.0
    %3252 = vmatpush1.msra.mxu0 0.0
    %3253 = vmatprep.subr.mxu0 0.0
    %3254 = vmatpush1.msra.mxu0 0.0
    %3255 = vmatprep.subr.mxu0 0.0
    %3256 = vmatpush1.msra.mxu0 0.0
    %3257 = vmatprep.subr.mxu0 0.0
    %3258 = vmatpush1.msra.mxu0 0.0
    %3259 = vmatprep.subr.mxu0 0.0
    %3260 = vmatpush1.msra.mxu0 0.0
    %3261 = vmatprep.subr.mxu0 0.0
    %3262 = vmatpush1.msra.mxu0 0.0
    %3263 = vmatprep.subr.mxu0 0.0
    %3264 = vmatpush1.msra.mxu0 0.0
    %3265 = vmatprep.mubr.f32.mxu0 0.0
    %3266 = vmatmul.mubr.f32.gmra.mrb[0].mxu0 %v3190
    %v3267 = vpop.f32.mrb[0].mxu0
    %v3268 = vadd.f32 %v3177, %v3267
    %v3269 = vpop.f32.mrb[0].mxu0
    %v3270 = vadd.f32 %v3181, %v3269
    %3271 = vmatprep.mubr.f32.mxu0 0.0
    %3272 = vmatmul.mubr.f32.gmra.mrb[0].mxu0 %v3193
    %v3273 = vpop.f32.mrb[0].mxu0
    %v3274 = vadd.f32 %v3177, %v3273
    %v3275 = vpop.f32.mrb[0].mxu0
    %v3276 = vadd.f32 %v3181, %v3275
    %3277 = vmatprep.mubr.f32.mxu0 0.0
    %3278 = vmatmul.mubr.f32.gmra.mrb[0].mxu0 %v3196
    %v3279 = vpop.f32.mrb[0].mxu0
    %v3280 = vadd.f32 %v3177, %v3279
    %v3281 = vpop.f32.mrb[0].mxu0
    %v3282 = vadd.f32 %v3181, %v3281
    %3283 = vmatprep.mubr.f32.mxu0 0.0
    %3284 = vmatmul.mubr.f32.gmra.mrb[0].mxu0 %v3199
    %v3285 = vpop.f32.mrb[0].mxu0
    %v3286 = vadd.f32 %v3177, %v3285
    %v3287 = vpop.f32.mrb[0].mxu0
    %v3288 = vadd.f32 %v3181, %v3287
    %3289 = vdwg.mxu0
    %3290 = vmatprep.subr.mxu0 0.0
    %3291 = vmatpush1.msra.mxu0 %v118
    %3292 = vmatprep.subr.mxu0 0.0
    %3293 = vmatpush1.msra.mxu0 %v121
    %3294 = vmatprep.subr.mxu0 0.0
    %3295 = vmatpush1.msra.mxu0 %v124
    %3296 = vmatprep.subr.mxu0 0.0
    %3297 = vmatpush1.msra.mxu0 %v127
    %3298 = vmatprep.subr.mxu0 0.0
    %3299 = vmatpush1.msra.mxu0 %v130
    %3300 = vmatprep.subr.mxu0 0.0
    %3301 = vmatpush1.msra.mxu0 %v133
    %3302 = vmatprep.subr.mxu0 0.0
    %3303 = vmatpush1.msra.mxu0 %v136
    %3304 = vmatprep.subr.mxu0 0.0
    %3305 = vmatpush1.msra.mxu0 %v139
    %3306 = vmatprep.subr.mxu0 0.0
    %3307 = vmatpush1.msra.mxu0 0.0
    %3308 = vmatprep.subr.mxu0 0.0
    %3309 = vmatpush1.msra.mxu0 0.0
    %3310 = vmatprep.subr.mxu0 0.0
    %3311 = vmatpush1.msra.mxu0 0.0
    %3312 = vmatprep.subr.mxu0 0.0
    %3313 = vmatpush1.msra.mxu0 0.0
    %3314 = vmatprep.subr.mxu0 0.0
    %3315 = vmatpush1.msra.mxu0 0.0
    %3316 = vmatprep.subr.mxu0 0.0
    %3317 = vmatpush1.msra.mxu0 0.0
    %3318 = vmatprep.subr.mxu0 0.0
    %3319 = vmatpush1.msra.mxu0 0.0
    %3320 = vmatprep.subr.mxu0 0.0
    %3321 = vmatpush1.msra.mxu0 0.0
    %3322 = vmatprep.subr.mxu0 0.0
    %3323 = vmatpush1.msra.mxu0 0.0
    %3324 = vmatprep.subr.mxu0 0.0
    %3325 = vmatpush1.msra.mxu0 0.0
    %3326 = vmatprep.subr.mxu0 0.0
    %3327 = vmatpush1.msra.mxu0 0.0
    %3328 = vmatprep.subr.mxu0 0.0
    %3329 = vmatpush1.msra.mxu0 0.0
    %3330 = vmatprep.subr.mxu0 0.0
    %3331 = vmatpush1.msra.mxu0 0.0
    %3332 = vmatprep.subr.mxu0 0.0
    %3333 = vmatpush1.msra.mxu0 0.0
    %3334 = vmatprep.subr.mxu0 0.0
    %3335 = vmatpush1.msra.mxu0 0.0
    %3336 = vmatprep.subr.mxu0 0.0
    %3337 = vmatpush1.msra.mxu0 0.0
    %3338 = vmatprep.subr.mxu0 0.0
    %3339 = vmatpush1.msra.mxu0 0.0
    %3340 = vmatprep.subr.mxu0 0.0
    %3341 = vmatpush1.msra.mxu0 0.0
    %3342 = vmatprep.subr.mxu0 0.0
    %3343 = vmatpush1.msra.mxu0 0.0
    %3344 = vmatprep.subr.mxu0 0.0
    %3345 = vmatpush1.msra.mxu0 0.0
    %3346 = vmatprep.subr.mxu0 0.0
    %3347 = vmatpush1.msra.mxu0 0.0
    %3348 = vmatprep.subr.mxu0 0.0
    %3349 = vmatpush1.msra.mxu0 0.0
    %3350 = vmatprep.subr.mxu0 0.0
    %3351 = vmatpush1.msra.mxu0 0.0
    %3352 = vmatprep.subr.mxu0 0.0
    %3353 = vmatpush1.msra.mxu0 0.0
    %3354 = vmatprep.mubr.f32.mxu0 0.0
    %3355 = vmatmul.mubr.f32.gmra.mrb[0].mxu0 %v3190
    %v3356 = vpop.f32.mrb[0].mxu0
    %v3357 = vadd.f32 %v3185, %v3356
    %v3358 = vpop.f32.mrb[0].mxu0
    %3359 = vmatprep.mubr.f32.mxu0 0.0
    %3360 = vmatmul.mubr.f32.gmra.mrb[0].mxu0 %v3193
    %v3361 = vpop.f32.mrb[0].mxu0
    %v3362 = vadd.f32 %v3185, %v3361
    %v3363 = vpop.f32.mrb[0].mxu0
    %3364 = vmatprep.mubr.f32.mxu0 0.0
    %3365 = vmatmul.mubr.f32.gmra.mrb[0].mxu0 %v3196
    %v3366 = vpop.f32.mrb[0].mxu0
    %v3367 = vadd.f32 %v3185, %v3366
    %v3368 = vpop.f32.mrb[0].mxu0
    %3369 = vmatprep.mubr.f32.mxu0 0.0
    %3370 = vmatmul.mubr.f32.gmra.mrb[0].mxu0 %v3199
    %v3371 = vpop.f32.mrb[0].mxu0
    %v3372 = vadd.f32 %v3185, %v3371
    %v3373 = vpop.f32.mrb[0].mxu0
    %3374 = vdwg.mxu0
    %v3376 = vlaneseq
    %v3377 = vshrl.u32 %v3376, 7
    %v3378 = vsub.s32 0, %v3377
    %v3379 = vrot.slane %v257, %v3378
    %v3380 = vlaneseq
    %v3381 = vshrl.u32 %v3380, 7
    %v3382 = vsub.s32 1, %v3381
    %v3383 = vrot.slane %v257, %v3382
    %v3384 = vlaneseq
    %v3385 = vshrl.u32 %v3384, 7
    %v3386 = vsub.s32 2, %v3385
    %v3387 = vrot.slane %v257, %v3386
    %3391 = vmatprep.subr.mxu0 %v141
    %3392 = vmatpush1.msra.mxu0 %v140
    %3393 = vmatprep.subr.mxu0 %v144
    %3394 = vmatpush1.msra.mxu0 %v143
    %3395 = vmatprep.subr.mxu0 %v147
    %3396 = vmatpush1.msra.mxu0 %v146
    %3397 = vmatprep.subr.mxu0 %v150
    %3398 = vmatpush1.msra.mxu0 %v149
    %3399 = vmatprep.subr.mxu0 %v153
    %3400 = vmatpush1.msra.mxu0 %v152
    %3401 = vmatprep.subr.mxu0 %v156
    %3402 = vmatpush1.msra.mxu0 %v155
    %3403 = vmatprep.subr.mxu0 %v159
    %3404 = vmatpush1.msra.mxu0 %v158
    %3405 = vmatprep.subr.mxu0 %v162
    %3406 = vmatpush1.msra.mxu0 %v161
    %3407 = vmatprep.subr.mxu0 %v165
    %3408 = vmatpush1.msra.mxu0 %v164
    %3409 = vmatprep.subr.mxu0 %v168
    %3410 = vmatpush1.msra.mxu0 %v167
    %3411 = vmatprep.subr.mxu0 %v171
    %3412 = vmatpush1.msra.mxu0 %v170
    %3413 = vmatprep.subr.mxu0 %v174
    %3414 = vmatpush1.msra.mxu0 %v173
    %3415 = vmatprep.subr.mxu0 %v177
    %3416 = vmatpush1.msra.mxu0 %v176
    %3417 = vmatprep.subr.mxu0 %v180
    %3418 = vmatpush1.msra.mxu0 %v179
    %3419 = vmatprep.subr.mxu0 %v183
    %3420 = vmatpush1.msra.mxu0 %v182
    %3421 = vmatprep.subr.mxu0 %v186
    %3422 = vmatpush1.msra.mxu0 %v185
    %3423 = vmatprep.subr.mxu0 0.0
    %3424 = vmatpush1.msra.mxu0 0.0
    %3425 = vmatprep.subr.mxu0 0.0
    %3426 = vmatpush1.msra.mxu0 0.0
    %3427 = vmatprep.subr.mxu0 0.0
    %3428 = vmatpush1.msra.mxu0 0.0
    %3429 = vmatprep.subr.mxu0 0.0
    %3430 = vmatpush1.msra.mxu0 0.0
    %3431 = vmatprep.subr.mxu0 0.0
    %3432 = vmatpush1.msra.mxu0 0.0
    %3433 = vmatprep.subr.mxu0 0.0
    %3434 = vmatpush1.msra.mxu0 0.0
    %3435 = vmatprep.subr.mxu0 0.0
    %3436 = vmatpush1.msra.mxu0 0.0
    %3437 = vmatprep.subr.mxu0 0.0
    %3438 = vmatpush1.msra.mxu0 0.0
    %3439 = vmatprep.subr.mxu0 0.0
    %3440 = vmatpush1.msra.mxu0 0.0
    %3441 = vmatprep.subr.mxu0 0.0
    %3442 = vmatpush1.msra.mxu0 0.0
    %3443 = vmatprep.subr.mxu0 0.0
    %3444 = vmatpush1.msra.mxu0 0.0
    %3445 = vmatprep.subr.mxu0 0.0
    %3446 = vmatpush1.msra.mxu0 0.0
    %3447 = vmatprep.subr.mxu0 0.0
    %3448 = vmatpush1.msra.mxu0 0.0
    %3449 = vmatprep.subr.mxu0 0.0
    %3450 = vmatpush1.msra.mxu0 0.0
    %3451 = vmatprep.subr.mxu0 0.0
    %3452 = vmatpush1.msra.mxu0 0.0
    %3453 = vmatprep.subr.mxu0 0.0
    %3454 = vmatpush1.msra.mxu0 0.0
    %3455 = vmatprep.mubr.f32.mxu0 0.0
    %3456 = vmatmul.mubr.f32.gmra.mrb[0].mxu0 %v2170
    %v3457 = vpop.f32.mrb[0].mxu0
    %v3458 = vadd.f32 %v3379, %v3457
    %v3459 = vpop.f32.mrb[0].mxu0
    %v3460 = vadd.f32 %v3383, %v3459
    %3461 = vmatprep.mubr.f32.mxu0 0.0
    %3462 = vmatmul.mubr.f32.gmra.mrb[0].mxu0 %v2171
    %v3463 = vpop.f32.mrb[0].mxu0
    %v3464 = vadd.f32 %v3379, %v3463
    %v3465 = vpop.f32.mrb[0].mxu0
    %v3466 = vadd.f32 %v3383, %v3465
    %3467 = vmatprep.mubr.f32.mxu0 0.0
    %3468 = vmatmul.mubr.f32.gmra.mrb[0].mxu0 %v2172
    %v3469 = vpop.f32.mrb[0].mxu0
    %v3470 = vadd.f32 %v3379, %v3469
    %v3471 = vpop.f32.mrb[0].mxu0
    %v3472 = vadd.f32 %v3383, %v3471
    %3473 = vmatprep.mubr.f32.mxu0 0.0
    %3474 = vmatmul.mubr.f32.gmra.mrb[0].mxu0 %v2173
    %v3475 = vpop.f32.mrb[0].mxu0
    %v3476 = vadd.f32 %v3379, %v3475
    %v3477 = vpop.f32.mrb[0].mxu0
    %v3478 = vadd.f32 %v3383, %v3477
    %3479 = vdwg.mxu0
    %3480 = vmatprep.subr.mxu0 0.0
    %3481 = vmatpush1.msra.mxu0 %v142
    %3482 = vmatprep.subr.mxu0 0.0
    %3483 = vmatpush1.msra.mxu0 %v145
    %3484 = vmatprep.subr.mxu0 0.0
    %3485 = vmatpush1.msra.mxu0 %v148
    %3486 = vmatprep.subr.mxu0 0.0
    %3487 = vmatpush1.msra.mxu0 %v151
    %3488 = vmatprep.subr.mxu0 0.0
    %3489 = vmatpush1.msra.mxu0 %v154
    %3490 = vmatprep.subr.mxu0 0.0
    %3491 = vmatpush1.msra.mxu0 %v157
    %3492 = vmatprep.subr.mxu0 0.0
    %3493 = vmatpush1.msra.mxu0 %v160
    %3494 = vmatprep.subr.mxu0 0.0
    %3495 = vmatpush1.msra.mxu0 %v163
    %3496 = vmatprep.subr.mxu0 0.0
    %3497 = vmatpush1.msra.mxu0 %v166
    %3498 = vmatprep.subr.mxu0 0.0
    %3499 = vmatpush1.msra.mxu0 %v169
    %3500 = vmatprep.subr.mxu0 0.0
    %3501 = vmatpush1.msra.mxu0 %v172
    %3502 = vmatprep.subr.mxu0 0.0
    %3503 = vmatpush1.msra.mxu0 %v175
    %3504 = vmatprep.subr.mxu0 0.0
    %3505 = vmatpush1.msra.mxu0 %v178
    %3506 = vmatprep.subr.mxu0 0.0
    %3507 = vmatpush1.msra.mxu0 %v181
    %3508 = vmatprep.subr.mxu0 0.0
    %3509 = vmatpush1.msra.mxu0 %v184
    %3510 = vmatprep.subr.mxu0 0.0
    %3511 = vmatpush1.msra.mxu0 %v187
    %3512 = vmatprep.subr.mxu0 0.0
    %3513 = vmatpush1.msra.mxu0 0.0
    %3514 = vmatprep.subr.mxu0 0.0
    %3515 = vmatpush1.msra.mxu0 0.0
    %3516 = vmatprep.subr.mxu0 0.0
    %3517 = vmatpush1.msra.mxu0 0.0
    %3518 = vmatprep.subr.mxu0 0.0
    %3519 = vmatpush1.msra.mxu0 0.0
    %3520 = vmatprep.subr.mxu0 0.0
    %3521 = vmatpush1.msra.mxu0 0.0
    %3522 = vmatprep.subr.mxu0 0.0
    %3523 = vmatpush1.msra.mxu0 0.0
    %3524 = vmatprep.subr.mxu0 0.0
    %3525 = vmatpush1.msra.mxu0 0.0
    %3526 = vmatprep.subr.mxu0 0.0
    %3527 = vmatpush1.msra.mxu0 0.0
    %3528 = vmatprep.subr.mxu0 0.0
    %3529 = vmatpush1.msra.mxu0 0.0
    %3530 = vmatprep.subr.mxu0 0.0
    %3531 = vmatpush1.msra.mxu0 0.0
    %3532 = vmatprep.subr.mxu0 0.0
    %3533 = vmatpush1.msra.mxu0 0.0
    %3534 = vmatprep.subr.mxu0 0.0
    %3535 = vmatpush1.msra.mxu0 0.0
    %3536 = vmatprep.subr.mxu0 0.0
    %3537 = vmatpush1.msra.mxu0 0.0
    %3538 = vmatprep.subr.mxu0 0.0
    %3539 = vmatpush1.msra.mxu0 0.0
    %3540 = vmatprep.subr.mxu0 0.0
    %3541 = vmatpush1.msra.mxu0 0.0
    %3542 = vmatprep.subr.mxu0 0.0
    %3543 = vmatpush1.msra.mxu0 0.0
    %3544 = vmatprep.mubr.f32.mxu0 0.0
    %3545 = vmatmul.mubr.f32.gmra.mrb[0].mxu0 %v2170
    %v3546 = vpop.f32.mrb[0].mxu0
    %v3547 = vadd.f32 %v3387, %v3546
    %v3548 = vpop.f32.mrb[0].mxu0
    %3549 = vmatprep.mubr.f32.mxu0 0.0
    %3550 = vmatmul.mubr.f32.gmra.mrb[0].mxu0 %v2171
    %v3551 = vpop.f32.mrb[0].mxu0
    %v3552 = vadd.f32 %v3387, %v3551
    %v3553 = vpop.f32.mrb[0].mxu0
    %3554 = vmatprep.mubr.f32.mxu0 0.0
    %3555 = vmatmul.mubr.f32.gmra.mrb[0].mxu0 %v2172
    %v3556 = vpop.f32.mrb[0].mxu0
    %v3557 = vadd.f32 %v3387, %v3556
    %v3558 = vpop.f32.mrb[0].mxu0
    %3559 = vmatprep.mubr.f32.mxu0 0.0
    %3560 = vmatmul.mubr.f32.gmra.mrb[0].mxu0 %v2173
    %v3561 = vpop.f32.mrb[0].mxu0
    %v3562 = vadd.f32 %v3387, %v3561
    %v3563 = vpop.f32.mrb[0].mxu0
    %3564 = vdwg.mxu0
    %v3565 = vadd.f32 %v3268, %v3458
    %v3566 = vadd.f32 %v3274, %v3464
    %v3567 = vadd.f32 %v3280, %v3470
    %v3568 = vadd.f32 %v3286, %v3476
    %v3569 = vxor.u32 %v3565, 2147483648
    %v3570 = vxor.u32 %v3566, 2147483648
    %v3571 = vxor.u32 %v3567, 2147483648
    %v3572 = vxor.u32 %v3568, 2147483648
    %v3573 = vmul.f32 %v3569, 1.442695
    %v3574 = vpow.pop %v3573
    %v3575 = vmul.f32 %v3570, 1.442695
    %v3576 = vpow.pop %v3575
    %v3577 = vmul.f32 %v3571, 1.442695
    %v3578 = vpow.pop %v3577
    %v3579 = vmul.f32 %v3572, 1.442695
    %v3580 = vpow.pop %v3579
    %v3581 = vadd.f32 %v3574, 1.0
    %v3582 = vadd.f32 %v3576, 1.0
    %v3583 = vadd.f32 %v3578, 1.0
    %v3584 = vadd.f32 %v3580, 1.0
    %v3585 = vrcp.pop %v3581
    %v3586 = vmul.f32 1.0, %v3585
    %v3587 = vrcp.pop %v3582
    %v3588 = vmul.f32 1.0, %v3587
    %v3589 = vrcp.pop %v3583
    %v3590 = vmul.f32 1.0, %v3589
    %v3591 = vrcp.pop %v3584
    %v3592 = vmul.f32 1.0, %v3591
    %v3593 = vadd.f32 %v3270, %v3460
    %v3594 = vadd.f32 %v3276, %v3466
    %v3595 = vadd.f32 %v3282, %v3472
    %v3596 = vadd.f32 %v3288, %v3478
    %v3597 = vxor.u32 %v3593, 2147483648
    %v3598 = vxor.u32 %v3594, 2147483648
    %v3599 = vxor.u32 %v3595, 2147483648
    %v3600 = vxor.u32 %v3596, 2147483648
    %v3601 = vmul.f32 %v3597, 1.442695
    %v3602 = vpow.pop %v3601
    %v3603 = vmul.f32 %v3598, 1.442695
    %v3604 = vpow.pop %v3603
    %v3605 = vmul.f32 %v3599, 1.442695
    %v3606 = vpow.pop %v3605
    %v3607 = vmul.f32 %v3600, 1.442695
    %v3608 = vpow.pop %v3607
    %v3609 = vadd.f32 %v3602, 1.0
    %v3610 = vadd.f32 %v3604, 1.0
    %v3611 = vadd.f32 %v3606, 1.0
    %v3612 = vadd.f32 %v3608, 1.0
    %v3613 = vrcp.pop %v3609
    %v3614 = vmul.f32 1.0, %v3613
    %v3615 = vrcp.pop %v3610
    %v3616 = vmul.f32 1.0, %v3615
    %v3617 = vrcp.pop %v3611
    %v3618 = vmul.f32 1.0, %v3617
    %v3619 = vrcp.pop %v3612
    %v3620 = vmul.f32 1.0, %v3619
    %v3621 = vmul.f32 %v3586, %v3547
    %v3622 = vmul.f32 %v3588, %v3552
    %v3623 = vmul.f32 %v3590, %v3557
    %v3624 = vmul.f32 %v3592, %v3562
    %v3625 = vadd.f32 %v3357, %v3621
    %v3626 = vadd.f32 %v3362, %v3622
    %v3627 = vadd.f32 %v3367, %v3623
    %v3628 = vadd.f32 %v3372, %v3624
    %v3629 = vtanh.pop %v3625
    %v3630 = vtanh.pop %v3626
    %v3631 = vtanh.pop %v3627
    %v3632 = vtanh.pop %v3628
    %v3633 = vsub.f32 1.0, %v3614
    %v3634 = vsub.f32 1.0, %v3616
    %v3635 = vsub.f32 1.0, %v3618
    %v3636 = vsub.f32 1.0, %v3620
    %v3637 = vmul.f32 %v3633, %v3629
    %v3638 = vmul.f32 %v3634, %v3630
    %v3639 = vmul.f32 %v3635, %v3631
    %v3640 = vmul.f32 %v3636, %v3632
    %v3641 = vmul.f32 %v3614, %v2170
    %v3642 = vmul.f32 %v3616, %v2171
    %v3643 = vmul.f32 %v3618, %v2172
    %v3644 = vmul.f32 %v3620, %v2173
    %v3645 = vadd.f32 %v3637, %v3641
    %v3646 = vadd.f32 %v3638, %v3642
    %v3647 = vadd.f32 %v3639, %v3643
    %v3648 = vadd.f32 %v3640, %v3644
    %3649 = vadd.xlane.f32.xlu0 %v3645
    %v3650 = vpop.xlane.xlu0 %3649
    %3651 = vadd.xlane.f32.xlu0 %v3646
    %v3652 = vpop.xlane.xlu0 %3651
    %3653 = vadd.xlane.f32.xlu0 %v3647
    %v3654 = vpop.xlane.xlu0 %3653
    %3655 = vadd.xlane.f32.xlu0 %v3648
    %v3656 = vpop.xlane.xlu0 %3655
    %v3657 = vsel %vm2279, %v3645, 0.0
    %v3658 = vsel %vm2279, %v3646, 0.0
    %v3659 = vsel %vm2279, %v3647, 0.0
    %v3660 = vsel %vm2279, %v3648, 0.0
    %3661 = vadd.xlane.f32.xlu0 %v3657
    %v3662 = vpop.xlane.xlu0 %3661
    %3663 = vadd.xlane.f32.xlu0 %v3658
    %v3664 = vpop.xlane.xlu0 %3663
    %3665 = vadd.xlane.f32.xlu0 %v3659
    %v3666 = vpop.xlane.xlu0 %3665
    %3667 = vadd.xlane.f32.xlu0 %v3660
    %v3668 = vpop.xlane.xlu0 %3667
    %v3669 = vsub.f32 %v3650, %v3662
    %v3670 = vsub.f32 %v3652, %v3664
    %v3671 = vsub.f32 %v3654, %v3666
    %v3672 = vsub.f32 %v3656, %v3668
    %v3673 = vsel %vm2279, %v3662, %v3669
    %v3674 = vsel %vm2279, %v3664, %v3670
    %v3675 = vsel %vm2279, %v3666, %v3671
    %v3676 = vsel %vm2279, %v3668, %v3672
    %v3677 = vmul.f32 %v3673, 0.015625
    %v3678 = vmul.f32 %v3674, 0.015625
    %v3679 = vmul.f32 %v3675, 0.015625
    %v3680 = vmul.f32 %v3676, 0.015625
    %v3681 = vsub.f32 %v3645, %v3677
    %v3682 = vsub.f32 %v3646, %v3678
    %v3683 = vsub.f32 %v3647, %v3679
    %v3684 = vsub.f32 %v3648, %v3680
    %v3685 = vmul.f32 %v3681, %v3681
    %v3686 = vmul.f32 %v3682, %v3682
    %v3687 = vmul.f32 %v3683, %v3683
    %v3688 = vmul.f32 %v3684, %v3684
    %3689 = vadd.xlane.f32.xlu0 %v3685
    %v3690 = vpop.xlane.xlu0 %3689
    %3691 = vadd.xlane.f32.xlu0 %v3686
    %v3692 = vpop.xlane.xlu0 %3691
    %3693 = vadd.xlane.f32.xlu0 %v3687
    %v3694 = vpop.xlane.xlu0 %3693
    %3695 = vadd.xlane.f32.xlu0 %v3688
    %v3696 = vpop.xlane.xlu0 %3695
    %v3697 = vsel %vm2279, %v3685, 0.0
    %v3698 = vsel %vm2279, %v3686, 0.0
    %v3699 = vsel %vm2279, %v3687, 0.0
    %v3700 = vsel %vm2279, %v3688, 0.0
    %3701 = vadd.xlane.f32.xlu0 %v3697
    %v3702 = vpop.xlane.xlu0 %3701
    %3703 = vadd.xlane.f32.xlu0 %v3698
    %v3704 = vpop.xlane.xlu0 %3703
    %3705 = vadd.xlane.f32.xlu0 %v3699
    %v3706 = vpop.xlane.xlu0 %3705
    %3707 = vadd.xlane.f32.xlu0 %v3700
    %v3708 = vpop.xlane.xlu0 %3707
    %v3709 = vsub.f32 %v3690, %v3702
    %v3710 = vsub.f32 %v3692, %v3704
    %v3711 = vsub.f32 %v3694, %v3706
    %v3712 = vsub.f32 %v3696, %v3708
    %v3713 = vsel %vm2279, %v3702, %v3709
    %v3714 = vsel %vm2279, %v3704, %v3710
    %v3715 = vsel %vm2279, %v3706, %v3711
    %v3716 = vsel %vm2279, %v3708, %v3712
    %v3717 = vmul.f32 %v3713, 0.015625
    %v3718 = vmul.f32 %v3714, 0.015625
    %v3719 = vmul.f32 %v3715, 0.015625
    %v3720 = vmul.f32 %v3716, 0.015625
    %v3721 = vadd.f32 %v3717, 1e-05
    %v3722 = vadd.f32 %v3718, 1e-05
    %v3723 = vadd.f32 %v3719, 1e-05
    %v3724 = vadd.f32 %v3720, 1e-05
    %v3725 = vrsqrt.pop %v3721
    %v3726 = vrsqrt.pop %v3722
    %v3727 = vrsqrt.pop %v3723
    %v3728 = vrsqrt.pop %v3724
    %v3729 = vmul.f32 %v3681, %v3725
    %v3730 = vmul.f32 %v3682, %v3726
    %v3731 = vmul.f32 %v3683, %v3727
    %v3732 = vmul.f32 %v3684, %v3728
    %v3734 = vlaneseq
    %v3735 = vshrl.u32 %v3734, 7
    %v3736 = vsub.s32 0, %v3735
    %v3737 = vrot.slane %v254, %v3736
    %v3739 = vmul.f32 %v3729, %v3737
    %v3740 = vmul.f32 %v3730, %v3737
    %v3741 = vmul.f32 %v3731, %v3737
    %v3742 = vmul.f32 %v3732, %v3737
    %v3744 = vlaneseq
    %v3745 = vshrl.u32 %v3744, 7
    %v3746 = vsub.s32 0, %v3745
    %v3747 = vrot.slane %v255, %v3746
    %v3749 = vadd.f32 %v3739, %v3747
    %v3750 = vadd.f32 %v3740, %v3747
    %v3751 = vadd.f32 %v3741, %v3747
    %v3752 = vadd.f32 %v3742, %v3747
    %v3754 = vlaneseq
    %v3755 = vshrl.u32 %v3754, 7
    %v3756 = vsub.s32 0, %v3755
    %v3757 = vrot.slane %v258, %v3756
    %v3758 = vlaneseq
    %v3759 = vshrl.u32 %v3758, 7
    %v3760 = vsub.s32 1, %v3759
    %v3761 = vrot.slane %v258, %v3760
    %3764 = vmatprep.subr.mxu0 %v189
    %3765 = vmatpush1.msra.mxu0 %v188
    %3766 = vmatprep.subr.mxu0 %v191
    %3767 = vmatpush1.msra.mxu0 %v190
    %3768 = vmatprep.subr.mxu0 %v193
    %3769 = vmatpush1.msra.mxu0 %v192
    %3770 = vmatprep.subr.mxu0 %v195
    %3771 = vmatpush1.msra.mxu0 %v194
    %3772 = vmatprep.subr.mxu0 %v197
    %3773 = vmatpush1.msra.mxu0 %v196
    %3774 = vmatprep.subr.mxu0 %v199
    %3775 = vmatpush1.msra.mxu0 %v198
    %3776 = vmatprep.subr.mxu0 %v201
    %3777 = vmatpush1.msra.mxu0 %v200
    %3778 = vmatprep.subr.mxu0 %v203
    %3779 = vmatpush1.msra.mxu0 %v202
    %3780 = vmatprep.subr.mxu0 %v205
    %3781 = vmatpush1.msra.mxu0 %v204
    %3782 = vmatprep.subr.mxu0 %v207
    %3783 = vmatpush1.msra.mxu0 %v206
    %3784 = vmatprep.subr.mxu0 %v209
    %3785 = vmatpush1.msra.mxu0 %v208
    %3786 = vmatprep.subr.mxu0 %v211
    %3787 = vmatpush1.msra.mxu0 %v210
    %3788 = vmatprep.subr.mxu0 %v213
    %3789 = vmatpush1.msra.mxu0 %v212
    %3790 = vmatprep.subr.mxu0 %v215
    %3791 = vmatpush1.msra.mxu0 %v214
    %3792 = vmatprep.subr.mxu0 %v217
    %3793 = vmatpush1.msra.mxu0 %v216
    %3794 = vmatprep.subr.mxu0 %v219
    %3795 = vmatpush1.msra.mxu0 %v218
    %3796 = vmatprep.subr.mxu0 0.0
    %3797 = vmatpush1.msra.mxu0 0.0
    %3798 = vmatprep.subr.mxu0 0.0
    %3799 = vmatpush1.msra.mxu0 0.0
    %3800 = vmatprep.subr.mxu0 0.0
    %3801 = vmatpush1.msra.mxu0 0.0
    %3802 = vmatprep.subr.mxu0 0.0
    %3803 = vmatpush1.msra.mxu0 0.0
    %3804 = vmatprep.subr.mxu0 0.0
    %3805 = vmatpush1.msra.mxu0 0.0
    %3806 = vmatprep.subr.mxu0 0.0
    %3807 = vmatpush1.msra.mxu0 0.0
    %3808 = vmatprep.subr.mxu0 0.0
    %3809 = vmatpush1.msra.mxu0 0.0
    %3810 = vmatprep.subr.mxu0 0.0
    %3811 = vmatpush1.msra.mxu0 0.0
    %3812 = vmatprep.subr.mxu0 0.0
    %3813 = vmatpush1.msra.mxu0 0.0
    %3814 = vmatprep.subr.mxu0 0.0
    %3815 = vmatpush1.msra.mxu0 0.0
    %3816 = vmatprep.subr.mxu0 0.0
    %3817 = vmatpush1.msra.mxu0 0.0
    %3818 = vmatprep.subr.mxu0 0.0
    %3819 = vmatpush1.msra.mxu0 0.0
    %3820 = vmatprep.subr.mxu0 0.0
    %3821 = vmatpush1.msra.mxu0 0.0
    %3822 = vmatprep.subr.mxu0 0.0
    %3823 = vmatpush1.msra.mxu0 0.0
    %3824 = vmatprep.subr.mxu0 0.0
    %3825 = vmatpush1.msra.mxu0 0.0
    %3826 = vmatprep.subr.mxu0 0.0
    %3827 = vmatpush1.msra.mxu0 0.0
    %3828 = vmatprep.mubr.f32.mxu0 0.0
    %3829 = vmatmul.mubr.f32.gmra.mrb[0].mxu0 %v3749
    %v3830 = vpop.f32.mrb[0].mxu0
    %v3831 = vadd.f32 %v3757, %v3830
    %v3832 = vpop.f32.mrb[0].mxu0
    %v3833 = vadd.f32 %v3761, %v3832
    %3834 = vmatprep.mubr.f32.mxu0 0.0
    %3835 = vmatmul.mubr.f32.gmra.mrb[0].mxu0 %v3750
    %v3836 = vpop.f32.mrb[0].mxu0
    %v3837 = vadd.f32 %v3757, %v3836
    %v3838 = vpop.f32.mrb[0].mxu0
    %v3839 = vadd.f32 %v3761, %v3838
    %3840 = vmatprep.mubr.f32.mxu0 0.0
    %3841 = vmatmul.mubr.f32.gmra.mrb[0].mxu0 %v3751
    %v3842 = vpop.f32.mrb[0].mxu0
    %v3843 = vadd.f32 %v3757, %v3842
    %v3844 = vpop.f32.mrb[0].mxu0
    %v3845 = vadd.f32 %v3761, %v3844
    %3846 = vmatprep.mubr.f32.mxu0 0.0
    %3847 = vmatmul.mubr.f32.gmra.mrb[0].mxu0 %v3752
    %v3848 = vpop.f32.mrb[0].mxu0
    %v3849 = vadd.f32 %v3757, %v3848
    %v3850 = vpop.f32.mrb[0].mxu0
    %v3851 = vadd.f32 %v3761, %v3850
    %3852 = vdwg.mxu0
    %v3853 = vmax.f32 %v3831, 0.0
    %v3854 = vmax.f32 %v3833, 0.0
    %v3855 = vmax.f32 %v3837, 0.0
    %v3856 = vmax.f32 %v3839, 0.0
    %v3857 = vmax.f32 %v3843, 0.0
    %v3858 = vmax.f32 %v3845, 0.0
    %v3859 = vmax.f32 %v3849, 0.0
    %v3860 = vmax.f32 %v3851, 0.0
    %3861 = vmatprep.subr.mxu0 0.0
    %3862 = vmatpush1.msra.mxu0 %v220
    %3863 = vmatprep.subr.mxu0 0.0
    %3864 = vmatpush1.msra.mxu0 %v221
    %3865 = vmatprep.subr.mxu0 0.0
    %3866 = vmatpush1.msra.mxu0 %v222
    %3867 = vmatprep.subr.mxu0 0.0
    %3868 = vmatpush1.msra.mxu0 %v223
    %3869 = vmatprep.subr.mxu0 0.0
    %3870 = vmatpush1.msra.mxu0 %v224
    %3871 = vmatprep.subr.mxu0 0.0
    %3872 = vmatpush1.msra.mxu0 %v225
    %3873 = vmatprep.subr.mxu0 0.0
    %3874 = vmatpush1.msra.mxu0 %v226
    %3875 = vmatprep.subr.mxu0 0.0
    %3876 = vmatpush1.msra.mxu0 %v227
    %3877 = vmatprep.subr.mxu0 0.0
    %3878 = vmatpush1.msra.mxu0 %v228
    %3879 = vmatprep.subr.mxu0 0.0
    %3880 = vmatpush1.msra.mxu0 %v229
    %3881 = vmatprep.subr.mxu0 0.0
    %3882 = vmatpush1.msra.mxu0 %v230
    %3883 = vmatprep.subr.mxu0 0.0
    %3884 = vmatpush1.msra.mxu0 %v231
    %3885 = vmatprep.subr.mxu0 0.0
    %3886 = vmatpush1.msra.mxu0 %v232
    %3887 = vmatprep.subr.mxu0 0.0
    %3888 = vmatpush1.msra.mxu0 %v233
    %3889 = vmatprep.subr.mxu0 0.0
    %3890 = vmatpush1.msra.mxu0 %v234
    %3891 = vmatprep.subr.mxu0 0.0
    %3892 = vmatpush1.msra.mxu0 %v235
    %3893 = vmatprep.subr.mxu0 0.0
    %3894 = vmatpush1.msra.mxu0 %v236
    %3895 = vmatprep.subr.mxu0 0.0
    %3896 = vmatpush1.msra.mxu0 %v237
    %3897 = vmatprep.subr.mxu0 0.0
    %3898 = vmatpush1.msra.mxu0 %v238
    %3899 = vmatprep.subr.mxu0 0.0
    %3900 = vmatpush1.msra.mxu0 %v239
    %3901 = vmatprep.subr.mxu0 0.0
    %3902 = vmatpush1.msra.mxu0 %v240
    %3903 = vmatprep.subr.mxu0 0.0
    %3904 = vmatpush1.msra.mxu0 %v241
    %3905 = vmatprep.subr.mxu0 0.0
    %3906 = vmatpush1.msra.mxu0 %v242
    %3907 = vmatprep.subr.mxu0 0.0
    %3908 = vmatpush1.msra.mxu0 %v243
    %3909 = vmatprep.subr.mxu0 0.0
    %3910 = vmatpush1.msra.mxu0 %v244
    %3911 = vmatprep.subr.mxu0 0.0
    %3912 = vmatpush1.msra.mxu0 %v245
    %3913 = vmatprep.subr.mxu0 0.0
    %3914 = vmatpush1.msra.mxu0 %v246
    %3915 = vmatprep.subr.mxu0 0.0
    %3916 = vmatpush1.msra.mxu0 %v247
    %3917 = vmatprep.subr.mxu0 0.0
    %3918 = vmatpush1.msra.mxu0 %v248
    %3919 = vmatprep.subr.mxu0 0.0
    %3920 = vmatpush1.msra.mxu0 %v249
    %3921 = vmatprep.subr.mxu0 0.0
    %3922 = vmatpush1.msra.mxu0 %v250
    %3923 = vmatprep.subr.mxu0 0.0
    %3924 = vmatpush1.msra.mxu0 %v251
    %3925 = vmatprep.mubr.f32.mxu0 %v3854
    %3926 = vmatmul.mubr.f32.gmra.mrb[0].mxu0 %v3853
    %v3927 = vpop.f32.mrb[0].mxu0
    %v3928 = vadd.f32 0.0, %v3927
    %v3929 = vpop.f32.mrb[0].mxu0
    %3930 = vmatprep.mubr.f32.mxu0 %v3856
    %3931 = vmatmul.mubr.f32.gmra.mrb[0].mxu0 %v3855
    %v3932 = vpop.f32.mrb[0].mxu0
    %v3933 = vadd.f32 0.0, %v3932
    %v3934 = vpop.f32.mrb[0].mxu0
    %3935 = vmatprep.mubr.f32.mxu0 %v3858
    %3936 = vmatmul.mubr.f32.gmra.mrb[0].mxu0 %v3857
    %v3937 = vpop.f32.mrb[0].mxu0
    %v3938 = vadd.f32 0.0, %v3937
    %v3939 = vpop.f32.mrb[0].mxu0
    %3940 = vmatprep.mubr.f32.mxu0 %v3860
    %3941 = vmatmul.mubr.f32.gmra.mrb[0].mxu0 %v3859
    %v3942 = vpop.f32.mrb[0].mxu0
    %v3943 = vadd.f32 0.0, %v3942
    %v3944 = vpop.f32.mrb[0].mxu0
    %3945 = vdwg.mxu0
    %v3946 = vadd.f32 %v3645, %v3928
    %v3947 = vadd.f32 %v3646, %v3933
    %v3948 = vadd.f32 %v3647, %v3938
    %v3949 = vadd.f32 %v3648, %v3943
    %v3951 = vlaneseq
    %v3952 = vshrl.u32 %v3951, 7
    %v3953 = vsub.s32 0, %v3952
    %v3954 = vrot.slane %v259, %v3953
    %v3956 = vadd.f32 %v3946, %v3954
    %v3957 = vadd.f32 %v3947, %v3954
    %v3958 = vadd.f32 %v3948, %v3954
    %v3959 = vadd.f32 %v3949, %v3954
    %3960 = vrot.lane.b32.xlu0 %v3956, 64
    %v3961 = vpop.permute.xlu0 %3960
    %3962 = vrot.lane.b32.xlu0 %v3957, 64
    %v3963 = vpop.permute.xlu0 %3962
    %3964 = vrot.lane.b32.xlu0 %v3958, 64
    %v3965 = vpop.permute.xlu0 %3964
    %3966 = vrot.lane.b32.xlu0 %v3959, 64
    %v3967 = vpop.permute.xlu0 %3966
    %v3968 = vmax.f32 %v3961, 0.0
    %v3969 = vmax.f32 %v3963, 0.0
    %v3970 = vmax.f32 %v3965, 0.0
    %v3971 = vmax.f32 %v3967, 0.0
    %vm3972 = vcmp.ne.f32.partialorder %v3961, %v3961
    %vm3973 = vcmp.ne.f32.partialorder %v3963, %v3963
    %vm3974 = vcmp.ne.f32.partialorder %v3965, %v3965
    %vm3975 = vcmp.ne.f32.partialorder %v3967, %v3967
    %v3976 = vadd.f32 %v3961, 0.0
    %v3977 = vadd.f32 %v3963, 0.0
    %v3978 = vadd.f32 %v3965, 0.0
    %v3979 = vadd.f32 %v3967, 0.0
    %v3980 = vand.u32 2147483647, %v3961
    %v3981 = vand.u32 2147483647, %v3963
    %v3982 = vand.u32 2147483647, %v3965
    %v3983 = vand.u32 2147483647, %v3967
    %v3984 = vsub.f32 0.0, %v3980
    %v3985 = vsub.f32 0.0, %v3981
    %v3986 = vsub.f32 0.0, %v3982
    %v3987 = vsub.f32 0.0, %v3983
    %v3988 = vmul.f32 %v3984, 1.442695
    %v3989 = vpow.pop %v3988
    %v3990 = vmul.f32 %v3985, 1.442695
    %v3991 = vpow.pop %v3990
    %v3992 = vmul.f32 %v3986, 1.442695
    %v3993 = vpow.pop %v3992
    %v3994 = vmul.f32 %v3987, 1.442695
    %v3995 = vpow.pop %v3994
    %v3996 = vadd.f32 %v3989, 1.0
    %v3997 = vlog2.pop %v3996
    %v3998 = vmul.f32 %v3997, 0.6931472
    %v3999 = vmul.f32 -0.5, %v3989
    %v4000 = vadd.f32 %v3999, 1.0
    %v4001 = vmul.f32 %v4000, %v3989
    %v4002 = vand.u32 2147483647, %v3989
    %vm4003 = vcmp.lt.f32.partialorder %v4002, 0.0004427343
    %v4004 = vsel %vm4003, %v4001, %v3998
    %v4005 = vadd.f32 %v3991, 1.0
    %v4006 = vlog2.pop %v4005
    %v4007 = vmul.f32 %v4006, 0.6931472
    %v4008 = vmul.f32 -0.5, %v3991
    %v4009 = vadd.f32 %v4008, 1.0
    %v4010 = vmul.f32 %v4009, %v3991
    %v4011 = vand.u32 2147483647, %v3991
    %vm4012 = vcmp.lt.f32.partialorder %v4011, 0.0004427343
    %v4013 = vsel %vm4012, %v4010, %v4007
    %v4014 = vadd.f32 %v3993, 1.0
    %v4015 = vlog2.pop %v4014
    %v4016 = vmul.f32 %v4015, 0.6931472
    %v4017 = vmul.f32 -0.5, %v3993
    %v4018 = vadd.f32 %v4017, 1.0
    %v4019 = vmul.f32 %v4018, %v3993
    %v4020 = vand.u32 2147483647, %v3993
    %vm4021 = vcmp.lt.f32.partialorder %v4020, 0.0004427343
    %v4022 = vsel %vm4021, %v4019, %v4016
    %v4023 = vadd.f32 %v3995, 1.0
    %v4024 = vlog2.pop %v4023
    %v4025 = vmul.f32 %v4024, 0.6931472
    %v4026 = vmul.f32 -0.5, %v3995
    %v4027 = vadd.f32 %v4026, 1.0
    %v4028 = vmul.f32 %v4027, %v3995
    %v4029 = vand.u32 2147483647, %v3995
    %vm4030 = vcmp.lt.f32.partialorder %v4029, 0.0004427343
    %v4031 = vsel %vm4030, %v4028, %v4025
    %v4032 = vadd.f32 %v3968, %v4004
    %v4033 = vadd.f32 %v3969, %v4013
    %v4034 = vadd.f32 %v3970, %v4022
    %v4035 = vadd.f32 %v3971, %v4031
    %v4036 = vsel %vm3972, %v3976, %v4032
    %v4037 = vsel %vm3973, %v3977, %v4033
    %v4038 = vsel %vm3974, %v3978, %v4034
    %v4039 = vsel %vm3975, %v3979, %v4035
    %v4040 = vadd.f32 %v4036, 1e-08
    %v4041 = vadd.f32 %v4037, 1e-08
    %v4042 = vadd.f32 %v4038, 1e-08
    %v4043 = vadd.f32 %v4039, 1e-08
    %s4044 = scalar_lea.vmem [#allocation2], 32
    %v4045 = vld [vmem:[%s4044] sm:$0xff]
    %v4046 = vld [vmem:[%s4044 + $0x8] sm:$0xff]
    %v4047 = vld [vmem:[%s4044 + $0x10] sm:$0xff]
    %v4048 = vld [vmem:[%s4044 + $0x18] sm:$0xff]
    %v4049 = vmul.f32 %v4040, %v4045
    %v4050 = vmul.f32 %v4041, %v4046
    %v4051 = vmul.f32 %v4042, %v4047
    %v4052 = vmul.f32 %v4043, %v4048
    %v4053 = vadd.f32 %v3956, %v4049
    %v4054 = vadd.f32 %v3957, %v4050
    %v4055 = vadd.f32 %v3958, %v4051
    %v4056 = vadd.f32 %v3959, %v4052
    %4057 = vst [vmem:[#allocation8] sm:$0xff] %v3956
    %4058 = vst [vmem:[#allocation8 + $0x8] sm:$0xff] %v3957
    %4059 = vst [vmem:[#allocation8 + $0x10] sm:$0xff] %v3958
    %4060 = vst [vmem:[#allocation8 + $0x18] sm:$0xff] %v3959
    %4061 = vst [vmem:[#allocation9] sm:$0xff] %v4053
    %4062 = vst [vmem:[#allocation9 + $0x8] sm:$0xff] %v4054
    %4063 = vst [vmem:[#allocation9 + $0x10] sm:$0xff] %v4055
    %4064 = vst [vmem:[#allocation9 + $0x18] sm:$0xff] %v4056
    %4065 = vadd.xlane.f32.xlu0 %v4053
    %v4066 = vpop.xlane.xlu0 %4065
    %4067 = vadd.xlane.f32.xlu0 %v4054
    %v4068 = vpop.xlane.xlu0 %4067
    %4069 = vadd.xlane.f32.xlu0 %v4055
    %v4070 = vpop.xlane.xlu0 %4069
    %4071 = vadd.xlane.f32.xlu0 %v4056
    %v4072 = vpop.xlane.xlu0 %4071
    %v4073 = vsel %vm2279, %v4053, 0.0
    %v4074 = vsel %vm2279, %v4054, 0.0
    %v4075 = vsel %vm2279, %v4055, 0.0
    %v4076 = vsel %vm2279, %v4056, 0.0
    %4077 = vadd.xlane.f32.xlu0 %v4073
    %v4078 = vpop.xlane.xlu0 %4077
    %4079 = vadd.xlane.f32.xlu0 %v4074
    %v4080 = vpop.xlane.xlu0 %4079
    %4081 = vadd.xlane.f32.xlu0 %v4075
    %v4082 = vpop.xlane.xlu0 %4081
    %4083 = vadd.xlane.f32.xlu0 %v4076
    %v4084 = vpop.xlane.xlu0 %4083
    %v4085 = vsub.f32 %v4066, %v4078
    %v4086 = vsub.f32 %v4068, %v4080
    %v4087 = vsub.f32 %v4070, %v4082
    %v4088 = vsub.f32 %v4072, %v4084
    %v4089 = vsel %vm2279, %v4078, %v4085
    %v4090 = vsel %vm2279, %v4080, %v4086
    %v4091 = vsel %vm2279, %v4082, %v4087
    %v4092 = vsel %vm2279, %v4084, %v4088
    %v4093 = vmul.f32 %v4089, 0.015625
    %v4094 = vmul.f32 %v4090, 0.015625
    %v4095 = vmul.f32 %v4091, 0.015625
    %v4096 = vmul.f32 %v4092, 0.015625
    %v4097 = vsub.f32 %v4053, %v4093
    %v4098 = vsub.f32 %v4054, %v4094
    %v4099 = vsub.f32 %v4055, %v4095
    %v4100 = vsub.f32 %v4056, %v4096
    %v4101 = vmul.f32 %v4097, %v4097
    %v4102 = vmul.f32 %v4098, %v4098
    %v4103 = vmul.f32 %v4099, %v4099
    %v4104 = vmul.f32 %v4100, %v4100
    %4105 = vadd.xlane.f32.xlu0 %v4101
    %v4106 = vpop.xlane.xlu0 %4105
    %4107 = vadd.xlane.f32.xlu0 %v4102
    %v4108 = vpop.xlane.xlu0 %4107
    %4109 = vadd.xlane.f32.xlu0 %v4103
    %v4110 = vpop.xlane.xlu0 %4109
    %4111 = vadd.xlane.f32.xlu0 %v4104
    %v4112 = vpop.xlane.xlu0 %4111
    %v4113 = vsel %vm2279, %v4101, 0.0
    %v4114 = vsel %vm2279, %v4102, 0.0
    %v4115 = vsel %vm2279, %v4103, 0.0
    %v4116 = vsel %vm2279, %v4104, 0.0
    %4117 = vadd.xlane.f32.xlu0 %v4113
    %v4118 = vpop.xlane.xlu0 %4117
    %4119 = vadd.xlane.f32.xlu0 %v4114
    %v4120 = vpop.xlane.xlu0 %4119
    %4121 = vadd.xlane.f32.xlu0 %v4115
    %v4122 = vpop.xlane.xlu0 %4121
    %4123 = vadd.xlane.f32.xlu0 %v4116
    %v4124 = vpop.xlane.xlu0 %4123
    %v4125 = vsub.f32 %v4106, %v4118
    %v4126 = vsub.f32 %v4108, %v4120
    %v4127 = vsub.f32 %v4110, %v4122
    %v4128 = vsub.f32 %v4112, %v4124
    %v4129 = vsel %vm2279, %v4118, %v4125
    %v4130 = vsel %vm2279, %v4120, %v4126
    %v4131 = vsel %vm2279, %v4122, %v4127
    %v4132 = vsel %vm2279, %v4124, %v4128
    %v4133 = vmul.f32 %v4129, 0.015625
    %v4134 = vmul.f32 %v4130, 0.015625
    %v4135 = vmul.f32 %v4131, 0.015625
    %v4136 = vmul.f32 %v4132, 0.015625
    %v4137 = vadd.f32 %v4133, 1e-05
    %v4138 = vadd.f32 %v4134, 1e-05
    %v4139 = vadd.f32 %v4135, 1e-05
    %v4140 = vadd.f32 %v4136, 1e-05
    %v4141 = vrsqrt.pop %v4137
    %v4142 = vrsqrt.pop %v4138
    %v4143 = vrsqrt.pop %v4139
    %v4144 = vrsqrt.pop %v4140
    %v4145 = vmul.f32 %v4097, %v4141
    %v4146 = vmul.f32 %v4098, %v4142
    %v4147 = vmul.f32 %v4099, %v4143
    %v4148 = vmul.f32 %v4100, %v4144
    %v4149 = vmul.f32 %v4145, %v2360
    %v4150 = vmul.f32 %v4146, %v2360
    %v4151 = vmul.f32 %v4147, %v2360
    %v4152 = vmul.f32 %v4148, %v2360
    %v4153 = vadd.f32 %v4149, %v2370
    %v4154 = vadd.f32 %v4150, %v2370
    %v4155 = vadd.f32 %v4151, %v2370
    %v4156 = vadd.f32 %v4152, %v2370
    %4157 = vmatprep.subr.mxu0 0.0
    %4158 = vmatpush1.msra.mxu0 %v84
    %4159 = vmatprep.subr.mxu0 0.0
    %4160 = vmatpush1.msra.mxu0 %v85
    %4161 = vmatprep.subr.mxu0 0.0
    %4162 = vmatpush1.msra.mxu0 %v86
    %4163 = vmatprep.subr.mxu0 0.0
    %4164 = vmatpush1.msra.mxu0 %v87
    %4165 = vmatprep.subr.mxu0 0.0
    %4166 = vmatpush1.msra.mxu0 %v88
    %4167 = vmatprep.subr.mxu0 0.0
    %4168 = vmatpush1.msra.mxu0 %v89
    %4169 = vmatprep.subr.mxu0 0.0
    %4170 = vmatpush1.msra.mxu0 %v90
    %4171 = vmatprep.subr.mxu0 0.0
    %4172 = vmatpush1.msra.mxu0 %v91
    %4173 = vmatprep.subr.mxu0 0.0
    %4174 = vmatpush1.msra.mxu0 %v92
    %4175 = vmatprep.subr.mxu0 0.0
    %4176 = vmatpush1.msra.mxu0 %v93
    %4177 = vmatprep.subr.mxu0 0.0
    %4178 = vmatpush1.msra.mxu0 %v94
    %4179 = vmatprep.subr.mxu0 0.0
    %4180 = vmatpush1.msra.mxu0 %v95
    %4181 = vmatprep.subr.mxu0 0.0
    %4182 = vmatpush1.msra.mxu0 %v96
    %4183 = vmatprep.subr.mxu0 0.0
    %4184 = vmatpush1.msra.mxu0 %v97
    %4185 = vmatprep.subr.mxu0 0.0
    %4186 = vmatpush1.msra.mxu0 %v98
    %4187 = vmatprep.subr.mxu0 0.0
    %4188 = vmatpush1.msra.mxu0 %v99
    %4189 = vmatprep.subr.mxu0 0.0
    %4190 = vmatpush1.msra.mxu0 0.0
    %4191 = vmatprep.subr.mxu0 0.0
    %4192 = vmatpush1.msra.mxu0 0.0
    %4193 = vmatprep.subr.mxu0 0.0
    %4194 = vmatpush1.msra.mxu0 0.0
    %4195 = vmatprep.subr.mxu0 0.0
    %4196 = vmatpush1.msra.mxu0 0.0
    %4197 = vmatprep.subr.mxu0 0.0
    %4198 = vmatpush1.msra.mxu0 0.0
    %4199 = vmatprep.subr.mxu0 0.0
    %4200 = vmatpush1.msra.mxu0 0.0
    %4201 = vmatprep.subr.mxu0 0.0
    %4202 = vmatpush1.msra.mxu0 0.0
    %4203 = vmatprep.subr.mxu0 0.0
    %4204 = vmatpush1.msra.mxu0 0.0
    %4205 = vmatprep.subr.mxu0 0.0
    %4206 = vmatpush1.msra.mxu0 0.0
    %4207 = vmatprep.subr.mxu0 0.0
    %4208 = vmatpush1.msra.mxu0 0.0
    %4209 = vmatprep.subr.mxu0 0.0
    %4210 = vmatpush1.msra.mxu0 0.0
    %4211 = vmatprep.subr.mxu0 0.0
    %4212 = vmatpush1.msra.mxu0 0.0
    %4213 = vmatprep.subr.mxu0 0.0
    %4214 = vmatpush1.msra.mxu0 0.0
    %4215 = vmatprep.subr.mxu0 0.0
    %4216 = vmatpush1.msra.mxu0 0.0
    %4217 = vmatprep.subr.mxu0 0.0
    %4218 = vmatpush1.msra.mxu0 0.0
    %4219 = vmatprep.subr.mxu0 0.0
    %4220 = vmatpush1.msra.mxu0 0.0
    %4221 = vmatprep.mubr.f32.mxu0 0.0
    %4222 = vmatmul.mubr.f32.gmra.mrb[0].mxu0 %v4153
    %v4223 = vpop.f32.mrb[0].mxu0
    %v4224 = vadd.f32 0.0, %v4223
    %v4225 = vpop.f32.mrb[0].mxu0
    %4226 = vmatprep.mubr.f32.mxu0 0.0
    %4227 = vmatmul.mubr.f32.gmra.mrb[0].mxu0 %v4154
    %v4228 = vpop.f32.mrb[0].mxu0
    %v4229 = vadd.f32 0.0, %v4228
    %v4230 = vpop.f32.mrb[0].mxu0
    %4231 = vmatprep.mubr.f32.mxu0 0.0
    %4232 = vmatmul.mubr.f32.gmra.mrb[0].mxu0 %v4155
    %v4233 = vpop.f32.mrb[0].mxu0
    %v4234 = vadd.f32 0.0, %v4233
    %v4235 = vpop.f32.mrb[0].mxu0
    %4236 = vmatprep.mubr.f32.mxu0 0.0
    %4237 = vmatmul.mubr.f32.gmra.mrb[0].mxu0 %v4156
    %v4238 = vpop.f32.mrb[0].mxu0
    %v4239 = vadd.f32 0.0, %v4238
    %v4240 = vpop.f32.mrb[0].mxu0
    %4241 = vdwg.mxu0
    %v4242 = vmul.f32 %v4224, 0.125
    %v4243 = vmul.f32 %v4229, 0.125
    %v4244 = vmul.f32 %v4234, 0.125
    %v4245 = vmul.f32 %v4239, 0.125
    %v4246 = vpack.c.bf16 %v4242, %v4242
    %v4247 = vpack.c.bf16 %v4243, %v4243
    %v4248 = vpack.c.bf16 %v4244, %v4244
    %v4249 = vpack.c.bf16 %v4245, %v4245
    %v4251 = vsel %vm735, %v4246, 0
    %4253 = vmatprep.subr.bf16.mxu0 0
    %4254 = vmatpush1.bf16.xpose.msra.mxu0 %v2473
    %4255 = vmatprep.subr.bf16.mxu0 0
    %4256 = vmatpush1.bf16.xpose.msra.mxu0 %v2476
    %4257 = vmatprep.subr.bf16.mxu0 0
    %4258 = vmatpush1.bf16.xpose.msra.mxu0 %v2479
    %4259 = vmatprep.subr.bf16.mxu0 0
    %4260 = vmatpush1.bf16.xpose.msra.mxu0 %v2482
    %4261 = vmatprep.subr.bf16.mxu0 0
    %4262 = vmatpush1.bf16.xpose.msra.mxu0 %v2485
    %4263 = vmatprep.subr.bf16.mxu0 0
    %4264 = vmatpush1.bf16.xpose.msra.mxu0 %v2488
    %4265 = vmatprep.subr.bf16.mxu0 0
    %4266 = vmatpush1.bf16.xpose.msra.mxu0 %v2491
    %4267 = vmatprep.subr.bf16.mxu0 0
    %4268 = vmatpush1.bf16.xpose.msra.mxu0 %v2494
    %4269 = vmatprep.subr.bf16.mxu0 0
    %4270 = vmatpush1.bf16.xpose.msra.mxu0 %v2497
    %4271 = vmatprep.subr.bf16.mxu0 0
    %4272 = vmatpush1.bf16.xpose.msra.mxu0 %v2500
    %4273 = vmatprep.subr.bf16.mxu0 0
    %4274 = vmatpush1.bf16.xpose.msra.mxu0 %v2503
    %4275 = vmatprep.subr.bf16.mxu0 0
    %4276 = vmatpush1.bf16.xpose.msra.mxu0 %v2506
    %4277 = vmatprep.subr.bf16.mxu0 0
    %4278 = vmatpush1.bf16.xpose.msra.mxu0 %v2509
    %4279 = vmatprep.subr.bf16.mxu0 0
    %4280 = vmatpush1.bf16.xpose.msra.mxu0 %v2512
    %4281 = vmatprep.subr.bf16.mxu0 0
    %4282 = vmatpush1.bf16.xpose.msra.mxu0 %v2515
    %4283 = vmatprep.subr.bf16.mxu0 0
    %4284 = vmatpush1.bf16.xpose.msra.mxu0 %v2518
    %4285 = vmatprep.mubr.bf16.mxu0 0
    %4286 = vmatmul.mubr.bf16.gmra.mrb[0].mxu0 %v4251
    %v4287 = vpop.f32.mrb[0].mxu0
    %v4288 = vadd.f32 0.0, %v4287
    %v4289 = vpop.f32.mrb[0].mxu0
    %v4290 = vadd.f32 0.0, %v4289
    %v4291 = vpop.f32.mrb[0].mxu0
    %v4292 = vpop.f32.mrb[0].mxu0
    %4293 = vdwg.mxu0
    %v4295 = vsel %vm735, %v4247, 0
    %4297 = vmatprep.subr.bf16.mxu0 0
    %4298 = vmatpush1.bf16.xpose.msra.mxu0 %v2565
    %4299 = vmatprep.subr.bf16.mxu0 0
    %4300 = vmatpush1.bf16.xpose.msra.mxu0 %v2568
    %4301 = vmatprep.subr.bf16.mxu0 0
    %4302 = vmatpush1.bf16.xpose.msra.mxu0 %v2571
    %4303 = vmatprep.subr.bf16.mxu0 0
    %4304 = vmatpush1.bf16.xpose.msra.mxu0 %v2574
    %4305 = vmatprep.subr.bf16.mxu0 0
    %4306 = vmatpush1.bf16.xpose.msra.mxu0 %v2577
    %4307 = vmatprep.subr.bf16.mxu0 0
    %4308 = vmatpush1.bf16.xpose.msra.mxu0 %v2580
    %4309 = vmatprep.subr.bf16.mxu0 0
    %4310 = vmatpush1.bf16.xpose.msra.mxu0 %v2583
    %4311 = vmatprep.subr.bf16.mxu0 0
    %4312 = vmatpush1.bf16.xpose.msra.mxu0 %v2586
    %4313 = vmatprep.subr.bf16.mxu0 0
    %4314 = vmatpush1.bf16.xpose.msra.mxu0 %v2589
    %4315 = vmatprep.subr.bf16.mxu0 0
    %4316 = vmatpush1.bf16.xpose.msra.mxu0 %v2592
    %4317 = vmatprep.subr.bf16.mxu0 0
    %4318 = vmatpush1.bf16.xpose.msra.mxu0 %v2595
    %4319 = vmatprep.subr.bf16.mxu0 0
    %4320 = vmatpush1.bf16.xpose.msra.mxu0 %v2598
    %4321 = vmatprep.subr.bf16.mxu0 0
    %4322 = vmatpush1.bf16.xpose.msra.mxu0 %v2601
    %4323 = vmatprep.subr.bf16.mxu0 0
    %4324 = vmatpush1.bf16.xpose.msra.mxu0 %v2604
    %4325 = vmatprep.subr.bf16.mxu0 0
    %4326 = vmatpush1.bf16.xpose.msra.mxu0 %v2607
    %4327 = vmatprep.subr.bf16.mxu0 0
    %4328 = vmatpush1.bf16.xpose.msra.mxu0 %v2610
    %4329 = vmatprep.mubr.bf16.mxu0 0
    %4330 = vmatmul.mubr.bf16.gmra.mrb[0].mxu0 %v4295
    %v4331 = vpop.f32.mrb[0].mxu0
    %v4332 = vadd.f32 0.0, %v4331
    %v4333 = vpop.f32.mrb[0].mxu0
    %v4334 = vadd.f32 0.0, %v4333
    %v4335 = vpop.f32.mrb[0].mxu0
    %v4336 = vpop.f32.mrb[0].mxu0
    %4337 = vdwg.mxu0
    %v4339 = vsel %vm735, %v4248, 0
    %4341 = vmatprep.subr.bf16.mxu0 0
    %4342 = vmatpush1.bf16.xpose.msra.mxu0 %v2657
    %4343 = vmatprep.subr.bf16.mxu0 0
    %4344 = vmatpush1.bf16.xpose.msra.mxu0 %v2660
    %4345 = vmatprep.subr.bf16.mxu0 0
    %4346 = vmatpush1.bf16.xpose.msra.mxu0 %v2663
    %4347 = vmatprep.subr.bf16.mxu0 0
    %4348 = vmatpush1.bf16.xpose.msra.mxu0 %v2666
    %4349 = vmatprep.subr.bf16.mxu0 0
    %4350 = vmatpush1.bf16.xpose.msra.mxu0 %v2669
    %4351 = vmatprep.subr.bf16.mxu0 0
    %4352 = vmatpush1.bf16.xpose.msra.mxu0 %v2672
    %4353 = vmatprep.subr.bf16.mxu0 0
    %4354 = vmatpush1.bf16.xpose.msra.mxu0 %v2675
    %4355 = vmatprep.subr.bf16.mxu0 0
    %4356 = vmatpush1.bf16.xpose.msra.mxu0 %v2678
    %4357 = vmatprep.subr.bf16.mxu0 0
    %4358 = vmatpush1.bf16.xpose.msra.mxu0 %v2681
    %4359 = vmatprep.subr.bf16.mxu0 0
    %4360 = vmatpush1.bf16.xpose.msra.mxu0 %v2684
    %4361 = vmatprep.subr.bf16.mxu0 0
    %4362 = vmatpush1.bf16.xpose.msra.mxu0 %v2687
    %4363 = vmatprep.subr.bf16.mxu0 0
    %4364 = vmatpush1.bf16.xpose.msra.mxu0 %v2690
    %4365 = vmatprep.subr.bf16.mxu0 0
    %4366 = vmatpush1.bf16.xpose.msra.mxu0 %v2693
    %4367 = vmatprep.subr.bf16.mxu0 0
    %4368 = vmatpush1.bf16.xpose.msra.mxu0 %v2696
    %4369 = vmatprep.subr.bf16.mxu0 0
    %4370 = vmatpush1.bf16.xpose.msra.mxu0 %v2699
    %4371 = vmatprep.subr.bf16.mxu0 0
    %4372 = vmatpush1.bf16.xpose.msra.mxu0 %v2702
    %4373 = vmatprep.mubr.bf16.mxu0 0
    %4374 = vmatmul.mubr.bf16.gmra.mrb[0].mxu0 %v4339
    %v4375 = vpop.f32.mrb[0].mxu0
    %v4376 = vadd.f32 0.0, %v4375
    %v4377 = vpop.f32.mrb[0].mxu0
    %v4378 = vadd.f32 0.0, %v4377
    %v4379 = vpop.f32.mrb[0].mxu0
    %v4380 = vpop.f32.mrb[0].mxu0
    %4381 = vdwg.mxu0
    %v4383 = vsel %vm735, %v4249, 0
    %4385 = vmatprep.subr.bf16.mxu0 0
    %4386 = vmatpush1.bf16.xpose.msra.mxu0 %v2749
    %4387 = vmatprep.subr.bf16.mxu0 0
    %4388 = vmatpush1.bf16.xpose.msra.mxu0 %v2752
    %4389 = vmatprep.subr.bf16.mxu0 0
    %4390 = vmatpush1.bf16.xpose.msra.mxu0 %v2755
    %4391 = vmatprep.subr.bf16.mxu0 0
    %4392 = vmatpush1.bf16.xpose.msra.mxu0 %v2758
    %4393 = vmatprep.subr.bf16.mxu0 0
    %4394 = vmatpush1.bf16.xpose.msra.mxu0 %v2761
    %4395 = vmatprep.subr.bf16.mxu0 0
    %4396 = vmatpush1.bf16.xpose.msra.mxu0 %v2764
    %4397 = vmatprep.subr.bf16.mxu0 0
    %4398 = vmatpush1.bf16.xpose.msra.mxu0 %v2767
    %4399 = vmatprep.subr.bf16.mxu0 0
    %4400 = vmatpush1.bf16.xpose.msra.mxu0 %v2770
    %4401 = vmatprep.subr.bf16.mxu0 0
    %4402 = vmatpush1.bf16.xpose.msra.mxu0 %v2773
    %4403 = vmatprep.subr.bf16.mxu0 0
    %4404 = vmatpush1.bf16.xpose.msra.mxu0 %v2776
    %4405 = vmatprep.subr.bf16.mxu0 0
    %4406 = vmatpush1.bf16.xpose.msra.mxu0 %v2779
    %4407 = vmatprep.subr.bf16.mxu0 0
    %4408 = vmatpush1.bf16.xpose.msra.mxu0 %v2782
    %4409 = vmatprep.subr.bf16.mxu0 0
    %4410 = vmatpush1.bf16.xpose.msra.mxu0 %v2785
    %4411 = vmatprep.subr.bf16.mxu0 0
    %4412 = vmatpush1.bf16.xpose.msra.mxu0 %v2788
    %4413 = vmatprep.subr.bf16.mxu0 0
    %4414 = vmatpush1.bf16.xpose.msra.mxu0 %v2791
    %4415 = vmatprep.subr.bf16.mxu0 0
    %4416 = vmatpush1.bf16.xpose.msra.mxu0 %v2794
    %4417 = vmatprep.mubr.bf16.mxu0 0
    %4418 = vmatmul.mubr.bf16.gmra.mrb[0].mxu0 %v4383
    %v4419 = vpop.f32.mrb[0].mxu0
    %v4420 = vadd.f32 0.0, %v4419
    %v4421 = vpop.f32.mrb[0].mxu0
    %v4422 = vadd.f32 0.0, %v4421
    %v4423 = vpop.f32.mrb[0].mxu0
    %v4424 = vpop.f32.mrb[0].mxu0
    %4425 = vdwg.mxu0
    %v4426 = vrot.slane %v4288, 4
    %v4427 = vmax.f32 %v4288, %v4426
    %v4428 = vrot.slane %v4427, 2
    %v4429 = vmax.f32 %v4427, %v4428
    %v4430 = vrot.slane %v4429, 1
    %v4431 = vmax.f32 %v4429, %v4430
    %v4432 = vrot.slane %v4290, 4
    %v4433 = vmax.f32 %v4290, %v4432
    %v4434 = vrot.slane %v4433, 2
    %v4435 = vmax.f32 %v4433, %v4434
    %v4436 = vrot.slane %v4435, 1
    %v4437 = vmax.f32 %v4435, %v4436
    %v4438 = vrot.slane %v4332, 4
    %v4439 = vmax.f32 %v4332, %v4438
    %v4440 = vrot.slane %v4439, 2
    %v4441 = vmax.f32 %v4439, %v4440
    %v4442 = vrot.slane %v4441, 1
    %v4443 = vmax.f32 %v4441, %v4442
    %v4444 = vrot.slane %v4334, 4
    %v4445 = vmax.f32 %v4334, %v4444
    %v4446 = vrot.slane %v4445, 2
    %v4447 = vmax.f32 %v4445, %v4446
    %v4448 = vrot.slane %v4447, 1
    %v4449 = vmax.f32 %v4447, %v4448
    %v4450 = vrot.slane %v4376, 4
    %v4451 = vmax.f32 %v4376, %v4450
    %v4452 = vrot.slane %v4451, 2
    %v4453 = vmax.f32 %v4451, %v4452
    %v4454 = vrot.slane %v4453, 1
    %v4455 = vmax.f32 %v4453, %v4454
    %v4456 = vrot.slane %v4378, 4
    %v4457 = vmax.f32 %v4378, %v4456
    %v4458 = vrot.slane %v4457, 2
    %v4459 = vmax.f32 %v4457, %v4458
    %v4460 = vrot.slane %v4459, 1
    %v4461 = vmax.f32 %v4459, %v4460
    %v4462 = vrot.slane %v4420, 4
    %v4463 = vmax.f32 %v4420, %v4462
    %v4464 = vrot.slane %v4463, 2
    %v4465 = vmax.f32 %v4463, %v4464
    %v4466 = vrot.slane %v4465, 1
    %v4467 = vmax.f32 %v4465, %v4466
    %v4468 = vrot.slane %v4422, 4
    %v4469 = vmax.f32 %v4422, %v4468
    %v4470 = vrot.slane %v4469, 2
    %v4471 = vmax.f32 %v4469, %v4470
    %v4472 = vrot.slane %v4471, 1
    %v4473 = vmax.f32 %v4471, %v4472
    %v4474 = vsub.f32 %v4288, %v4431
    %v4475 = vsub.f32 %v4290, %v4437
    %v4476 = vsub.f32 %v4332, %v4443
    %v4477 = vsub.f32 %v4334, %v4449
    %v4478 = vsub.f32 %v4376, %v4455
    %v4479 = vsub.f32 %v4378, %v4461
    %v4480 = vsub.f32 %v4420, %v4467
    %v4481 = vsub.f32 %v4422, %v4473
    %v4482 = vmul.f32 %v4474, 1.442695
    %v4483 = vpow.pop %v4482
    %v4484 = vmul.f32 %v4475, 1.442695
    %v4485 = vpow.pop %v4484
    %v4486 = vmul.f32 %v4476, 1.442695
    %v4487 = vpow.pop %v4486
    %v4488 = vmul.f32 %v4477, 1.442695
    %v4489 = vpow.pop %v4488
    %v4490 = vmul.f32 %v4478, 1.442695
    %v4491 = vpow.pop %v4490
    %v4492 = vmul.f32 %v4479, 1.442695
    %v4493 = vpow.pop %v4492
    %v4494 = vmul.f32 %v4480, 1.442695
    %v4495 = vpow.pop %v4494
    %v4496 = vmul.f32 %v4481, 1.442695
    %v4497 = vpow.pop %v4496
    %v4498 = vrot.slane %v4483, 4
    %v4499 = vadd.f32 %v4483, %v4498
    %v4500 = vrot.slane %v4499, 2
    %v4501 = vadd.f32 %v4499, %v4500
    %v4502 = vrot.slane %v4501, 1
    %v4503 = vadd.f32 %v4501, %v4502
    %v4504 = vrot.slane %v4485, 4
    %v4505 = vadd.f32 %v4485, %v4504
    %v4506 = vrot.slane %v4505, 2
    %v4507 = vadd.f32 %v4505, %v4506
    %v4508 = vrot.slane %v4507, 1
    %v4509 = vadd.f32 %v4507, %v4508
    %v4510 = vrot.slane %v4487, 4
    %v4511 = vadd.f32 %v4487, %v4510
    %v4512 = vrot.slane %v4511, 2
    %v4513 = vadd.f32 %v4511, %v4512
    %v4514 = vrot.slane %v4513, 1
    %v4515 = vadd.f32 %v4513, %v4514
    %v4516 = vrot.slane %v4489, 4
    %v4517 = vadd.f32 %v4489, %v4516
    %v4518 = vrot.slane %v4517, 2
    %v4519 = vadd.f32 %v4517, %v4518
    %v4520 = vrot.slane %v4519, 1
    %v4521 = vadd.f32 %v4519, %v4520
    %v4522 = vrot.slane %v4491, 4
    %v4523 = vadd.f32 %v4491, %v4522
    %v4524 = vrot.slane %v4523, 2
    %v4525 = vadd.f32 %v4523, %v4524
    %v4526 = vrot.slane %v4525, 1
    %v4527 = vadd.f32 %v4525, %v4526
    %v4528 = vrot.slane %v4493, 4
    %v4529 = vadd.f32 %v4493, %v4528
    %v4530 = vrot.slane %v4529, 2
    %v4531 = vadd.f32 %v4529, %v4530
    %v4532 = vrot.slane %v4531, 1
    %v4533 = vadd.f32 %v4531, %v4532
    %v4534 = vrot.slane %v4495, 4
    %v4535 = vadd.f32 %v4495, %v4534
    %v4536 = vrot.slane %v4535, 2
    %v4537 = vadd.f32 %v4535, %v4536
    %v4538 = vrot.slane %v4537, 1
    %v4539 = vadd.f32 %v4537, %v4538
    %v4540 = vrot.slane %v4497, 4
    %v4541 = vadd.f32 %v4497, %v4540
    %v4542 = vrot.slane %v4541, 2
    %v4543 = vadd.f32 %v4541, %v4542
    %v4544 = vrot.slane %v4543, 1
    %v4545 = vadd.f32 %v4543, %v4544
    %v4546 = vrcp.pop %v4503
    %v4547 = vmul.f32 %v4483, %v4546
    %v4548 = vrcp.pop %v4509
    %v4549 = vmul.f32 %v4485, %v4548
    %v4550 = vrcp.pop %v4515
    %v4551 = vmul.f32 %v4487, %v4550
    %v4552 = vrcp.pop %v4521
    %v4553 = vmul.f32 %v4489, %v4552
    %v4554 = vrcp.pop %v4527
    %v4555 = vmul.f32 %v4491, %v4554
    %v4556 = vrcp.pop %v4533
    %v4557 = vmul.f32 %v4493, %v4556
    %v4558 = vrcp.pop %v4539
    %v4559 = vmul.f32 %v4495, %v4558
    %v4560 = vrcp.pop %v4545
    %v4561 = vmul.f32 %v4497, %v4560
    %v4562 = vadd.f32 %v4547, 1e-08
    %v4563 = vadd.f32 %v4549, 1e-08
    %v4564 = vadd.f32 %v4551, 1e-08
    %v4565 = vadd.f32 %v4553, 1e-08
    %v4566 = vadd.f32 %v4555, 1e-08
    %v4567 = vadd.f32 %v4557, 1e-08
    %v4568 = vadd.f32 %v4559, 1e-08
    %v4569 = vadd.f32 %v4561, 1e-08
    %v4570 = vadd.f32 %v4562, %v4563
    %4571 = vadd.xlane.f32.xlu0 %v4570
    %v4572 = vpop.xlane.xlu0 %4571
    %v4573 = vadd.f32 %v4564, %v4565
    %4574 = vadd.xlane.f32.xlu0 %v4573
    %v4575 = vpop.xlane.xlu0 %4574
    %v4576 = vadd.f32 %v4566, %v4567
    %4577 = vadd.xlane.f32.xlu0 %v4576
    %v4578 = vpop.xlane.xlu0 %4577
    %v4579 = vadd.f32 %v4568, %v4569
    %4580 = vadd.xlane.f32.xlu0 %v4579
    %v4581 = vpop.xlane.xlu0 %4580
    %v4582 = vrcp.pop %v4572
    %v4583 = vrcp.pop %v4575
    %v4584 = vrcp.pop %v4578
    %v4585 = vrcp.pop %v4581
    %v4586 = vmul.f32 %v4562, %v4582
    %v4587 = vmul.f32 %v4563, %v4582
    %v4588 = vmul.f32 %v4564, %v4583
    %v4589 = vmul.f32 %v4565, %v4583
    %v4590 = vmul.f32 %v4566, %v4584
    %v4591 = vmul.f32 %v4567, %v4584
    %v4592 = vmul.f32 %v4568, %v4585
    %v4593 = vmul.f32 %v4569, %v4585
    %v4594 = vpack.c.bf16 %v4586, %v4586
    %v4595 = vpack.c.bf16 %v4587, %v4587
    %v4596 = vpack.c.bf16 %v4588, %v4588
    %v4597 = vpack.c.bf16 %v4589, %v4589
    %v4598 = vpack.c.bf16 %v4590, %v4590
    %v4599 = vpack.c.bf16 %v4591, %v4591
    %v4600 = vpack.c.bf16 %v4592, %v4592
    %v4601 = vpack.c.bf16 %v4593, %v4593
    %4602 = vmatprep.subr.bf16.mxu0 0
    %4603 = vmatpush1.bf16.msra.mxu0 %v2106
    %4604 = vmatprep.subr.bf16.mxu0 0
    %4605 = vmatpush1.bf16.msra.mxu0 %v2107
    %4606 = vmatprep.subr.bf16.mxu0 0
    %4607 = vmatpush1.bf16.msra.mxu0 %v2108
    %4608 = vmatprep.subr.bf16.mxu0 0
    %4609 = vmatpush1.bf16.msra.mxu0 %v2109
    %4610 = vmatprep.subr.bf16.mxu0 0
    %4611 = vmatpush1.bf16.msra.mxu0 %v2110
    %4612 = vmatprep.subr.bf16.mxu0 0
    %4613 = vmatpush1.bf16.msra.mxu0 %v2111
    %4614 = vmatprep.subr.bf16.mxu0 0
    %4615 = vmatpush1.bf16.msra.mxu0 %v2112
    %4616 = vmatprep.subr.bf16.mxu0 0
    %4617 = vmatpush1.bf16.msra.mxu0 %v2113
    %4618 = vmatprep.subr.bf16.mxu0 0
    %4619 = vmatpush1.bf16.msra.mxu0 %v2114
    %4620 = vmatprep.subr.bf16.mxu0 0
    %4621 = vmatpush1.bf16.msra.mxu0 %v2115
    %4622 = vmatprep.subr.bf16.mxu0 0
    %4623 = vmatpush1.bf16.msra.mxu0 %v2116
    %4624 = vmatprep.subr.bf16.mxu0 0
    %4625 = vmatpush1.bf16.msra.mxu0 %v2117
    %4626 = vmatprep.subr.bf16.mxu0 0
    %4627 = vmatpush1.bf16.msra.mxu0 %v2118
    %4628 = vmatprep.subr.bf16.mxu0 0
    %4629 = vmatpush1.bf16.msra.mxu0 %v2119
    %4630 = vmatprep.subr.bf16.mxu0 0
    %4631 = vmatpush1.bf16.msra.mxu0 %v2120
    %4632 = vmatprep.subr.bf16.mxu0 0
    %4633 = vmatpush1.bf16.msra.mxu0 %v2121
    %4634 = vmatprep.mubr.bf16.mxu0 %v4595
    %4635 = vmatmul.mubr.bf16.gmra.mrb[0].mxu0 %v4594
    %v4636 = vpop.f32.mrb[0].mxu0
    %v4637 = vadd.f32 0.0, %v4636
    %v4638 = vpop.f32.mrb[0].mxu0
    %v4639 = vpop.f32.mrb[0].mxu0
    %v4640 = vpop.f32.mrb[0].mxu0
    %4641 = vdwg.mxu0
    %4642 = vmatprep.subr.bf16.mxu0 0
    %4643 = vmatpush1.bf16.msra.mxu0 %v2122
    %4644 = vmatprep.subr.bf16.mxu0 0
    %4645 = vmatpush1.bf16.msra.mxu0 %v2123
    %4646 = vmatprep.subr.bf16.mxu0 0
    %4647 = vmatpush1.bf16.msra.mxu0 %v2124
    %4648 = vmatprep.subr.bf16.mxu0 0
    %4649 = vmatpush1.bf16.msra.mxu0 %v2125
    %4650 = vmatprep.subr.bf16.mxu0 0
    %4651 = vmatpush1.bf16.msra.mxu0 %v2126
    %4652 = vmatprep.subr.bf16.mxu0 0
    %4653 = vmatpush1.bf16.msra.mxu0 %v2127
    %4654 = vmatprep.subr.bf16.mxu0 0
    %4655 = vmatpush1.bf16.msra.mxu0 %v2128
    %4656 = vmatprep.subr.bf16.mxu0 0
    %4657 = vmatpush1.bf16.msra.mxu0 %v2129
    %4658 = vmatprep.subr.bf16.mxu0 0
    %4659 = vmatpush1.bf16.msra.mxu0 %v2130
    %4660 = vmatprep.subr.bf16.mxu0 0
    %4661 = vmatpush1.bf16.msra.mxu0 %v2131
    %4662 = vmatprep.subr.bf16.mxu0 0
    %4663 = vmatpush1.bf16.msra.mxu0 %v2132
    %4664 = vmatprep.subr.bf16.mxu0 0
    %4665 = vmatpush1.bf16.msra.mxu0 %v2133
    %4666 = vmatprep.subr.bf16.mxu0 0
    %4667 = vmatpush1.bf16.msra.mxu0 %v2134
    %4668 = vmatprep.subr.bf16.mxu0 0
    %4669 = vmatpush1.bf16.msra.mxu0 %v2135
    %4670 = vmatprep.subr.bf16.mxu0 0
    %4671 = vmatpush1.bf16.msra.mxu0 %v2136
    %4672 = vmatprep.subr.bf16.mxu0 0
    %4673 = vmatpush1.bf16.msra.mxu0 %v2137
    %4674 = vmatprep.mubr.bf16.mxu0 %v4597
    %4675 = vmatmul.mubr.bf16.gmra.mrb[0].mxu0 %v4596
    %v4676 = vpop.f32.mrb[0].mxu0
    %v4677 = vadd.f32 0.0, %v4676
    %v4678 = vpop.f32.mrb[0].mxu0
    %v4679 = vpop.f32.mrb[0].mxu0
    %v4680 = vpop.f32.mrb[0].mxu0
    %4681 = vdwg.mxu0
    %4682 = vmatprep.subr.bf16.mxu0 0
    %4683 = vmatpush1.bf16.msra.mxu0 %v2138
    %4684 = vmatprep.subr.bf16.mxu0 0
    %4685 = vmatpush1.bf16.msra.mxu0 %v2139
    %4686 = vmatprep.subr.bf16.mxu0 0
    %4687 = vmatpush1.bf16.msra.mxu0 %v2140
    %4688 = vmatprep.subr.bf16.mxu0 0
    %4689 = vmatpush1.bf16.msra.mxu0 %v2141
    %4690 = vmatprep.subr.bf16.mxu0 0
    %4691 = vmatpush1.bf16.msra.mxu0 %v2142
    %4692 = vmatprep.subr.bf16.mxu0 0
    %4693 = vmatpush1.bf16.msra.mxu0 %v2143
    %4694 = vmatprep.subr.bf16.mxu0 0
    %4695 = vmatpush1.bf16.msra.mxu0 %v2144
    %4696 = vmatprep.subr.bf16.mxu0 0
    %4697 = vmatpush1.bf16.msra.mxu0 %v2145
    %4698 = vmatprep.subr.bf16.mxu0 0
    %4699 = vmatpush1.bf16.msra.mxu0 %v2146
    %4700 = vmatprep.subr.bf16.mxu0 0
    %4701 = vmatpush1.bf16.msra.mxu0 %v2147
    %4702 = vmatprep.subr.bf16.mxu0 0
    %4703 = vmatpush1.bf16.msra.mxu0 %v2148
    %4704 = vmatprep.subr.bf16.mxu0 0
    %4705 = vmatpush1.bf16.msra.mxu0 %v2149
    %4706 = vmatprep.subr.bf16.mxu0 0
    %4707 = vmatpush1.bf16.msra.mxu0 %v2150
    %4708 = vmatprep.subr.bf16.mxu0 0
    %4709 = vmatpush1.bf16.msra.mxu0 %v2151
    %4710 = vmatprep.subr.bf16.mxu0 0
    %4711 = vmatpush1.bf16.msra.mxu0 %v2152
    %4712 = vmatprep.subr.bf16.mxu0 0
    %4713 = vmatpush1.bf16.msra.mxu0 %v2153
    %4714 = vmatprep.mubr.bf16.mxu0 %v4599
    %4715 = vmatmul.mubr.bf16.gmra.mrb[0].mxu0 %v4598
    %v4716 = vpop.f32.mrb[0].mxu0
    %v4717 = vadd.f32 0.0, %v4716
    %v4718 = vpop.f32.mrb[0].mxu0
    %v4719 = vpop.f32.mrb[0].mxu0
    %v4720 = vpop.f32.mrb[0].mxu0
    %4721 = vdwg.mxu0
    %4722 = vmatprep.subr.bf16.mxu0 0
    %4723 = vmatpush1.bf16.msra.mxu0 %v2154
    %4724 = vmatprep.subr.bf16.mxu0 0
    %4725 = vmatpush1.bf16.msra.mxu0 %v2155
    %4726 = vmatprep.subr.bf16.mxu0 0
    %4727 = vmatpush1.bf16.msra.mxu0 %v2156
    %4728 = vmatprep.subr.bf16.mxu0 0
    %4729 = vmatpush1.bf16.msra.mxu0 %v2157
    %4730 = vmatprep.subr.bf16.mxu0 0
    %4731 = vmatpush1.bf16.msra.mxu0 %v2158
    %4732 = vmatprep.subr.bf16.mxu0 0
    %4733 = vmatpush1.bf16.msra.mxu0 %v2159
    %4734 = vmatprep.subr.bf16.mxu0 0
    %4735 = vmatpush1.bf16.msra.mxu0 %v2160
    %4736 = vmatprep.subr.bf16.mxu0 0
    %4737 = vmatpush1.bf16.msra.mxu0 %v2161
    %4738 = vmatprep.subr.bf16.mxu0 0
    %4739 = vmatpush1.bf16.msra.mxu0 %v2162
    %4740 = vmatprep.subr.bf16.mxu0 0
    %4741 = vmatpush1.bf16.msra.mxu0 %v2163
    %4742 = vmatprep.subr.bf16.mxu0 0
    %4743 = vmatpush1.bf16.msra.mxu0 %v2164
    %4744 = vmatprep.subr.bf16.mxu0 0
    %4745 = vmatpush1.bf16.msra.mxu0 %v2165
    %4746 = vmatprep.subr.bf16.mxu0 0
    %4747 = vmatpush1.bf16.msra.mxu0 %v2166
    %4748 = vmatprep.subr.bf16.mxu0 0
    %4749 = vmatpush1.bf16.msra.mxu0 %v2167
    %4750 = vmatprep.subr.bf16.mxu0 0
    %4751 = vmatpush1.bf16.msra.mxu0 %v2168
    %4752 = vmatprep.subr.bf16.mxu0 0
    %4753 = vmatpush1.bf16.msra.mxu0 %v2169
    %4754 = vmatprep.mubr.bf16.mxu0 %v4601
    %4755 = vmatmul.mubr.bf16.gmra.mrb[0].mxu0 %v4600
    %v4756 = vpop.f32.mrb[0].mxu0
    %v4757 = vadd.f32 0.0, %v4756
    %v4758 = vpop.f32.mrb[0].mxu0
    %v4759 = vpop.f32.mrb[0].mxu0
    %v4760 = vpop.f32.mrb[0].mxu0
    %4761 = vdwg.mxu0
    %v4763 = vsel %vm735, %v4637, 0
    %v4766 = vsel %vm735, %v4677, 0
    %v4769 = vsel %vm735, %v4717, 0
    %v4772 = vsel %vm735, %v4757, 0
    %4774 = vmatprep.subr.mxu0 %v117
    %4775 = vmatpush1.msra.mxu0 %v116
    %4776 = vmatprep.subr.mxu0 %v120
    %4777 = vmatpush1.msra.mxu0 %v119
    %4778 = vmatprep.subr.mxu0 %v123
    %4779 = vmatpush1.msra.mxu0 %v122
    %4780 = vmatprep.subr.mxu0 %v126
    %4781 = vmatpush1.msra.mxu0 %v125
    %4782 = vmatprep.subr.mxu0 %v129
    %4783 = vmatpush1.msra.mxu0 %v128
    %4784 = vmatprep.subr.mxu0 %v132
    %4785 = vmatpush1.msra.mxu0 %v131
    %4786 = vmatprep.subr.mxu0 %v135
    %4787 = vmatpush1.msra.mxu0 %v134
    %4788 = vmatprep.subr.mxu0 %v138
    %4789 = vmatpush1.msra.mxu0 %v137
    %4790 = vmatprep.subr.mxu0 0.0
    %4791 = vmatpush1.msra.mxu0 0.0
    %4792 = vmatprep.subr.mxu0 0.0
    %4793 = vmatpush1.msra.mxu0 0.0
    %4794 = vmatprep.subr.mxu0 0.0
    %4795 = vmatpush1.msra.mxu0 0.0
    %4796 = vmatprep.subr.mxu0 0.0
    %4797 = vmatpush1.msra.mxu0 0.0
    %4798 = vmatprep.subr.mxu0 0.0
    %4799 = vmatpush1.msra.mxu0 0.0
    %4800 = vmatprep.subr.mxu0 0.0
    %4801 = vmatpush1.msra.mxu0 0.0
    %4802 = vmatprep.subr.mxu0 0.0
    %4803 = vmatpush1.msra.mxu0 0.0
    %4804 = vmatprep.subr.mxu0 0.0
    %4805 = vmatpush1.msra.mxu0 0.0
    %4806 = vmatprep.subr.mxu0 0.0
    %4807 = vmatpush1.msra.mxu0 0.0
    %4808 = vmatprep.subr.mxu0 0.0
    %4809 = vmatpush1.msra.mxu0 0.0
    %4810 = vmatprep.subr.mxu0 0.0
    %4811 = vmatpush1.msra.mxu0 0.0
    %4812 = vmatprep.subr.mxu0 0.0
    %4813 = vmatpush1.msra.mxu0 0.0
    %4814 = vmatprep.subr.mxu0 0.0
    %4815 = vmatpush1.msra.mxu0 0.0
    %4816 = vmatprep.subr.mxu0 0.0
    %4817 = vmatpush1.msra.mxu0 0.0
    %4818 = vmatprep.subr.mxu0 0.0
    %4819 = vmatpush1.msra.mxu0 0.0
    %4820 = vmatprep.subr.mxu0 0.0
    %4821 = vmatpush1.msra.mxu0 0.0
    %4822 = vmatprep.subr.mxu0 0.0
    %4823 = vmatpush1.msra.mxu0 0.0
    %4824 = vmatprep.subr.mxu0 0.0
    %4825 = vmatpush1.msra.mxu0 0.0
    %4826 = vmatprep.subr.mxu0 0.0
    %4827 = vmatpush1.msra.mxu0 0.0
    %4828 = vmatprep.subr.mxu0 0.0
    %4829 = vmatpush1.msra.mxu0 0.0
    %4830 = vmatprep.subr.mxu0 0.0
    %4831 = vmatpush1.msra.mxu0 0.0
    %4832 = vmatprep.subr.mxu0 0.0
    %4833 = vmatpush1.msra.mxu0 0.0
    %4834 = vmatprep.subr.mxu0 0.0
    %4835 = vmatpush1.msra.mxu0 0.0
    %4836 = vmatprep.subr.mxu0 0.0
    %4837 = vmatpush1.msra.mxu0 0.0
    %4838 = vmatprep.mubr.f32.mxu0 0.0
    %4839 = vmatmul.mubr.f32.gmra.mrb[0].mxu0 %v4763
    %v4840 = vpop.f32.mrb[0].mxu0
    %v4841 = vadd.f32 %v3177, %v4840
    %v4842 = vpop.f32.mrb[0].mxu0
    %v4843 = vadd.f32 %v3181, %v4842
    %4844 = vmatprep.mubr.f32.mxu0 0.0
    %4845 = vmatmul.mubr.f32.gmra.mrb[0].mxu0 %v4766
    %v4846 = vpop.f32.mrb[0].mxu0
    %v4847 = vadd.f32 %v3177, %v4846
    %v4848 = vpop.f32.mrb[0].mxu0
    %v4849 = vadd.f32 %v3181, %v4848
    %4850 = vmatprep.mubr.f32.mxu0 0.0
    %4851 = vmatmul.mubr.f32.gmra.mrb[0].mxu0 %v4769
    %v4852 = vpop.f32.mrb[0].mxu0
    %v4853 = vadd.f32 %v3177, %v4852
    %v4854 = vpop.f32.mrb[0].mxu0
    %v4855 = vadd.f32 %v3181, %v4854
    %4856 = vmatprep.mubr.f32.mxu0 0.0
    %4857 = vmatmul.mubr.f32.gmra.mrb[0].mxu0 %v4772
    %v4858 = vpop.f32.mrb[0].mxu0
    %v4859 = vadd.f32 %v3177, %v4858
    %v4860 = vpop.f32.mrb[0].mxu0
    %v4861 = vadd.f32 %v3181, %v4860
    %4862 = vdwg.mxu0
    %4863 = vmatprep.subr.mxu0 0.0
    %4864 = vmatpush1.msra.mxu0 %v118
    %4865 = vmatprep.subr.mxu0 0.0
    %4866 = vmatpush1.msra.mxu0 %v121
    %4867 = vmatprep.subr.mxu0 0.0
    %4868 = vmatpush1.msra.mxu0 %v124
    %4869 = vmatprep.subr.mxu0 0.0
    %4870 = vmatpush1.msra.mxu0 %v127
    %4871 = vmatprep.subr.mxu0 0.0
    %4872 = vmatpush1.msra.mxu0 %v130
    %4873 = vmatprep.subr.mxu0 0.0
    %4874 = vmatpush1.msra.mxu0 %v133
    %4875 = vmatprep.subr.mxu0 0.0
    %4876 = vmatpush1.msra.mxu0 %v136
    %4877 = vmatprep.subr.mxu0 0.0
    %4878 = vmatpush1.msra.mxu0 %v139
    %4879 = vmatprep.subr.mxu0 0.0
    %4880 = vmatpush1.msra.mxu0 0.0
    %4881 = vmatprep.subr.mxu0 0.0
    %4882 = vmatpush1.msra.mxu0 0.0
    %4883 = vmatprep.subr.mxu0 0.0
    %4884 = vmatpush1.msra.mxu0 0.0
    %4885 = vmatprep.subr.mxu0 0.0
    %4886 = vmatpush1.msra.mxu0 0.0
    %4887 = vmatprep.subr.mxu0 0.0
    %4888 = vmatpush1.msra.mxu0 0.0
    %4889 = vmatprep.subr.mxu0 0.0
    %4890 = vmatpush1.msra.mxu0 0.0
    %4891 = vmatprep.subr.mxu0 0.0
    %4892 = vmatpush1.msra.mxu0 0.0
    %4893 = vmatprep.subr.mxu0 0.0
    %4894 = vmatpush1.msra.mxu0 0.0
    %4895 = vmatprep.subr.mxu0 0.0
    %4896 = vmatpush1.msra.mxu0 0.0
    %4897 = vmatprep.subr.mxu0 0.0
    %4898 = vmatpush1.msra.mxu0 0.0
    %4899 = vmatprep.subr.mxu0 0.0
    %4900 = vmatpush1.msra.mxu0 0.0
    %4901 = vmatprep.subr.mxu0 0.0
    %4902 = vmatpush1.msra.mxu0 0.0
    %4903 = vmatprep.subr.mxu0 0.0
    %4904 = vmatpush1.msra.mxu0 0.0
    %4905 = vmatprep.subr.mxu0 0.0
    %4906 = vmatpush1.msra.mxu0 0.0
    %4907 = vmatprep.subr.mxu0 0.0
    %4908 = vmatpush1.msra.mxu0 0.0
    %4909 = vmatprep.subr.mxu0 0.0
    %4910 = vmatpush1.msra.mxu0 0.0
    %4911 = vmatprep.subr.mxu0 0.0
    %4912 = vmatpush1.msra.mxu0 0.0
    %4913 = vmatprep.subr.mxu0 0.0
    %4914 = vmatpush1.msra.mxu0 0.0
    %4915 = vmatprep.subr.mxu0 0.0
    %4916 = vmatpush1.msra.mxu0 0.0
    %4917 = vmatprep.subr.mxu0 0.0
    %4918 = vmatpush1.msra.mxu0 0.0
    %4919 = vmatprep.subr.mxu0 0.0
    %4920 = vmatpush1.msra.mxu0 0.0
    %4921 = vmatprep.subr.mxu0 0.0
    %4922 = vmatpush1.msra.mxu0 0.0
    %4923 = vmatprep.subr.mxu0 0.0
    %4924 = vmatpush1.msra.mxu0 0.0
    %4925 = vmatprep.subr.mxu0 0.0
    %4926 = vmatpush1.msra.mxu0 0.0
    %4927 = vmatprep.mubr.f32.mxu0 0.0
    %4928 = vmatmul.mubr.f32.gmra.mrb[0].mxu0 %v4763
    %v4929 = vpop.f32.mrb[0].mxu0
    %v4930 = vadd.f32 %v3185, %v4929
    %v4931 = vpop.f32.mrb[0].mxu0
    %4932 = vmatprep.mubr.f32.mxu0 0.0
    %4933 = vmatmul.mubr.f32.gmra.mrb[0].mxu0 %v4766
    %v4934 = vpop.f32.mrb[0].mxu0
    %v4935 = vadd.f32 %v3185, %v4934
    %v4936 = vpop.f32.mrb[0].mxu0
    %4937 = vmatprep.mubr.f32.mxu0 0.0
    %4938 = vmatmul.mubr.f32.gmra.mrb[0].mxu0 %v4769
    %v4939 = vpop.f32.mrb[0].mxu0
    %v4940 = vadd.f32 %v3185, %v4939
    %v4941 = vpop.f32.mrb[0].mxu0
    %4942 = vmatprep.mubr.f32.mxu0 0.0
    %4943 = vmatmul.mubr.f32.gmra.mrb[0].mxu0 %v4772
    %v4944 = vpop.f32.mrb[0].mxu0
    %v4945 = vadd.f32 %v3185, %v4944
    %v4946 = vpop.f32.mrb[0].mxu0
    %4947 = vdwg.mxu0
    %4948 = vmatprep.subr.mxu0 %v141
    %4949 = vmatpush1.msra.mxu0 %v140
    %4950 = vmatprep.subr.mxu0 %v144
    %4951 = vmatpush1.msra.mxu0 %v143
    %4952 = vmatprep.subr.mxu0 %v147
    %4953 = vmatpush1.msra.mxu0 %v146
    %4954 = vmatprep.subr.mxu0 %v150
    %4955 = vmatpush1.msra.mxu0 %v149
    %4956 = vmatprep.subr.mxu0 %v153
    %4957 = vmatpush1.msra.mxu0 %v152
    %4958 = vmatprep.subr.mxu0 %v156
    %4959 = vmatpush1.msra.mxu0 %v155
    %4960 = vmatprep.subr.mxu0 %v159
    %4961 = vmatpush1.msra.mxu0 %v158
    %4962 = vmatprep.subr.mxu0 %v162
    %4963 = vmatpush1.msra.mxu0 %v161
    %4964 = vmatprep.subr.mxu0 %v165
    %4965 = vmatpush1.msra.mxu0 %v164
    %4966 = vmatprep.subr.mxu0 %v168
    %4967 = vmatpush1.msra.mxu0 %v167
    %4968 = vmatprep.subr.mxu0 %v171
    %4969 = vmatpush1.msra.mxu0 %v170
    %4970 = vmatprep.subr.mxu0 %v174
    %4971 = vmatpush1.msra.mxu0 %v173
    %4972 = vmatprep.subr.mxu0 %v177
    %4973 = vmatpush1.msra.mxu0 %v176
    %4974 = vmatprep.subr.mxu0 %v180
    %4975 = vmatpush1.msra.mxu0 %v179
    %4976 = vmatprep.subr.mxu0 %v183
    %4977 = vmatpush1.msra.mxu0 %v182
    %4978 = vmatprep.subr.mxu0 %v186
    %4979 = vmatpush1.msra.mxu0 %v185
    %4980 = vmatprep.subr.mxu0 0.0
    %4981 = vmatpush1.msra.mxu0 0.0
    %4982 = vmatprep.subr.mxu0 0.0
    %4983 = vmatpush1.msra.mxu0 0.0
    %4984 = vmatprep.subr.mxu0 0.0
    %4985 = vmatpush1.msra.mxu0 0.0
    %4986 = vmatprep.subr.mxu0 0.0
    %4987 = vmatpush1.msra.mxu0 0.0
    %4988 = vmatprep.subr.mxu0 0.0
    %4989 = vmatpush1.msra.mxu0 0.0
    %4990 = vmatprep.subr.mxu0 0.0
    %4991 = vmatpush1.msra.mxu0 0.0
    %4992 = vmatprep.subr.mxu0 0.0
    %4993 = vmatpush1.msra.mxu0 0.0
    %4994 = vmatprep.subr.mxu0 0.0
    %4995 = vmatpush1.msra.mxu0 0.0
    %4996 = vmatprep.subr.mxu0 0.0
    %4997 = vmatpush1.msra.mxu0 0.0
    %4998 = vmatprep.subr.mxu0 0.0
    %4999 = vmatpush1.msra.mxu0 0.0
    %5000 = vmatprep.subr.mxu0 0.0
    %5001 = vmatpush1.msra.mxu0 0.0
    %5002 = vmatprep.subr.mxu0 0.0
    %5003 = vmatpush1.msra.mxu0 0.0
    %5004 = vmatprep.subr.mxu0 0.0
    %5005 = vmatpush1.msra.mxu0 0.0
    %5006 = vmatprep.subr.mxu0 0.0
    %5007 = vmatpush1.msra.mxu0 0.0
    %5008 = vmatprep.subr.mxu0 0.0
    %5009 = vmatpush1.msra.mxu0 0.0
    %5010 = vmatprep.subr.mxu0 0.0
    %5011 = vmatpush1.msra.mxu0 0.0
    %5012 = vmatprep.mubr.f32.mxu0 0.0
    %5013 = vmatmul.mubr.f32.gmra.mrb[0].mxu0 %v3956
    %v5014 = vpop.f32.mrb[0].mxu0
    %v5015 = vadd.f32 %v3379, %v5014
    %v5016 = vpop.f32.mrb[0].mxu0
    %v5017 = vadd.f32 %v3383, %v5016
    %5018 = vmatprep.mubr.f32.mxu0 0.0
    %5019 = vmatmul.mubr.f32.gmra.mrb[0].mxu0 %v3957
    %v5020 = vpop.f32.mrb[0].mxu0
    %v5021 = vadd.f32 %v3379, %v5020
    %v5022 = vpop.f32.mrb[0].mxu0
    %v5023 = vadd.f32 %v3383, %v5022
    %5024 = vmatprep.mubr.f32.mxu0 0.0
    %5025 = vmatmul.mubr.f32.gmra.mrb[0].mxu0 %v3958
    %v5026 = vpop.f32.mrb[0].mxu0
    %v5027 = vadd.f32 %v3379, %v5026
    %v5028 = vpop.f32.mrb[0].mxu0
    %v5029 = vadd.f32 %v3383, %v5028
    %5030 = vmatprep.mubr.f32.mxu0 0.0
    %5031 = vmatmul.mubr.f32.gmra.mrb[0].mxu0 %v3959
    %v5032 = vpop.f32.mrb[0].mxu0
    %v5033 = vadd.f32 %v3379, %v5032
    %v5034 = vpop.f32.mrb[0].mxu0
    %v5035 = vadd.f32 %v3383, %v5034
    %5036 = vdwg.mxu0
    %5037 = vmatprep.subr.mxu0 0.0
    %5038 = vmatpush1.msra.mxu0 %v142
    %5039 = vmatprep.subr.mxu0 0.0
    %5040 = vmatpush1.msra.mxu0 %v145
    %5041 = vmatprep.subr.mxu0 0.0
    %5042 = vmatpush1.msra.mxu0 %v148
    %5043 = vmatprep.subr.mxu0 0.0
    %5044 = vmatpush1.msra.mxu0 %v151
    %5045 = vmatprep.subr.mxu0 0.0
    %5046 = vmatpush1.msra.mxu0 %v154
    %5047 = vmatprep.subr.mxu0 0.0
    %5048 = vmatpush1.msra.mxu0 %v157
    %5049 = vmatprep.subr.mxu0 0.0
    %5050 = vmatpush1.msra.mxu0 %v160
    %5051 = vmatprep.subr.mxu0 0.0
    %5052 = vmatpush1.msra.mxu0 %v163
    %5053 = vmatprep.subr.mxu0 0.0
    %5054 = vmatpush1.msra.mxu0 %v166
    %5055 = vmatprep.subr.mxu0 0.0
    %5056 = vmatpush1.msra.mxu0 %v169
    %5057 = vmatprep.subr.mxu0 0.0
    %5058 = vmatpush1.msra.mxu0 %v172
    %5059 = vmatprep.subr.mxu0 0.0
    %5060 = vmatpush1.msra.mxu0 %v175
    %5061 = vmatprep.subr.mxu0 0.0
    %5062 = vmatpush1.msra.mxu0 %v178
    %5063 = vmatprep.subr.mxu0 0.0
    %5064 = vmatpush1.msra.mxu0 %v181
    %5065 = vmatprep.subr.mxu0 0.0
    %5066 = vmatpush1.msra.mxu0 %v184
    %5067 = vmatprep.subr.mxu0 0.0
    %5068 = vmatpush1.msra.mxu0 %v187
    %5069 = vmatprep.subr.mxu0 0.0
    %5070 = vmatpush1.msra.mxu0 0.0
    %5071 = vmatprep.subr.mxu0 0.0
    %5072 = vmatpush1.msra.mxu0 0.0
    %5073 = vmatprep.subr.mxu0 0.0
    %5074 = vmatpush1.msra.mxu0 0.0
    %5075 = vmatprep.subr.mxu0 0.0
    %5076 = vmatpush1.msra.mxu0 0.0
    %5077 = vmatprep.subr.mxu0 0.0
    %5078 = vmatpush1.msra.mxu0 0.0
    %5079 = vmatprep.subr.mxu0 0.0
    %5080 = vmatpush1.msra.mxu0 0.0
    %5081 = vmatprep.subr.mxu0 0.0
    %5082 = vmatpush1.msra.mxu0 0.0
    %5083 = vmatprep.subr.mxu0 0.0
    %5084 = vmatpush1.msra.mxu0 0.0
    %5085 = vmatprep.subr.mxu0 0.0
    %5086 = vmatpush1.msra.mxu0 0.0
    %5087 = vmatprep.subr.mxu0 0.0
    %5088 = vmatpush1.msra.mxu0 0.0
    %5089 = vmatprep.subr.mxu0 0.0
    %5090 = vmatpush1.msra.mxu0 0.0
    %5091 = vmatprep.subr.mxu0 0.0
    %5092 = vmatpush1.msra.mxu0 0.0
    %5093 = vmatprep.subr.mxu0 0.0
    %5094 = vmatpush1.msra.mxu0 0.0
    %5095 = vmatprep.subr.mxu0 0.0
    %5096 = vmatpush1.msra.mxu0 0.0
    %5097 = vmatprep.subr.mxu0 0.0
    %5098 = vmatpush1.msra.mxu0 0.0
    %5099 = vmatprep.subr.mxu0 0.0
    %5100 = vmatpush1.msra.mxu0 0.0
    %5101 = vmatprep.mubr.f32.mxu0 0.0
    %5102 = vmatmul.mubr.f32.gmra.mrb[0].mxu0 %v3956
    %v5103 = vpop.f32.mrb[0].mxu0
    %v5104 = vadd.f32 %v3387, %v5103
    %v5105 = vpop.f32.mrb[0].mxu0
    %5106 = vmatprep.mubr.f32.mxu0 0.0
    %5107 = vmatmul.mubr.f32.gmra.mrb[0].mxu0 %v3957
    %v5108 = vpop.f32.mrb[0].mxu0
    %v5109 = vadd.f32 %v3387, %v5108
    %v5110 = vpop.f32.mrb[0].mxu0
    %5111 = vmatprep.mubr.f32.mxu0 0.0
    %5112 = vmatmul.mubr.f32.gmra.mrb[0].mxu0 %v3958
    %v5113 = vpop.f32.mrb[0].mxu0
    %v5114 = vadd.f32 %v3387, %v5113
    %v5115 = vpop.f32.mrb[0].mxu0
    %5116 = vmatprep.mubr.f32.mxu0 0.0
    %5117 = vmatmul.mubr.f32.gmra.mrb[0].mxu0 %v3959
    %v5118 = vpop.f32.mrb[0].mxu0
    %v5119 = vadd.f32 %v3387, %v5118
    %v5120 = vpop.f32.mrb[0].mxu0
    %5121 = vdwg.mxu0
    %v5122 = vadd.f32 %v4841, %v5015
    %v5123 = vadd.f32 %v4847, %v5021
    %v5124 = vadd.f32 %v4853, %v5027
    %v5125 = vadd.f32 %v4859, %v5033
    %v5126 = vxor.u32 %v5122, 2147483648
    %v5127 = vxor.u32 %v5123, 2147483648
    %v5128 = vxor.u32 %v5124, 2147483648
    %v5129 = vxor.u32 %v5125, 2147483648
    %v5130 = vmul.f32 %v5126, 1.442695
    %v5131 = vpow.pop %v5130
    %v5132 = vmul.f32 %v5127, 1.442695
    %v5133 = vpow.pop %v5132
    %v5134 = vmul.f32 %v5128, 1.442695
    %v5135 = vpow.pop %v5134
    %v5136 = vmul.f32 %v5129, 1.442695
    %v5137 = vpow.pop %v5136
    %v5138 = vadd.f32 %v5131, 1.0
    %v5139 = vadd.f32 %v5133, 1.0
    %v5140 = vadd.f32 %v5135, 1.0
    %v5141 = vadd.f32 %v5137, 1.0
    %v5142 = vrcp.pop %v5138
    %v5143 = vmul.f32 1.0, %v5142
    %v5144 = vrcp.pop %v5139
    %v5145 = vmul.f32 1.0, %v5144
    %v5146 = vrcp.pop %v5140
    %v5147 = vmul.f32 1.0, %v5146
    %v5148 = vrcp.pop %v5141
    %v5149 = vmul.f32 1.0, %v5148
    %v5150 = vadd.f32 %v4843, %v5017
    %v5151 = vadd.f32 %v4849, %v5023
    %v5152 = vadd.f32 %v4855, %v5029
    %v5153 = vadd.f32 %v4861, %v5035
    %v5154 = vxor.u32 %v5150, 2147483648
    %v5155 = vxor.u32 %v5151, 2147483648
    %v5156 = vxor.u32 %v5152, 2147483648
    %v5157 = vxor.u32 %v5153, 2147483648
    %v5158 = vmul.f32 %v5154, 1.442695
    %v5159 = vpow.pop %v5158
    %v5160 = vmul.f32 %v5155, 1.442695
    %v5161 = vpow.pop %v5160
    %v5162 = vmul.f32 %v5156, 1.442695
    %v5163 = vpow.pop %v5162
    %v5164 = vmul.f32 %v5157, 1.442695
    %v5165 = vpow.pop %v5164
    %v5166 = vadd.f32 %v5159, 1.0
    %v5167 = vadd.f32 %v5161, 1.0
    %v5168 = vadd.f32 %v5163, 1.0
    %v5169 = vadd.f32 %v5165, 1.0
    %v5170 = vrcp.pop %v5166
    %v5171 = vmul.f32 1.0, %v5170
    %v5172 = vrcp.pop %v5167
    %v5173 = vmul.f32 1.0, %v5172
    %v5174 = vrcp.pop %v5168
    %v5175 = vmul.f32 1.0, %v5174
    %v5176 = vrcp.pop %v5169
    %v5177 = vmul.f32 1.0, %v5176
    %v5178 = vmul.f32 %v5143, %v5104
    %v5179 = vmul.f32 %v5145, %v5109
    %v5180 = vmul.f32 %v5147, %v5114
    %v5181 = vmul.f32 %v5149, %v5119
    %v5182 = vadd.f32 %v4930, %v5178
    %v5183 = vadd.f32 %v4935, %v5179
    %v5184 = vadd.f32 %v4940, %v5180
    %v5185 = vadd.f32 %v4945, %v5181
    %v5186 = vtanh.pop %v5182
    %v5187 = vtanh.pop %v5183
    %v5188 = vtanh.pop %v5184
    %v5189 = vtanh.pop %v5185
    %v5190 = vsub.f32 1.0, %v5171
    %v5191 = vsub.f32 1.0, %v5173
    %v5192 = vsub.f32 1.0, %v5175
    %v5193 = vsub.f32 1.0, %v5177
    %v5194 = vmul.f32 %v5190, %v5186
    %v5195 = vmul.f32 %v5191, %v5187
    %v5196 = vmul.f32 %v5192, %v5188
    %v5197 = vmul.f32 %v5193, %v5189
    %v5198 = vmul.f32 %v5171, %v3956
    %v5199 = vmul.f32 %v5173, %v3957
    %v5200 = vmul.f32 %v5175, %v3958
    %v5201 = vmul.f32 %v5177, %v3959
    %v5202 = vadd.f32 %v5194, %v5198
    %v5203 = vadd.f32 %v5195, %v5199
    %v5204 = vadd.f32 %v5196, %v5200
    %v5205 = vadd.f32 %v5197, %v5201
    %5206 = vadd.xlane.f32.xlu0 %v5202
    %v5207 = vpop.xlane.xlu0 %5206
    %5208 = vadd.xlane.f32.xlu0 %v5203
    %v5209 = vpop.xlane.xlu0 %5208
    %5210 = vadd.xlane.f32.xlu0 %v5204
    %v5211 = vpop.xlane.xlu0 %5210
    %5212 = vadd.xlane.f32.xlu0 %v5205
    %v5213 = vpop.xlane.xlu0 %5212
    %v5214 = vsel %vm2279, %v5202, 0.0
    %v5215 = vsel %vm2279, %v5203, 0.0
    %v5216 = vsel %vm2279, %v5204, 0.0
    %v5217 = vsel %vm2279, %v5205, 0.0
    %5218 = vadd.xlane.f32.xlu0 %v5214
    %v5219 = vpop.xlane.xlu0 %5218
    %5220 = vadd.xlane.f32.xlu0 %v5215
    %v5221 = vpop.xlane.xlu0 %5220
    %5222 = vadd.xlane.f32.xlu0 %v5216
    %v5223 = vpop.xlane.xlu0 %5222
    %5224 = vadd.xlane.f32.xlu0 %v5217
    %v5225 = vpop.xlane.xlu0 %5224
    %v5226 = vsub.f32 %v5207, %v5219
    %v5227 = vsub.f32 %v5209, %v5221
    %v5228 = vsub.f32 %v5211, %v5223
    %v5229 = vsub.f32 %v5213, %v5225
    %v5230 = vsel %vm2279, %v5219, %v5226
    %v5231 = vsel %vm2279, %v5221, %v5227
    %v5232 = vsel %vm2279, %v5223, %v5228
    %v5233 = vsel %vm2279, %v5225, %v5229
    %v5234 = vmul.f32 %v5230, 0.015625
    %v5235 = vmul.f32 %v5231, 0.015625
    %v5236 = vmul.f32 %v5232, 0.015625
    %v5237 = vmul.f32 %v5233, 0.015625
    %v5238 = vsub.f32 %v5202, %v5234
    %v5239 = vsub.f32 %v5203, %v5235
    %v5240 = vsub.f32 %v5204, %v5236
    %v5241 = vsub.f32 %v5205, %v5237
    %v5242 = vmul.f32 %v5238, %v5238
    %v5243 = vmul.f32 %v5239, %v5239
    %v5244 = vmul.f32 %v5240, %v5240
    %v5245 = vmul.f32 %v5241, %v5241
    %5246 = vadd.xlane.f32.xlu0 %v5242
    %v5247 = vpop.xlane.xlu0 %5246
    %5248 = vadd.xlane.f32.xlu0 %v5243
    %v5249 = vpop.xlane.xlu0 %5248
    %5250 = vadd.xlane.f32.xlu0 %v5244
    %v5251 = vpop.xlane.xlu0 %5250
    %5252 = vadd.xlane.f32.xlu0 %v5245
    %v5253 = vpop.xlane.xlu0 %5252
    %v5254 = vsel %vm2279, %v5242, 0.0
    %v5255 = vsel %vm2279, %v5243, 0.0
    %v5256 = vsel %vm2279, %v5244, 0.0
    %v5257 = vsel %vm2279, %v5245, 0.0
    %5258 = vadd.xlane.f32.xlu0 %v5254
    %v5259 = vpop.xlane.xlu0 %5258
    %5260 = vadd.xlane.f32.xlu0 %v5255
    %v5261 = vpop.xlane.xlu0 %5260
    %5262 = vadd.xlane.f32.xlu0 %v5256
    %v5263 = vpop.xlane.xlu0 %5262
    %5264 = vadd.xlane.f32.xlu0 %v5257
    %v5265 = vpop.xlane.xlu0 %5264
    %v5266 = vsub.f32 %v5247, %v5259
    %v5267 = vsub.f32 %v5249, %v5261
    %v5268 = vsub.f32 %v5251, %v5263
    %v5269 = vsub.f32 %v5253, %v5265
    %v5270 = vsel %vm2279, %v5259, %v5266
    %v5271 = vsel %vm2279, %v5261, %v5267
    %v5272 = vsel %vm2279, %v5263, %v5268
    %v5273 = vsel %vm2279, %v5265, %v5269
    %v5274 = vmul.f32 %v5270, 0.015625
    %v5275 = vmul.f32 %v5271, 0.015625
    %v5276 = vmul.f32 %v5272, 0.015625
    %v5277 = vmul.f32 %v5273, 0.015625
    %v5278 = vadd.f32 %v5274, 1e-05
    %v5279 = vadd.f32 %v5275, 1e-05
    %v5280 = vadd.f32 %v5276, 1e-05
    %v5281 = vadd.f32 %v5277, 1e-05
    %v5282 = vrsqrt.pop %v5278
    %v5283 = vrsqrt.pop %v5279
    %v5284 = vrsqrt.pop %v5280
    %v5285 = vrsqrt.pop %v5281
    %v5286 = vmul.f32 %v5238, %v5282
    %v5287 = vmul.f32 %v5239, %v5283
    %v5288 = vmul.f32 %v5240, %v5284
    %v5289 = vmul.f32 %v5241, %v5285
    %v5290 = vmul.f32 %v5286, %v3737
    %v5291 = vmul.f32 %v5287, %v3737
    %v5292 = vmul.f32 %v5288, %v3737
    %v5293 = vmul.f32 %v5289, %v3737
    %v5294 = vadd.f32 %v5290, %v3747
    %v5295 = vadd.f32 %v5291, %v3747
    %v5296 = vadd.f32 %v5292, %v3747
    %v5297 = vadd.f32 %v5293, %v3747
    %5298 = vmatprep.subr.mxu0 %v189
    %5299 = vmatpush1.msra.mxu0 %v188
    %5300 = vmatprep.subr.mxu0 %v191
    %5301 = vmatpush1.msra.mxu0 %v190
    %5302 = vmatprep.subr.mxu0 %v193
    %5303 = vmatpush1.msra.mxu0 %v192
    %5304 = vmatprep.subr.mxu0 %v195
    %5305 = vmatpush1.msra.mxu0 %v194
    %5306 = vmatprep.subr.mxu0 %v197
    %5307 = vmatpush1.msra.mxu0 %v196
    %5308 = vmatprep.subr.mxu0 %v199
    %5309 = vmatpush1.msra.mxu0 %v198
    %5310 = vmatprep.subr.mxu0 %v201
    %5311 = vmatpush1.msra.mxu0 %v200
    %5312 = vmatprep.subr.mxu0 %v203
    %5313 = vmatpush1.msra.mxu0 %v202
    %5314 = vmatprep.subr.mxu0 %v205
    %5315 = vmatpush1.msra.mxu0 %v204
    %5316 = vmatprep.subr.mxu0 %v207
    %5317 = vmatpush1.msra.mxu0 %v206
    %5318 = vmatprep.subr.mxu0 %v209
    %5319 = vmatpush1.msra.mxu0 %v208
    %5320 = vmatprep.subr.mxu0 %v211
    %5321 = vmatpush1.msra.mxu0 %v210
    %5322 = vmatprep.subr.mxu0 %v213
    %5323 = vmatpush1.msra.mxu0 %v212
    %5324 = vmatprep.subr.mxu0 %v215
    %5325 = vmatpush1.msra.mxu0 %v214
    %5326 = vmatprep.subr.mxu0 %v217
    %5327 = vmatpush1.msra.mxu0 %v216
    %5328 = vmatprep.subr.mxu0 %v219
    %5329 = vmatpush1.msra.mxu0 %v218
    %5330 = vmatprep.subr.mxu0 0.0
    %5331 = vmatpush1.msra.mxu0 0.0
    %5332 = vmatprep.subr.mxu0 0.0
    %5333 = vmatpush1.msra.mxu0 0.0
    %5334 = vmatprep.subr.mxu0 0.0
    %5335 = vmatpush1.msra.mxu0 0.0
    %5336 = vmatprep.subr.mxu0 0.0
    %5337 = vmatpush1.msra.mxu0 0.0
    %5338 = vmatprep.subr.mxu0 0.0
    %5339 = vmatpush1.msra.mxu0 0.0
    %5340 = vmatprep.subr.mxu0 0.0
    %5341 = vmatpush1.msra.mxu0 0.0
    %5342 = vmatprep.subr.mxu0 0.0
    %5343 = vmatpush1.msra.mxu0 0.0
    %5344 = vmatprep.subr.mxu0 0.0
    %5345 = vmatpush1.msra.mxu0 0.0
    %5346 = vmatprep.subr.mxu0 0.0
    %5347 = vmatpush1.msra.mxu0 0.0
    %5348 = vmatprep.subr.mxu0 0.0
    %5349 = vmatpush1.msra.mxu0 0.0
    %5350 = vmatprep.subr.mxu0 0.0
    %5351 = vmatpush1.msra.mxu0 0.0
    %5352 = vmatprep.subr.mxu0 0.0
    %5353 = vmatpush1.msra.mxu0 0.0
    %5354 = vmatprep.subr.mxu0 0.0
    %5355 = vmatpush1.msra.mxu0 0.0
    %5356 = vmatprep.subr.mxu0 0.0
    %5357 = vmatpush1.msra.mxu0 0.0
    %5358 = vmatprep.subr.mxu0 0.0
    %5359 = vmatpush1.msra.mxu0 0.0
    %5360 = vmatprep.subr.mxu0 0.0
    %5361 = vmatpush1.msra.mxu0 0.0
    %5362 = vmatprep.mubr.f32.mxu0 0.0
    %5363 = vmatmul.mubr.f32.gmra.mrb[0].mxu0 %v5294
    %v5364 = vpop.f32.mrb[0].mxu0
    %v5365 = vadd.f32 %v3757, %v5364
    %v5366 = vpop.f32.mrb[0].mxu0
    %v5367 = vadd.f32 %v3761, %v5366
    %5368 = vmatprep.mubr.f32.mxu0 0.0
    %5369 = vmatmul.mubr.f32.gmra.mrb[0].mxu0 %v5295
    %v5370 = vpop.f32.mrb[0].mxu0
    %v5371 = vadd.f32 %v3757, %v5370
    %v5372 = vpop.f32.mrb[0].mxu0
    %v5373 = vadd.f32 %v3761, %v5372
    %5374 = vmatprep.mubr.f32.mxu0 0.0
    %5375 = vmatmul.mubr.f32.gmra.mrb[0].mxu0 %v5296
    %v5376 = vpop.f32.mrb[0].mxu0
    %v5377 = vadd.f32 %v3757, %v5376
    %v5378 = vpop.f32.mrb[0].mxu0
    %v5379 = vadd.f32 %v3761, %v5378
    %5380 = vmatprep.mubr.f32.mxu0 0.0
    %5381 = vmatmul.mubr.f32.gmra.mrb[0].mxu0 %v5297
    %v5382 = vpop.f32.mrb[0].mxu0
    %v5383 = vadd.f32 %v3757, %v5382
    %v5384 = vpop.f32.mrb[0].mxu0
    %v5385 = vadd.f32 %v3761, %v5384
    %5386 = vdwg.mxu0
    %v5387 = vmax.f32 %v5365, 0.0
    %v5388 = vmax.f32 %v5367, 0.0
    %v5389 = vmax.f32 %v5371, 0.0
    %v5390 = vmax.f32 %v5373, 0.0
    %v5391 = vmax.f32 %v5377, 0.0
    %v5392 = vmax.f32 %v5379, 0.0
    %v5393 = vmax.f32 %v5383, 0.0
    %v5394 = vmax.f32 %v5385, 0.0
    %5395 = vmatprep.subr.mxu0 0.0
    %5396 = vmatpush1.msra.mxu0 %v220
    %5397 = vmatprep.subr.mxu0 0.0
    %5398 = vmatpush1.msra.mxu0 %v221
    %5399 = vmatprep.subr.mxu0 0.0
    %5400 = vmatpush1.msra.mxu0 %v222
    %5401 = vmatprep.subr.mxu0 0.0
    %5402 = vmatpush1.msra.mxu0 %v223
    %5403 = vmatprep.subr.mxu0 0.0
    %5404 = vmatpush1.msra.mxu0 %v224
    %5405 = vmatprep.subr.mxu0 0.0
    %5406 = vmatpush1.msra.mxu0 %v225
    %5407 = vmatprep.subr.mxu0 0.0
    %5408 = vmatpush1.msra.mxu0 %v226
    %5409 = vmatprep.subr.mxu0 0.0
    %5410 = vmatpush1.msra.mxu0 %v227
    %5411 = vmatprep.subr.mxu0 0.0
    %5412 = vmatpush1.msra.mxu0 %v228
    %5413 = vmatprep.subr.mxu0 0.0
    %5414 = vmatpush1.msra.mxu0 %v229
    %5415 = vmatprep.subr.mxu0 0.0
    %5416 = vmatpush1.msra.mxu0 %v230
    %5417 = vmatprep.subr.mxu0 0.0
    %5418 = vmatpush1.msra.mxu0 %v231
    %5419 = vmatprep.subr.mxu0 0.0
    %5420 = vmatpush1.msra.mxu0 %v232
    %5421 = vmatprep.subr.mxu0 0.0
    %5422 = vmatpush1.msra.mxu0 %v233
    %5423 = vmatprep.subr.mxu0 0.0
    %5424 = vmatpush1.msra.mxu0 %v234
    %5425 = vmatprep.subr.mxu0 0.0
    %5426 = vmatpush1.msra.mxu0 %v235
    %5427 = vmatprep.subr.mxu0 0.0
    %5428 = vmatpush1.msra.mxu0 %v236
    %5429 = vmatprep.subr.mxu0 0.0
    %5430 = vmatpush1.msra.mxu0 %v237
    %5431 = vmatprep.subr.mxu0 0.0
    %5432 = vmatpush1.msra.mxu0 %v238
    %5433 = vmatprep.subr.mxu0 0.0
    %5434 = vmatpush1.msra.mxu0 %v239
    %5435 = vmatprep.subr.mxu0 0.0
    %5436 = vmatpush1.msra.mxu0 %v240
    %5437 = vmatprep.subr.mxu0 0.0
    %5438 = vmatpush1.msra.mxu0 %v241
    %5439 = vmatprep.subr.mxu0 0.0
    %5440 = vmatpush1.msra.mxu0 %v242
    %5441 = vmatprep.subr.mxu0 0.0
    %5442 = vmatpush1.msra.mxu0 %v243
    %5443 = vmatprep.subr.mxu0 0.0
    %5444 = vmatpush1.msra.mxu0 %v244
    %5445 = vmatprep.subr.mxu0 0.0
    %5446 = vmatpush1.msra.mxu0 %v245
    %5447 = vmatprep.subr.mxu0 0.0
    %5448 = vmatpush1.msra.mxu0 %v246
    %5449 = vmatprep.subr.mxu0 0.0
    %5450 = vmatpush1.msra.mxu0 %v247
    %5451 = vmatprep.subr.mxu0 0.0
    %5452 = vmatpush1.msra.mxu0 %v248
    %5453 = vmatprep.subr.mxu0 0.0
    %5454 = vmatpush1.msra.mxu0 %v249
    %5455 = vmatprep.subr.mxu0 0.0
    %5456 = vmatpush1.msra.mxu0 %v250
    %5457 = vmatprep.subr.mxu0 0.0
    %5458 = vmatpush1.msra.mxu0 %v251
    %5459 = vmatprep.mubr.f32.mxu0 %v5388
    %5460 = vmatmul.mubr.f32.gmra.mrb[0].mxu0 %v5387
    %v5461 = vpop.f32.mrb[0].mxu0
    %v5462 = vadd.f32 0.0, %v5461
    %v5463 = vpop.f32.mrb[0].mxu0
    %5464 = vmatprep.mubr.f32.mxu0 %v5390
    %5465 = vmatmul.mubr.f32.gmra.mrb[0].mxu0 %v5389
    %v5466 = vpop.f32.mrb[0].mxu0
    %v5467 = vadd.f32 0.0, %v5466
    %v5468 = vpop.f32.mrb[0].mxu0
    %5469 = vmatprep.mubr.f32.mxu0 %v5392
    %5470 = vmatmul.mubr.f32.gmra.mrb[0].mxu0 %v5391
    %v5471 = vpop.f32.mrb[0].mxu0
    %v5472 = vadd.f32 0.0, %v5471
    %v5473 = vpop.f32.mrb[0].mxu0
    %5474 = vmatprep.mubr.f32.mxu0 %v5394
    %5475 = vmatmul.mubr.f32.gmra.mrb[0].mxu0 %v5393
    %v5476 = vpop.f32.mrb[0].mxu0
    %v5477 = vadd.f32 0.0, %v5476
    %v5478 = vpop.f32.mrb[0].mxu0
    %5479 = vdwg.mxu0
    %v5480 = vadd.f32 %v5202, %v5462
    %v5481 = vadd.f32 %v5203, %v5467
    %v5482 = vadd.f32 %v5204, %v5472
    %v5483 = vadd.f32 %v5205, %v5477
    %v5484 = vadd.f32 %v5480, %v3954
    %v5485 = vadd.f32 %v5481, %v3954
    %v5486 = vadd.f32 %v5482, %v3954
    %v5487 = vadd.f32 %v5483, %v3954
    %5488 = vrot.lane.b32.xlu0 %v5484, 64
    %v5489 = vpop.permute.xlu0 %5488
    %5490 = vrot.lane.b32.xlu0 %v5485, 64
    %v5491 = vpop.permute.xlu0 %5490
    %5492 = vrot.lane.b32.xlu0 %v5486, 64
    %v5493 = vpop.permute.xlu0 %5492
    %5494 = vrot.lane.b32.xlu0 %v5487, 64
    %v5495 = vpop.permute.xlu0 %5494
    %v5496 = vmax.f32 %v5489, 0.0
    %v5497 = vmax.f32 %v5491, 0.0
    %v5498 = vmax.f32 %v5493, 0.0
    %v5499 = vmax.f32 %v5495, 0.0
    %vm5500 = vcmp.ne.f32.partialorder %v5489, %v5489
    %vm5501 = vcmp.ne.f32.partialorder %v5491, %v5491
    %vm5502 = vcmp.ne.f32.partialorder %v5493, %v5493
    %vm5503 = vcmp.ne.f32.partialorder %v5495, %v5495
    %v5504 = vadd.f32 %v5489, 0.0
    %v5505 = vadd.f32 %v5491, 0.0
    %v5506 = vadd.f32 %v5493, 0.0
    %v5507 = vadd.f32 %v5495, 0.0
    %v5508 = vand.u32 2147483647, %v5489
    %v5509 = vand.u32 2147483647, %v5491
    %v5510 = vand.u32 2147483647, %v5493
    %v5511 = vand.u32 2147483647, %v5495
    %v5512 = vsub.f32 0.0, %v5508
    %v5513 = vsub.f32 0.0, %v5509
    %v5514 = vsub.f32 0.0, %v5510
    %v5515 = vsub.f32 0.0, %v5511
    %v5516 = vmul.f32 %v5512, 1.442695
    %v5517 = vpow.pop %v5516
    %v5518 = vmul.f32 %v5513, 1.442695
    %v5519 = vpow.pop %v5518
    %v5520 = vmul.f32 %v5514, 1.442695
    %v5521 = vpow.pop %v5520
    %v5522 = vmul.f32 %v5515, 1.442695
    %v5523 = vpow.pop %v5522
    %v5524 = vadd.f32 %v5517, 1.0
    %v5525 = vlog2.pop %v5524
    %v5526 = vmul.f32 %v5525, 0.6931472
    %v5527 = vmul.f32 -0.5, %v5517
    %v5528 = vadd.f32 %v5527, 1.0
    %v5529 = vmul.f32 %v5528, %v5517
    %v5530 = vand.u32 2147483647, %v5517
    %vm5531 = vcmp.lt.f32.partialorder %v5530, 0.0004427343
    %v5532 = vsel %vm5531, %v5529, %v5526
    %v5533 = vadd.f32 %v5519, 1.0
    %v5534 = vlog2.pop %v5533
    %v5535 = vmul.f32 %v5534, 0.6931472
    %v5536 = vmul.f32 -0.5, %v5519
    %v5537 = vadd.f32 %v5536, 1.0
    %v5538 = vmul.f32 %v5537, %v5519
    %v5539 = vand.u32 2147483647, %v5519
    %vm5540 = vcmp.lt.f32.partialorder %v5539, 0.0004427343
    %v5541 = vsel %vm5540, %v5538, %v5535
    %v5542 = vadd.f32 %v5521, 1.0
    %v5543 = vlog2.pop %v5542
    %v5544 = vmul.f32 %v5543, 0.6931472
    %v5545 = vmul.f32 -0.5, %v5521
    %v5546 = vadd.f32 %v5545, 1.0
    %v5547 = vmul.f32 %v5546, %v5521
    %v5548 = vand.u32 2147483647, %v5521
    %vm5549 = vcmp.lt.f32.partialorder %v5548, 0.0004427343
    %v5550 = vsel %vm5549, %v5547, %v5544
    %v5551 = vadd.f32 %v5523, 1.0
    %v5552 = vlog2.pop %v5551
    %v5553 = vmul.f32 %v5552, 0.6931472
    %v5554 = vmul.f32 -0.5, %v5523
    %v5555 = vadd.f32 %v5554, 1.0
    %v5556 = vmul.f32 %v5555, %v5523
    %v5557 = vand.u32 2147483647, %v5523
    %vm5558 = vcmp.lt.f32.partialorder %v5557, 0.0004427343
    %v5559 = vsel %vm5558, %v5556, %v5553
    %v5560 = vadd.f32 %v5496, %v5532
    %v5561 = vadd.f32 %v5497, %v5541
    %v5562 = vadd.f32 %v5498, %v5550
    %v5563 = vadd.f32 %v5499, %v5559
    %v5564 = vsel %vm5500, %v5504, %v5560
    %v5565 = vsel %vm5501, %v5505, %v5561
    %v5566 = vsel %vm5502, %v5506, %v5562
    %v5567 = vsel %vm5503, %v5507, %v5563
    %v5568 = vadd.f32 %v5564, 1e-08
    %v5569 = vadd.f32 %v5565, 1e-08
    %v5570 = vadd.f32 %v5566, 1e-08
    %v5571 = vadd.f32 %v5567, 1e-08
    %s5572 = scalar_lea.vmem [#allocation2], 64
    %v5573 = vld [vmem:[%s5572] sm:$0xff]
    %v5574 = vld [vmem:[%s5572 + $0x8] sm:$0xff]
    %v5575 = vld [vmem:[%s5572 + $0x10] sm:$0xff]
    %v5576 = vld [vmem:[%s5572 + $0x18] sm:$0xff]
    %v5577 = vmul.f32 %v5568, %v5573
    %v5578 = vmul.f32 %v5569, %v5574
    %v5579 = vmul.f32 %v5570, %v5575
    %v5580 = vmul.f32 %v5571, %v5576
    %v5581 = vadd.f32 %v5484, %v5577
    %v5582 = vadd.f32 %v5485, %v5578
    %v5583 = vadd.f32 %v5486, %v5579
    %v5584 = vadd.f32 %v5487, %v5580
    %s5585 = scalar_lea.vmem [#allocation8], 32
    %5586 = vst [vmem:[%s5585] sm:$0xff] %v5484
    %5587 = vst [vmem:[%s5585 + $0x8] sm:$0xff] %v5485
    %5588 = vst [vmem:[%s5585 + $0x10] sm:$0xff] %v5486
    %5589 = vst [vmem:[%s5585 + $0x18] sm:$0xff] %v5487
    %s5590 = scalar_lea.vmem [#allocation9], 32
    %5591 = vst [vmem:[%s5590] sm:$0xff] %v5581
    %5592 = vst [vmem:[%s5590 + $0x8] sm:$0xff] %v5582
    %5593 = vst [vmem:[%s5590 + $0x10] sm:$0xff] %v5583
    %5594 = vst [vmem:[%s5590 + $0x18] sm:$0xff] %v5584
    // Predicated region
    $region58: #{tpu_custom_call.1} parent=1 // pred_check
      _
    $region59: #{tpu_custom_call.1} parent=1 // pred_check_branch
      %5596 = sbr.rel (0) target = $region61
    $region60: #{tpu_custom_call.1} parent=1 // pred_region
      %s5598 = ssub.s32 1024, 1024
      %5599 = vsyncadd [#allocation4], %s5598
      %s5600 = sshll.u32 [#allocation8], 4
      %s5601 = int_to_ptr.vmem [resolvable:$true] %s5600
      %5606 = dma.vmem_to_hbm [thread:$0]  %s5601, 1024, %s11, [#allocation4], 128, 128, 8
    $region61: #{tpu_custom_call.1} parent=1 // pred_fallthru
      _
    // Predicated region
    $region62: #{tpu_custom_call.1} parent=1 // pred_check
      _
    $region63: #{tpu_custom_call.1} parent=1 // pred_check_branch
      %5608 = sbr.rel (0) target = $region65
    $region64: #{tpu_custom_call.1} parent=1 // pred_region
      %s5610 = ssub.s32 1024, 1024
      %5611 = vsyncadd [#allocation10], %s5610
      %s5612 = sshll.u32 [#allocation9], 4
      %s5613 = int_to_ptr.vmem [resolvable:$true] %s5612
      %5618 = dma.vmem_to_hbm [thread:$0]  %s5613, 1024, %s12, [#allocation10], 128, 128, 8
    $region65: #{tpu_custom_call.1} parent=1 // pred_fallthru
      _
    // Predicated region
    $region66: #{tpu_custom_call.1} parent=1 // pred_check
      _
    $region67: #{tpu_custom_call.1} parent=1 // pred_check_branch
      %5620 = sbr.rel (0) target = $region69
    $region68: #{tpu_custom_call.1} parent=1 // pred_region
      %5621 = dma.done [#allocation4], 1024
    $region69: #{tpu_custom_call.1} parent=1 // pred_fallthru
      _
    // Predicated region
    $region70: #{tpu_custom_call.1} parent=1 // pred_check
      _
    $region71: #{tpu_custom_call.1} parent=1 // pred_check_branch
      %5623 = sbr.rel (0) target = $region73
    $region72: #{tpu_custom_call.1} parent=1 // pred_region
      %5624 = dma.done [#allocation10], 1024
    $region73: #{tpu_custom_call.1} parent=1 // pred_fallthru
      _
    %5625 = vsyncpa [#allocation3], 1
    %5626 = vsyncpa [#allocation6], 1
    %5627 = vsyncpa [#allocation4], 1
    %5628 = vsyncpa [#allocation10], 1

</llo_original>
